<compile_context>
chip_gen: v7x
topology: tpu7x:2x2x1
jax: 0.10.0
libtpu: 0.0.40
codegen_flags: <defaults>
</compile_context>

<pallas_src>
import functools

import jax
import jax.numpy as jnp
from jax.experimental import pallas as pl
from jax.experimental.pallas import tpu as pltpu


def _round_up(x, m):
    return (x + m - 1) // m * m


def _cdiv(a, b):
    return (a + b - 1) // b


def _vmem_budget_bytes():
    """Per-generation VMEM budget with headroom (v5e/v6e: 128 MiB, v7x: 64 MiB)."""
    cap = 64 << 20  # conservative default = v7x per-TensorCore VMEM
    try:
        info = pltpu.get_tpu_info()
        cap = int(getattr(info, "vmem_capacity_bytes", cap))
    except Exception:
        pass
    return max(32 << 20, int(cap * 0.8))


def _pick_h_tile(h_out, w_out, *, fits, want_multi):
    """Pick an output-row tile size dividing h_out.

    Legal blocks: (d * w_out) % 128 == 0 (lane-dense flattened last dim) or
    d == h_out (block equals full extent).  `fits(d)` adds vreg/VMEM budget
    constraints.  Prefers the largest fitting tile; only prefers >=2 tiles
    when `want_multi` (batch*groups == 1, so the grid needs the extra axis
    for megacore / 2-TC parallelism).
    """
    legal = [d for d in range(1, h_out + 1)
             if h_out % d == 0 and ((d * w_out) % 128 == 0 or d == h_out)]
    good = [d for d in legal if fits(d)]
    pool = good if good else legal          # last-resort: full height
    if want_multi:
        multi = [d for d in pool if d < h_out]
        if multi:
            return max(multi)
    return max(pool)


def _conv_kernel_vpu(x_ref, w_ref, o_ref, *, kh, kw, h_tile, w_out,
                     cin_g, cout_g, kdim, num_h_tiles):
    """Small-channel path: VPU broadcast-FMA, weights as scalars in 1D SMEM.

    x_ref : (cin_g, H_pad, W_pad)                 VMEM
    w_ref : (groups * cout_g * kdim,) f32         SMEM, K ordered (ci, dy, dx)
    o_ref : (cout_g, h_tile * w_out)              VMEM (lane-dense flattened)
    """
    gbase = pl.program_id(1) * (cout_g * kdim)

    if num_h_tiles == 1:
        def row_slice(dy):
            return x_ref[:, dy:dy + h_tile, :]
    else:
        row0 = pl.multiple_of(pl.program_id(2) * h_tile, h_tile)

        def row_slice(dy):
            return x_ref[:, pl.ds(row0 + dy, h_tile), :]

    # All accumulation in f32 (v5e-safe for bf16 inputs).  h_tile is capped by
    # the wrapper so these cout_g planes stay register-resident.
    acc = [jnp.zeros((h_tile, w_out), jnp.float32) for _ in range(cout_g)]
    for dy in range(kh):                         # kh <= 2, static -> unrolled
        rows = row_slice(dy)                     # (cin_g, h_tile, W_pad)
        for dx in range(kw):
            # shifted slab built ONCE, reused for every output channel
            slab = rows[:, :, dx:dx + w_out].astype(jnp.float32)
            for ci in range(cin_g):
                plane = slab[ci]                 # (h_tile, w_out)
                kbase = (ci * kh + dy) * kw + dx
                for co in range(cout_g):
                    acc[co] = acc[co] + w_ref[gbase + co * kdim + kbase] * plane
    # TODO(synk): lane-pack the accumulation itself (roll-based dx shift on a
    # flattened (cin, H*W) layout) when W << 128; stores are already lane-dense.
    out = jnp.stack(acc, axis=0).reshape(cout_g, h_tile * w_out)
    o_ref[...] = out.astype(o_ref.dtype)


def _conv_kernel_mxu(x_ref, w_ref, o_ref, *, kh, kw, h_tile, w_out,
                     cin_g, cout_g, num_h_tiles):
    """Large-channel path: per-tap K-split MXU accumulation (no im2col patch).

    x_ref : (cin_g, H_pad, W_pad)                 VMEM
    w_ref : (cout_g, kh*kw*cin_g)                 VMEM, K ordered (dy, dx, ci)
    o_ref : (cout_g, h_tile * w_out)              VMEM (lane-dense flattened)
    """
    hw = h_tile * w_out

    if num_h_tiles == 1:
        def row_slice(dy):
            return x_ref[:, dy:dy + h_tile, :]
    else:
        row0 = pl.multiple_of(pl.program_id(2) * h_tile, h_tile)

        def row_slice(dy):
            return x_ref[:, pl.ds(row0 + dy, h_tile), :]

    acc = jnp.zeros((cout_g, hw), jnp.float32)
    for dy in range(kh):
        rows = row_slice(dy)                     # (cin_g, h_tile, W_pad)
        for dx in range(kw):
            t = dy * kw + dx
            tap = rows[:, :, dx:dx + w_out].reshape(cin_g, hw)
            w_tap = w_ref[:, t * cin_g:(t + 1) * cin_g]      # (cout_g, cin_g)
            acc = acc + jnp.dot(w_tap, tap, preferred_element_type=jnp.float32)
    o_ref[...] = acc.astype(o_ref.dtype)


def _conv2d_nchw(x_pad, w, groups):
    """Grouped VALID conv, NCHW in / NCHW out, one pallas_call.

    x_pad : (N, Cin, H_pad, W_pad)  (already reflection padded)
    w     : (Cout, Cin // groups, kh, kw)
    """
    n, cin, h_pad, w_pad = x_pad.shape
    cout, cin_g, kh, kw = w.shape
    assert cin_g * groups == cin
    cout_g = cout // groups
    h_out = h_pad - kh + 1
    w_out = w_pad - kw + 1
    kdim = cin_g * kh * kw
    itemsize = jnp.dtype(x_pad.dtype).itemsize

    budget = _vmem_budget_bytes()
    want_multi = (n * groups == 1)
    in_blk = cin_g * _round_up(h_pad, 8) * _round_up(w_pad, 128) * itemsize

    # MXU only pays off for sizeable channel contractions.
    use_mxu = cout_g * kdim > 4096

    if not use_mxu:
        # ---------------- small-channel VPU path ----------------
        def fits(d):
            hw = d * w_out
            if hw % 128 != 0:
                return False
            # keep the cout_g f32 accumulator planes register-resident
            vregs = cout_g * _cdiv(d, 8) * _cdiv(w_out, 128)
            out_blk = _round_up(cout_g, 8) * _round_up(hw, 128) * itemsize
            need = 2 * in_blk + 2 * out_blk + (4 << 20)
            return vregs <= 32 and need <= budget

        h_tile = _pick_h_tile(h_out, w_out, fits=fits, want_multi=want_multi)
        num_h_tiles = h_out // h_tile
        hw_tile = h_tile * w_out
        # Flat 1D SMEM table (natural (cout, cin_g, kh, kw) flatten); avoids
        # the (8,128)-word padding blow-up of a multi-D SMEM ref.
        w_arg = w.astype(jnp.float32).reshape(-1)
        w_spec = pl.BlockSpec(memory_space=pltpu.MemorySpace.SMEM)
        kernel = functools.partial(
            _conv_kernel_vpu, kh=kh, kw=kw, h_tile=h_tile, w_out=w_out,
            cin_g=cin_g, cout_g=cout_g, kdim=kdim, num_h_tiles=num_h_tiles)
    else:
        # ---------------- large-channel MXU path ----------------
        def fits(d):
            hw = d * w_out
            if hw % 128 != 0:
                return False
            out_blk = _round_up(cout_g, 8) * _round_up(hw, 128) * itemsize
            w_blk = _round_up(cout_g, 8) * _round_up(kdim, 128) * itemsize
            acc_b = _round_up(cout_g, 8) * _round_up(hw, 128) * 4
            tap_b = _round_up(cin_g, 8) * _round_up(hw, 128) * itemsize
            need = 2 * in_blk + 2 * w_blk + 2 * out_blk + acc_b + 2 * tap_b + (4 << 20)
            return need <= budget

        h_tile = _pick_h_tile(h_out, w_out, fits=fits, want_multi=want_multi)
        num_h_tiles = h_out // h_tile
        hw_tile = h_tile * w_out
        # K ordered (dy, dx, ci) so the per-tap weight slice is contiguous.
        w_arg = jnp.transpose(
            w.reshape(groups, cout_g, cin_g, kh, kw), (0, 1, 3, 4, 2)
        ).reshape(groups, cout_g, kdim).astype(x_pad.dtype)
        w_spec = pl.BlockSpec((None, cout_g, kdim), lambda n_, g_, t_: (g_, 0, 0))
        kernel = functools.partial(
            _conv_kernel_mxu, kh=kh, kw=kw, h_tile=h_tile, w_out=w_out,
            cin_g=cin_g, cout_g=cout_g, num_h_tiles=num_h_tiles)

    out = pl.pallas_call(
        kernel,
        # (N, groups, cout_g, H*W): cout_g equals the full extent of its axis
        # (legal block for any groups) and the last dim is lane-dense.
        out_shape=jax.ShapeDtypeStruct((n, groups, cout_g, h_out * w_out),
                                       x_pad.dtype),
        grid_spec=pltpu.PrefetchScalarGridSpec(
            num_scalar_prefetch=0,
            grid=(n, groups, num_h_tiles),
            in_specs=[
                pl.BlockSpec((None, cin_g, h_pad, w_pad),
                             lambda n_, g_, t_: (n_, g_, 0, 0)),
                w_spec,
            ],
            out_specs=pl.BlockSpec((None, None, cout_g, hw_tile),
                                   lambda n_, g_, t_: (n_, g_, 0, t_)),
        ),
        compiler_params=pltpu.CompilerParams(
            dimension_semantics=("parallel", "parallel", "parallel"),
            vmem_limit_bytes=int(budget),
        ),
    )(x_pad, w_arg)
    # (N, groups, cout_g, H*W) -> (N, Cout, H, W): contiguous relabel (free).
    return out.reshape(n, cout, h_out, w_out)


class MPConv1D:
    """JAX/Pallas port of the PyTorch MPConv1D module (eval-mode forward)."""

    def __init__(self, in_channels, out_channels, kernel, groups=1,
                 disable_weight_norm=False, *, key):
        self.in_channels = in_channels
        self.out_channels = out_channels
        self.groups = groups
        self.disable_weight_norm = disable_weight_norm
        kh, kw = kernel
        # matches torch.randn(out_channels, in_channels // groups, *kernel)
        self.weight = jax.random.normal(
            key, (out_channels, in_channels // groups, kh, kw), dtype=jnp.float32)
        if self.weight.size == 0:
            raise ValueError(f"Invalid weight shape: {self.weight.shape}")
        assert kh <= 2
        # ReflectionPad2d((kw//2, kw//2, 0, kh//2)) -> (left, right, top, bottom)
        self.pad_lrtb = (kw // 2, kw // 2, 0, kh // 2)
        self.kernel = (kh, kw)
        self._fan = (in_channels // groups) * kh * kw     # w[0].numel()

    def __call__(self, x, gain=1.0):
        # magnitude-preserving rescale on the (tiny) weight tensor
        w = self.weight * (gain / self._fan ** 0.5)
        w = w.astype(x.dtype)
        l, r, t, b = self.pad_lrtb
        if l or r or t or b:
            # TODO(synk): fuse the reflection halo into the kernel to save an
            # extra HBM pass of the input.
            x = jnp.pad(x, ((0, 0), (0, 0), (t, b), (l, r)), mode="reflect")
        return _conv2d_nchw(x, w, self.groups)


if __name__ == "__main__":
    key = jax.random.PRNGKey(0)
    k_w, k_x = jax.random.split(key)

    N, Cin, H, W = 2, 4, 16, 16
    Cout = 8
    kernel = (2, 3)          # kh <= 2, as the module asserts
    gain = 1.3

    mod = MPConv1D(Cin, Cout, kernel, groups=1, key=k_w)
    x = jax.random.normal(k_x, (N, Cin, H, W), dtype=jnp.float32)

    y = mod(x, gain=gain)
    y = jax.block_until_ready(y)

    # Reference check against XLA conv (same eval-mode semantics).
    w_ref = mod.weight * (gain / mod.weight[0].size ** 0.5)
    l, r, t, b = mod.pad_lrtb
    x_pad = jnp.pad(x, ((0, 0), (0, 0), (t, b), (l, r)), mode="reflect")
    y_ref = jax.lax.conv_general_dilated(
        x_pad, w_ref, window_strides=(1, 1), padding="VALID",
        dimension_numbers=("NCHW", "OIHW", "NCHW"),
        feature_group_count=mod.groups)

    assert y.shape == y_ref.shape, (y.shape, y_ref.shape)
    assert jnp.allclose(y, y_ref, atol=1e-4, rtol=1e-4), float(jnp.max(jnp.abs(y - y_ref)))

    print("KERNEL_OK")
</pallas_src>

<mosaic_0001>
module attributes {stable_mosaic.version = 11 : i64} {
  func.func @_conv_kernel_vpu(%arg0: i32, %arg1: i32, %arg2: i32, %arg3: memref<1x4x17x18xf32, #tpu.memory_space<vmem>>, %arg4: memref<192xf32, #tpu.memory_space<smem>>, %arg5: memref<1x1x8x256xf32, #tpu.memory_space<vmem>>) attributes {dimension_semantics = [#tpu.dimension_semantics<parallel>, #tpu.dimension_semantics<parallel>, #tpu.dimension_semantics<parallel>], iteration_bounds = array<i64: 2, 1, 1>, scalar_prefetch = 0 : i64, scratch_operands = 0 : i64, tpu.core_type = #tpu.core_type<tc>, window_params = [{transform_indices = @transform_0, window_bounds = array<i64: 1, 4, 17, 18>}, {transform_indices = @transform_1, window_bounds = array<i64: 192>}, {transform_indices = @transform_2, window_bounds = array<i64: 1, 1, 8, 256>}]} {
    %c192_i32 = arith.constant 192 : i32
    %0 = arith.muli %arg1, %c192_i32 : i32
    %cst = arith.constant 0.000000e+00 : f32
    %1 = vector.broadcast %cst : f32 to vector<16x16xf32>
    %cst_0 = arith.constant 0.000000e+00 : f32
    %2 = vector.broadcast %cst_0 : f32 to vector<16x16xf32>
    %cst_1 = arith.constant 0.000000e+00 : f32
    %3 = vector.broadcast %cst_1 : f32 to vector<16x16xf32>
    %cst_2 = arith.constant 0.000000e+00 : f32
    %4 = vector.broadcast %cst_2 : f32 to vector<16x16xf32>
    %cst_3 = arith.constant 0.000000e+00 : f32
    %5 = vector.broadcast %cst_3 : f32 to vector<16x16xf32>
    %cst_4 = arith.constant 0.000000e+00 : f32
    %6 = vector.broadcast %cst_4 : f32 to vector<16x16xf32>
    %cst_5 = arith.constant 0.000000e+00 : f32
    %7 = vector.broadcast %cst_5 : f32 to vector<16x16xf32>
    %cst_6 = arith.constant 0.000000e+00 : f32
    %8 = vector.broadcast %cst_6 : f32 to vector<16x16xf32>
    %c0 = arith.constant 0 : index
    %c0_7 = arith.constant 0 : index
    %c0_8 = arith.constant 0 : index
    %c0_9 = arith.constant 0 : index
    %9 = vector.load %arg3[%c0, %c0_7, %c0_8, %c0_9] : memref<1x4x17x18xf32, #tpu.memory_space<vmem>>, vector<1x4x16x18xf32>
    %10 = vector.shape_cast %9 : vector<1x4x16x18xf32> to vector<4x16x18xf32>
    %11 = vector.extract_strided_slice %10 {offsets = [0, 0, 0], sizes = [4, 16, 16], strides = [1, 1, 1]} : vector<4x16x18xf32> to vector<4x16x16xf32>
    %12 = vector.extract_strided_slice %11 {offsets = [0, 0, 0], sizes = [1, 16, 16], strides = [1, 1, 1]} : vector<4x16x16xf32> to vector<1x16x16xf32>
    %13 = vector.shape_cast %12 : vector<1x16x16xf32> to vector<16x16xf32>
    %c0_i32 = arith.constant 0 : i32
    %14 = arith.addi %0, %c0_i32 : i32
    %c0_i32_10 = arith.constant 0 : i32
    %15 = arith.addi %14, %c0_i32_10 : i32
    %16 = arith.index_cast %15 : i32 to index
    %17 = memref.load %arg4[%16] : memref<192xf32, #tpu.memory_space<smem>>
    %18 = vector.broadcast %17 : f32 to vector<16x16xf32>
    %19 = arith.mulf %18, %13 : vector<16x16xf32>
    %20 = arith.addf %1, %19 : vector<16x16xf32>
    %c24_i32 = arith.constant 24 : i32
    %21 = arith.addi %0, %c24_i32 : i32
    %c0_i32_11 = arith.constant 0 : i32
    %22 = arith.addi %21, %c0_i32_11 : i32
    %23 = arith.index_cast %22 : i32 to index
    %24 = memref.load %arg4[%23] : memref<192xf32, #tpu.memory_space<smem>>
    %25 = vector.broadcast %24 : f32 to vector<16x16xf32>
    %26 = arith.mulf %25, %13 : vector<16x16xf32>
    %27 = arith.addf %2, %26 : vector<16x16xf32>
    %c48_i32 = arith.constant 48 : i32
    %28 = arith.addi %0, %c48_i32 : i32
    %c0_i32_12 = arith.constant 0 : i32
    %29 = arith.addi %28, %c0_i32_12 : i32
    %30 = arith.index_cast %29 : i32 to index
    %31 = memref.load %arg4[%30] : memref<192xf32, #tpu.memory_space<smem>>
    %32 = vector.broadcast %31 : f32 to vector<16x16xf32>
    %33 = arith.mulf %32, %13 : vector<16x16xf32>
    %34 = arith.addf %3, %33 : vector<16x16xf32>
    %c72_i32 = arith.constant 72 : i32
    %35 = arith.addi %0, %c72_i32 : i32
    %c0_i32_13 = arith.constant 0 : i32
    %36 = arith.addi %35, %c0_i32_13 : i32
    %37 = arith.index_cast %36 : i32 to index
    %38 = memref.load %arg4[%37] : memref<192xf32, #tpu.memory_space<smem>>
    %39 = vector.broadcast %38 : f32 to vector<16x16xf32>
    %40 = arith.mulf %39, %13 : vector<16x16xf32>
    %41 = arith.addf %4, %40 : vector<16x16xf32>
    %c96_i32 = arith.constant 96 : i32
    %42 = arith.addi %0, %c96_i32 : i32
    %c0_i32_14 = arith.constant 0 : i32
    %43 = arith.addi %42, %c0_i32_14 : i32
    %44 = arith.index_cast %43 : i32 to index
    %45 = memref.load %arg4[%44] : memref<192xf32, #tpu.memory_space<smem>>
    %46 = vector.broadcast %45 : f32 to vector<16x16xf32>
    %47 = arith.mulf %46, %13 : vector<16x16xf32>
    %48 = arith.addf %5, %47 : vector<16x16xf32>
    %c120_i32 = arith.constant 120 : i32
    %49 = arith.addi %0, %c120_i32 : i32
    %c0_i32_15 = arith.constant 0 : i32
    %50 = arith.addi %49, %c0_i32_15 : i32
    %51 = arith.index_cast %50 : i32 to index
    %52 = memref.load %arg4[%51] : memref<192xf32, #tpu.memory_space<smem>>
    %53 = vector.broadcast %52 : f32 to vector<16x16xf32>
    %54 = arith.mulf %53, %13 : vector<16x16xf32>
    %55 = arith.addf %6, %54 : vector<16x16xf32>
    %c144_i32 = arith.constant 144 : i32
    %56 = arith.addi %0, %c144_i32 : i32
    %c0_i32_16 = arith.constant 0 : i32
    %57 = arith.addi %56, %c0_i32_16 : i32
    %58 = arith.index_cast %57 : i32 to index
    %59 = memref.load %arg4[%58] : memref<192xf32, #tpu.memory_space<smem>>
    %60 = vector.broadcast %59 : f32 to vector<16x16xf32>
    %61 = arith.mulf %60, %13 : vector<16x16xf32>
    %62 = arith.addf %7, %61 : vector<16x16xf32>
    %c168_i32 = arith.constant 168 : i32
    %63 = arith.addi %0, %c168_i32 : i32
    %c0_i32_17 = arith.constant 0 : i32
    %64 = arith.addi %63, %c0_i32_17 : i32
    %65 = arith.index_cast %64 : i32 to index
    %66 = memref.load %arg4[%65] : memref<192xf32, #tpu.memory_space<smem>>
    %67 = vector.broadcast %66 : f32 to vector<16x16xf32>
    %68 = arith.mulf %67, %13 : vector<16x16xf32>
    %69 = arith.addf %8, %68 : vector<16x16xf32>
    %70 = vector.extract_strided_slice %11 {offsets = [1, 0, 0], sizes = [1, 16, 16], strides = [1, 1, 1]} : vector<4x16x16xf32> to vector<1x16x16xf32>
    %71 = vector.shape_cast %70 : vector<1x16x16xf32> to vector<16x16xf32>
    %c0_i32_18 = arith.constant 0 : i32
    %72 = arith.addi %0, %c0_i32_18 : i32
    %c6_i32 = arith.constant 6 : i32
    %73 = arith.addi %72, %c6_i32 : i32
    %74 = arith.index_cast %73 : i32 to index
    %75 = memref.load %arg4[%74] : memref<192xf32, #tpu.memory_space<smem>>
    %76 = vector.broadcast %75 : f32 to vector<16x16xf32>
    %77 = arith.mulf %76, %71 : vector<16x16xf32>
    %78 = arith.addf %20, %77 : vector<16x16xf32>
    %c24_i32_19 = arith.constant 24 : i32
    %79 = arith.addi %0, %c24_i32_19 : i32
    %c6_i32_20 = arith.constant 6 : i32
    %80 = arith.addi %79, %c6_i32_20 : i32
    %81 = arith.index_cast %80 : i32 to index
    %82 = memref.load %arg4[%81] : memref<192xf32, #tpu.memory_space<smem>>
    %83 = vector.broadcast %82 : f32 to vector<16x16xf32>
    %84 = arith.mulf %83, %71 : vector<16x16xf32>
    %85 = arith.addf %27, %84 : vector<16x16xf32>
    %c48_i32_21 = arith.constant 48 : i32
    %86 = arith.addi %0, %c48_i32_21 : i32
    %c6_i32_22 = arith.constant 6 : i32
    %87 = arith.addi %86, %c6_i32_22 : i32
    %88 = arith.index_cast %87 : i32 to index
    %89 = memref.load %arg4[%88] : memref<192xf32, #tpu.memory_space<smem>>
    %90 = vector.broadcast %89 : f32 to vector<16x16xf32>
    %91 = arith.mulf %90, %71 : vector<16x16xf32>
    %92 = arith.addf %34, %91 : vector<16x16xf32>
    %c72_i32_23 = arith.constant 72 : i32
    %93 = arith.addi %0, %c72_i32_23 : i32
    %c6_i32_24 = arith.constant 6 : i32
    %94 = arith.addi %93, %c6_i32_24 : i32
    %95 = arith.index_cast %94 : i32 to index
    %96 = memref.load %arg4[%95] : memref<192xf32, #tpu.memory_space<smem>>
    %97 = vector.broadcast %96 : f32 to vector<16x16xf32>
    %98 = arith.mulf %97, %71 : vector<16x16xf32>
    %99 = arith.addf %41, %98 : vector<16x16xf32>
    %c96_i32_25 = arith.constant 96 : i32
    %100 = arith.addi %0, %c96_i32_25 : i32
    %c6_i32_26 = arith.constant 6 : i32
    %101 = arith.addi %100, %c6_i32_26 : i32
    %102 = arith.index_cast %101 : i32 to index
    %103 = memref.load %arg4[%102] : memref<192xf32, #tpu.memory_space<smem>>
    %104 = vector.broadcast %103 : f32 to vector<16x16xf32>
    %105 = arith.mulf %104, %71 : vector<16x16xf32>
    %106 = arith.addf %48, %105 : vector<16x16xf32>
    %c120_i32_27 = arith.constant 120 : i32
    %107 = arith.addi %0, %c120_i32_27 : i32
    %c6_i32_28 = arith.constant 6 : i32
    %108 = arith.addi %107, %c6_i32_28 : i32
    %109 = arith.index_cast %108 : i32 to index
    %110 = memref.load %arg4[%109] : memref<192xf32, #tpu.memory_space<smem>>
    %111 = vector.broadcast %110 : f32 to vector<16x16xf32>
    %112 = arith.mulf %111, %71 : vector<16x16xf32>
    %113 = arith.addf %55, %112 : vector<16x16xf32>
    %c144_i32_29 = arith.constant 144 : i32
    %114 = arith.addi %0, %c144_i32_29 : i32
    %c6_i32_30 = arith.constant 6 : i32
    %115 = arith.addi %114, %c6_i32_30 : i32
    %116 = arith.index_cast %115 : i32 to index
    %117 = memref.load %arg4[%116] : memref<192xf32, #tpu.memory_space<smem>>
    %118 = vector.broadcast %117 : f32 to vector<16x16xf32>
    %119 = arith.mulf %118, %71 : vector<16x16xf32>
    %120 = arith.addf %62, %119 : vector<16x16xf32>
    %c168_i32_31 = arith.constant 168 : i32
    %121 = arith.addi %0, %c168_i32_31 : i32
    %c6_i32_32 = arith.constant 6 : i32
    %122 = arith.addi %121, %c6_i32_32 : i32
    %123 = arith.index_cast %122 : i32 to index
    %124 = memref.load %arg4[%123] : memref<192xf32, #tpu.memory_space<smem>>
    %125 = vector.broadcast %124 : f32 to vector<16x16xf32>
    %126 = arith.mulf %125, %71 : vector<16x16xf32>
    %127 = arith.addf %69, %126 : vector<16x16xf32>
    %128 = vector.extract_strided_slice %11 {offsets = [2, 0, 0], sizes = [1, 16, 16], strides = [1, 1, 1]} : vector<4x16x16xf32> to vector<1x16x16xf32>
    %129 = vector.shape_cast %128 : vector<1x16x16xf32> to vector<16x16xf32>
    %c0_i32_33 = arith.constant 0 : i32
    %130 = arith.addi %0, %c0_i32_33 : i32
    %c12_i32 = arith.constant 12 : i32
    %131 = arith.addi %130, %c12_i32 : i32
    %132 = arith.index_cast %131 : i32 to index
    %133 = memref.load %arg4[%132] : memref<192xf32, #tpu.memory_space<smem>>
    %134 = vector.broadcast %133 : f32 to vector<16x16xf32>
    %135 = arith.mulf %134, %129 : vector<16x16xf32>
    %136 = arith.addf %78, %135 : vector<16x16xf32>
    %c24_i32_34 = arith.constant 24 : i32
    %137 = arith.addi %0, %c24_i32_34 : i32
    %c12_i32_35 = arith.constant 12 : i32
    %138 = arith.addi %137, %c12_i32_35 : i32
    %139 = arith.index_cast %138 : i32 to index
    %140 = memref.load %arg4[%139] : memref<192xf32, #tpu.memory_space<smem>>
    %141 = vector.broadcast %140 : f32 to vector<16x16xf32>
    %142 = arith.mulf %141, %129 : vector<16x16xf32>
    %143 = arith.addf %85, %142 : vector<16x16xf32>
    %c48_i32_36 = arith.constant 48 : i32
    %144 = arith.addi %0, %c48_i32_36 : i32
    %c12_i32_37 = arith.constant 12 : i32
    %145 = arith.addi %144, %c12_i32_37 : i32
    %146 = arith.index_cast %145 : i32 to index
    %147 = memref.load %arg4[%146] : memref<192xf32, #tpu.memory_space<smem>>
    %148 = vector.broadcast %147 : f32 to vector<16x16xf32>
    %149 = arith.mulf %148, %129 : vector<16x16xf32>
    %150 = arith.addf %92, %149 : vector<16x16xf32>
    %c72_i32_38 = arith.constant 72 : i32
    %151 = arith.addi %0, %c72_i32_38 : i32
    %c12_i32_39 = arith.constant 12 : i32
    %152 = arith.addi %151, %c12_i32_39 : i32
    %153 = arith.index_cast %152 : i32 to index
    %154 = memref.load %arg4[%153] : memref<192xf32, #tpu.memory_space<smem>>
    %155 = vector.broadcast %154 : f32 to vector<16x16xf32>
    %156 = arith.mulf %155, %129 : vector<16x16xf32>
    %157 = arith.addf %99, %156 : vector<16x16xf32>
    %c96_i32_40 = arith.constant 96 : i32
    %158 = arith.addi %0, %c96_i32_40 : i32
    %c12_i32_41 = arith.constant 12 : i32
    %159 = arith.addi %158, %c12_i32_41 : i32
    %160 = arith.index_cast %159 : i32 to index
    %161 = memref.load %arg4[%160] : memref<192xf32, #tpu.memory_space<smem>>
    %162 = vector.broadcast %161 : f32 to vector<16x16xf32>
    %163 = arith.mulf %162, %129 : vector<16x16xf32>
    %164 = arith.addf %106, %163 : vector<16x16xf32>
    %c120_i32_42 = arith.constant 120 : i32
    %165 = arith.addi %0, %c120_i32_42 : i32
    %c12_i32_43 = arith.constant 12 : i32
    %166 = arith.addi %165, %c12_i32_43 : i32
    %167 = arith.index_cast %166 : i32 to index
    %168 = memref.load %arg4[%167] : memref<192xf32, #tpu.memory_space<smem>>
    %169 = vector.broadcast %168 : f32 to vector<16x16xf32>
    %170 = arith.mulf %169, %129 : vector<16x16xf32>
    %171 = arith.addf %113, %170 : vector<16x16xf32>
    %c144_i32_44 = arith.constant 144 : i32
    %172 = arith.addi %0, %c144_i32_44 : i32
    %c12_i32_45 = arith.constant 12 : i32
    %173 = arith.addi %172, %c12_i32_45 : i32
    %174 = arith.index_cast %173 : i32 to index
    %175 = memref.load %arg4[%174] : memref<192xf32, #tpu.memory_space<smem>>
    %176 = vector.broadcast %175 : f32 to vector<16x16xf32>
    %177 = arith.mulf %176, %129 : vector<16x16xf32>
    %178 = arith.addf %120, %177 : vector<16x16xf32>
    %c168_i32_46 = arith.constant 168 : i32
    %179 = arith.addi %0, %c168_i32_46 : i32
    %c12_i32_47 = arith.constant 12 : i32
    %180 = arith.addi %179, %c12_i32_47 : i32
    %181 = arith.index_cast %180 : i32 to index
    %182 = memref.load %arg4[%181] : memref<192xf32, #tpu.memory_space<smem>>
    %183 = vector.broadcast %182 : f32 to vector<16x16xf32>
    %184 = arith.mulf %183, %129 : vector<16x16xf32>
    %185 = arith.addf %127, %184 : vector<16x16xf32>
    %186 = vector.extract_strided_slice %11 {offsets = [3, 0, 0], sizes = [1, 16, 16], strides = [1, 1, 1]} : vector<4x16x16xf32> to vector<1x16x16xf32>
    %187 = vector.shape_cast %186 : vector<1x16x16xf32> to vector<16x16xf32>
    %c0_i32_48 = arith.constant 0 : i32
    %188 = arith.addi %0, %c0_i32_48 : i32
    %c18_i32 = arith.constant 18 : i32
    %189 = arith.addi %188, %c18_i32 : i32
    %190 = arith.index_cast %189 : i32 to index
    %191 = memref.load %arg4[%190] : memref<192xf32, #tpu.memory_space<smem>>
    %192 = vector.broadcast %191 : f32 to vector<16x16xf32>
    %193 = arith.mulf %192, %187 : vector<16x16xf32>
    %194 = arith.addf %136, %193 : vector<16x16xf32>
    %c24_i32_49 = arith.constant 24 : i32
    %195 = arith.addi %0, %c24_i32_49 : i32
    %c18_i32_50 = arith.constant 18 : i32
    %196 = arith.addi %195, %c18_i32_50 : i32
    %197 = arith.index_cast %196 : i32 to index
    %198 = memref.load %arg4[%197] : memref<192xf32, #tpu.memory_space<smem>>
    %199 = vector.broadcast %198 : f32 to vector<16x16xf32>
    %200 = arith.mulf %199, %187 : vector<16x16xf32>
    %201 = arith.addf %143, %200 : vector<16x16xf32>
    %c48_i32_51 = arith.constant 48 : i32
    %202 = arith.addi %0, %c48_i32_51 : i32
    %c18_i32_52 = arith.constant 18 : i32
    %203 = arith.addi %202, %c18_i32_52 : i32
    %204 = arith.index_cast %203 : i32 to index
    %205 = memref.load %arg4[%204] : memref<192xf32, #tpu.memory_space<smem>>
    %206 = vector.broadcast %205 : f32 to vector<16x16xf32>
    %207 = arith.mulf %206, %187 : vector<16x16xf32>
    %208 = arith.addf %150, %207 : vector<16x16xf32>
    %c72_i32_53 = arith.constant 72 : i32
    %209 = arith.addi %0, %c72_i32_53 : i32
    %c18_i32_54 = arith.constant 18 : i32
    %210 = arith.addi %209, %c18_i32_54 : i32
    %211 = arith.index_cast %210 : i32 to index
    %212 = memref.load %arg4[%211] : memref<192xf32, #tpu.memory_space<smem>>
    %213 = vector.broadcast %212 : f32 to vector<16x16xf32>
    %214 = arith.mulf %213, %187 : vector<16x16xf32>
    %215 = arith.addf %157, %214 : vector<16x16xf32>
    %c96_i32_55 = arith.constant 96 : i32
    %216 = arith.addi %0, %c96_i32_55 : i32
    %c18_i32_56 = arith.constant 18 : i32
    %217 = arith.addi %216, %c18_i32_56 : i32
    %218 = arith.index_cast %217 : i32 to index
    %219 = memref.load %arg4[%218] : memref<192xf32, #tpu.memory_space<smem>>
    %220 = vector.broadcast %219 : f32 to vector<16x16xf32>
    %221 = arith.mulf %220, %187 : vector<16x16xf32>
    %222 = arith.addf %164, %221 : vector<16x16xf32>
    %c120_i32_57 = arith.constant 120 : i32
    %223 = arith.addi %0, %c120_i32_57 : i32
    %c18_i32_58 = arith.constant 18 : i32
    %224 = arith.addi %223, %c18_i32_58 : i32
    %225 = arith.index_cast %224 : i32 to index
    %226 = memref.load %arg4[%225] : memref<192xf32, #tpu.memory_space<smem>>
    %227 = vector.broadcast %226 : f32 to vector<16x16xf32>
    %228 = arith.mulf %227, %187 : vector<16x16xf32>
    %229 = arith.addf %171, %228 : vector<16x16xf32>
    %c144_i32_59 = arith.constant 144 : i32
    %230 = arith.addi %0, %c144_i32_59 : i32
    %c18_i32_60 = arith.constant 18 : i32
    %231 = arith.addi %230, %c18_i32_60 : i32
    %232 = arith.index_cast %231 : i32 to index
    %233 = memref.load %arg4[%232] : memref<192xf32, #tpu.memory_space<smem>>
    %234 = vector.broadcast %233 : f32 to vector<16x16xf32>
    %235 = arith.mulf %234, %187 : vector<16x16xf32>
    %236 = arith.addf %178, %235 : vector<16x16xf32>
    %c168_i32_61 = arith.constant 168 : i32
    %237 = arith.addi %0, %c168_i32_61 : i32
    %c18_i32_62 = arith.constant 18 : i32
    %238 = arith.addi %237, %c18_i32_62 : i32
    %239 = arith.index_cast %238 : i32 to index
    %240 = memref.load %arg4[%239] : memref<192xf32, #tpu.memory_space<smem>>
    %241 = vector.broadcast %240 : f32 to vector<16x16xf32>
    %242 = arith.mulf %241, %187 : vector<16x16xf32>
    %243 = arith.addf %185, %242 : vector<16x16xf32>
    %244 = vector.extract_strided_slice %10 {offsets = [0, 0, 1], sizes = [4, 16, 16], strides = [1, 1, 1]} : vector<4x16x18xf32> to vector<4x16x16xf32>
    %245 = vector.extract_strided_slice %244 {offsets = [0, 0, 0], sizes = [1, 16, 16], strides = [1, 1, 1]} : vector<4x16x16xf32> to vector<1x16x16xf32>
    %246 = vector.shape_cast %245 : vector<1x16x16xf32> to vector<16x16xf32>
    %c0_i32_63 = arith.constant 0 : i32
    %247 = arith.addi %0, %c0_i32_63 : i32
    %c1_i32 = arith.constant 1 : i32
    %248 = arith.addi %247, %c1_i32 : i32
    %249 = arith.index_cast %248 : i32 to index
    %250 = memref.load %arg4[%249] : memref<192xf32, #tpu.memory_space<smem>>
    %251 = vector.broadcast %250 : f32 to vector<16x16xf32>
    %252 = arith.mulf %251, %246 : vector<16x16xf32>
    %253 = arith.addf %194, %252 : vector<16x16xf32>
    %c24_i32_64 = arith.constant 24 : i32
    %254 = arith.addi %0, %c24_i32_64 : i32
    %c1_i32_65 = arith.constant 1 : i32
    %255 = arith.addi %254, %c1_i32_65 : i32
    %256 = arith.index_cast %255 : i32 to index
    %257 = memref.load %arg4[%256] : memref<192xf32, #tpu.memory_space<smem>>
    %258 = vector.broadcast %257 : f32 to vector<16x16xf32>
    %259 = arith.mulf %258, %246 : vector<16x16xf32>
    %260 = arith.addf %201, %259 : vector<16x16xf32>
    %c48_i32_66 = arith.constant 48 : i32
    %261 = arith.addi %0, %c48_i32_66 : i32
    %c1_i32_67 = arith.constant 1 : i32
    %262 = arith.addi %261, %c1_i32_67 : i32
    %263 = arith.index_cast %262 : i32 to index
    %264 = memref.load %arg4[%263] : memref<192xf32, #tpu.memory_space<smem>>
    %265 = vector.broadcast %264 : f32 to vector<16x16xf32>
    %266 = arith.mulf %265, %246 : vector<16x16xf32>
    %267 = arith.addf %208, %266 : vector<16x16xf32>
    %c72_i32_68 = arith.constant 72 : i32
    %268 = arith.addi %0, %c72_i32_68 : i32
    %c1_i32_69 = arith.constant 1 : i32
    %269 = arith.addi %268, %c1_i32_69 : i32
    %270 = arith.index_cast %269 : i32 to index
    %271 = memref.load %arg4[%270] : memref<192xf32, #tpu.memory_space<smem>>
    %272 = vector.broadcast %271 : f32 to vector<16x16xf32>
    %273 = arith.mulf %272, %246 : vector<16x16xf32>
    %274 = arith.addf %215, %273 : vector<16x16xf32>
    %c96_i32_70 = arith.constant 96 : i32
    %275 = arith.addi %0, %c96_i32_70 : i32
    %c1_i32_71 = arith.constant 1 : i32
    %276 = arith.addi %275, %c1_i32_71 : i32
    %277 = arith.index_cast %276 : i32 to index
    %278 = memref.load %arg4[%277] : memref<192xf32, #tpu.memory_space<smem>>
    %279 = vector.broadcast %278 : f32 to vector<16x16xf32>
    %280 = arith.mulf %279, %246 : vector<16x16xf32>
    %281 = arith.addf %222, %280 : vector<16x16xf32>
    %c120_i32_72 = arith.constant 120 : i32
    %282 = arith.addi %0, %c120_i32_72 : i32
    %c1_i32_73 = arith.constant 1 : i32
    %283 = arith.addi %282, %c1_i32_73 : i32
    %284 = arith.index_cast %283 : i32 to index
    %285 = memref.load %arg4[%284] : memref<192xf32, #tpu.memory_space<smem>>
    %286 = vector.broadcast %285 : f32 to vector<16x16xf32>
    %287 = arith.mulf %286, %246 : vector<16x16xf32>
    %288 = arith.addf %229, %287 : vector<16x16xf32>
    %c144_i32_74 = arith.constant 144 : i32
    %289 = arith.addi %0, %c144_i32_74 : i32
    %c1_i32_75 = arith.constant 1 : i32
    %290 = arith.addi %289, %c1_i32_75 : i32
    %291 = arith.index_cast %290 : i32 to index
    %292 = memref.load %arg4[%291] : memref<192xf32, #tpu.memory_space<smem>>
    %293 = vector.broadcast %292 : f32 to vector<16x16xf32>
    %294 = arith.mulf %293, %246 : vector<16x16xf32>
    %295 = arith.addf %236, %294 : vector<16x16xf32>
    %c168_i32_76 = arith.constant 168 : i32
    %296 = arith.addi %0, %c168_i32_76 : i32
    %c1_i32_77 = arith.constant 1 : i32
    %297 = arith.addi %296, %c1_i32_77 : i32
    %298 = arith.index_cast %297 : i32 to index
    %299 = memref.load %arg4[%298] : memref<192xf32, #tpu.memory_space<smem>>
    %300 = vector.broadcast %299 : f32 to vector<16x16xf32>
    %301 = arith.mulf %300, %246 : vector<16x16xf32>
    %302 = arith.addf %243, %301 : vector<16x16xf32>
    %303 = vector.extract_strided_slice %244 {offsets = [1, 0, 0], sizes = [1, 16, 16], strides = [1, 1, 1]} : vector<4x16x16xf32> to vector<1x16x16xf32>
    %304 = vector.shape_cast %303 : vector<1x16x16xf32> to vector<16x16xf32>
    %c0_i32_78 = arith.constant 0 : i32
    %305 = arith.addi %0, %c0_i32_78 : i32
    %c7_i32 = arith.constant 7 : i32
    %306 = arith.addi %305, %c7_i32 : i32
    %307 = arith.index_cast %306 : i32 to index
    %308 = memref.load %arg4[%307] : memref<192xf32, #tpu.memory_space<smem>>
    %309 = vector.broadcast %308 : f32 to vector<16x16xf32>
    %310 = arith.mulf %309, %304 : vector<16x16xf32>
    %311 = arith.addf %253, %310 : vector<16x16xf32>
    %c24_i32_79 = arith.constant 24 : i32
    %312 = arith.addi %0, %c24_i32_79 : i32
    %c7_i32_80 = arith.constant 7 : i32
    %313 = arith.addi %312, %c7_i32_80 : i32
    %314 = arith.index_cast %313 : i32 to index
    %315 = memref.load %arg4[%314] : memref<192xf32, #tpu.memory_space<smem>>
    %316 = vector.broadcast %315 : f32 to vector<16x16xf32>
    %317 = arith.mulf %316, %304 : vector<16x16xf32>
    %318 = arith.addf %260, %317 : vector<16x16xf32>
    %c48_i32_81 = arith.constant 48 : i32
    %319 = arith.addi %0, %c48_i32_81 : i32
    %c7_i32_82 = arith.constant 7 : i32
    %320 = arith.addi %319, %c7_i32_82 : i32
    %321 = arith.index_cast %320 : i32 to index
    %322 = memref.load %arg4[%321] : memref<192xf32, #tpu.memory_space<smem>>
    %323 = vector.broadcast %322 : f32 to vector<16x16xf32>
    %324 = arith.mulf %323, %304 : vector<16x16xf32>
    %325 = arith.addf %267, %324 : vector<16x16xf32>
    %c72_i32_83 = arith.constant 72 : i32
    %326 = arith.addi %0, %c72_i32_83 : i32
    %c7_i32_84 = arith.constant 7 : i32
    %327 = arith.addi %326, %c7_i32_84 : i32
    %328 = arith.index_cast %327 : i32 to index
    %329 = memref.load %arg4[%328] : memref<192xf32, #tpu.memory_space<smem>>
    %330 = vector.broadcast %329 : f32 to vector<16x16xf32>
    %331 = arith.mulf %330, %304 : vector<16x16xf32>
    %332 = arith.addf %274, %331 : vector<16x16xf32>
    %c96_i32_85 = arith.constant 96 : i32
    %333 = arith.addi %0, %c96_i32_85 : i32
    %c7_i32_86 = arith.constant 7 : i32
    %334 = arith.addi %333, %c7_i32_86 : i32
    %335 = arith.index_cast %334 : i32 to index
    %336 = memref.load %arg4[%335] : memref<192xf32, #tpu.memory_space<smem>>
    %337 = vector.broadcast %336 : f32 to vector<16x16xf32>
    %338 = arith.mulf %337, %304 : vector<16x16xf32>
    %339 = arith.addf %281, %338 : vector<16x16xf32>
    %c120_i32_87 = arith.constant 120 : i32
    %340 = arith.addi %0, %c120_i32_87 : i32
    %c7_i32_88 = arith.constant 7 : i32
    %341 = arith.addi %340, %c7_i32_88 : i32
    %342 = arith.index_cast %341 : i32 to index
    %343 = memref.load %arg4[%342] : memref<192xf32, #tpu.memory_space<smem>>
    %344 = vector.broadcast %343 : f32 to vector<16x16xf32>
    %345 = arith.mulf %344, %304 : vector<16x16xf32>
    %346 = arith.addf %288, %345 : vector<16x16xf32>
    %c144_i32_89 = arith.constant 144 : i32
    %347 = arith.addi %0, %c144_i32_89 : i32
    %c7_i32_90 = arith.constant 7 : i32
    %348 = arith.addi %347, %c7_i32_90 : i32
    %349 = arith.index_cast %348 : i32 to index
    %350 = memref.load %arg4[%349] : memref<192xf32, #tpu.memory_space<smem>>
    %351 = vector.broadcast %350 : f32 to vector<16x16xf32>
    %352 = arith.mulf %351, %304 : vector<16x16xf32>
    %353 = arith.addf %295, %352 : vector<16x16xf32>
    %c168_i32_91 = arith.constant 168 : i32
    %354 = arith.addi %0, %c168_i32_91 : i32
    %c7_i32_92 = arith.constant 7 : i32
    %355 = arith.addi %354, %c7_i32_92 : i32
    %356 = arith.index_cast %355 : i32 to index
    %357 = memref.load %arg4[%356] : memref<192xf32, #tpu.memory_space<smem>>
    %358 = vector.broadcast %357 : f32 to vector<16x16xf32>
    %359 = arith.mulf %358, %304 : vector<16x16xf32>
    %360 = arith.addf %302, %359 : vector<16x16xf32>
    %361 = vector.extract_strided_slice %244 {offsets = [2, 0, 0], sizes = [1, 16, 16], strides = [1, 1, 1]} : vector<4x16x16xf32> to vector<1x16x16xf32>
    %362 = vector.shape_cast %361 : vector<1x16x16xf32> to vector<16x16xf32>
    %c0_i32_93 = arith.constant 0 : i32
    %363 = arith.addi %0, %c0_i32_93 : i32
    %c13_i32 = arith.constant 13 : i32
    %364 = arith.addi %363, %c13_i32 : i32
    %365 = arith.index_cast %364 : i32 to index
    %366 = memref.load %arg4[%365] : memref<192xf32, #tpu.memory_space<smem>>
    %367 = vector.broadcast %366 : f32 to vector<16x16xf32>
    %368 = arith.mulf %367, %362 : vector<16x16xf32>
    %369 = arith.addf %311, %368 : vector<16x16xf32>
    %c24_i32_94 = arith.constant 24 : i32
    %370 = arith.addi %0, %c24_i32_94 : i32
    %c13_i32_95 = arith.constant 13 : i32
    %371 = arith.addi %370, %c13_i32_95 : i32
    %372 = arith.index_cast %371 : i32 to index
    %373 = memref.load %arg4[%372] : memref<192xf32, #tpu.memory_space<smem>>
    %374 = vector.broadcast %373 : f32 to vector<16x16xf32>
    %375 = arith.mulf %374, %362 : vector<16x16xf32>
    %376 = arith.addf %318, %375 : vector<16x16xf32>
    %c48_i32_96 = arith.constant 48 : i32
    %377 = arith.addi %0, %c48_i32_96 : i32
    %c13_i32_97 = arith.constant 13 : i32
    %378 = arith.addi %377, %c13_i32_97 : i32
    %379 = arith.index_cast %378 : i32 to index
    %380 = memref.load %arg4[%379] : memref<192xf32, #tpu.memory_space<smem>>
    %381 = vector.broadcast %380 : f32 to vector<16x16xf32>
    %382 = arith.mulf %381, %362 : vector<16x16xf32>
    %383 = arith.addf %325, %382 : vector<16x16xf32>
    %c72_i32_98 = arith.constant 72 : i32
    %384 = arith.addi %0, %c72_i32_98 : i32
    %c13_i32_99 = arith.constant 13 : i32
    %385 = arith.addi %384, %c13_i32_99 : i32
    %386 = arith.index_cast %385 : i32 to index
    %387 = memref.load %arg4[%386] : memref<192xf32, #tpu.memory_space<smem>>
    %388 = vector.broadcast %387 : f32 to vector<16x16xf32>
    %389 = arith.mulf %388, %362 : vector<16x16xf32>
    %390 = arith.addf %332, %389 : vector<16x16xf32>
    %c96_i32_100 = arith.constant 96 : i32
    %391 = arith.addi %0, %c96_i32_100 : i32
    %c13_i32_101 = arith.constant 13 : i32
    %392 = arith.addi %391, %c13_i32_101 : i32
    %393 = arith.index_cast %392 : i32 to index
    %394 = memref.load %arg4[%393] : memref<192xf32, #tpu.memory_space<smem>>
    %395 = vector.broadcast %394 : f32 to vector<16x16xf32>
    %396 = arith.mulf %395, %362 : vector<16x16xf32>
    %397 = arith.addf %339, %396 : vector<16x16xf32>
    %c120_i32_102 = arith.constant 120 : i32
    %398 = arith.addi %0, %c120_i32_102 : i32
    %c13_i32_103 = arith.constant 13 : i32
    %399 = arith.addi %398, %c13_i32_103 : i32
    %400 = arith.index_cast %399 : i32 to index
    %401 = memref.load %arg4[%400] : memref<192xf32, #tpu.memory_space<smem>>
    %402 = vector.broadcast %401 : f32 to vector<16x16xf32>
    %403 = arith.mulf %402, %362 : vector<16x16xf32>
    %404 = arith.addf %346, %403 : vector<16x16xf32>
    %c144_i32_104 = arith.constant 144 : i32
    %405 = arith.addi %0, %c144_i32_104 : i32
    %c13_i32_105 = arith.constant 13 : i32
    %406 = arith.addi %405, %c13_i32_105 : i32
    %407 = arith.index_cast %406 : i32 to index
    %408 = memref.load %arg4[%407] : memref<192xf32, #tpu.memory_space<smem>>
    %409 = vector.broadcast %408 : f32 to vector<16x16xf32>
    %410 = arith.mulf %409, %362 : vector<16x16xf32>
    %411 = arith.addf %353, %410 : vector<16x16xf32>
    %c168_i32_106 = arith.constant 168 : i32
    %412 = arith.addi %0, %c168_i32_106 : i32
    %c13_i32_107 = arith.constant 13 : i32
    %413 = arith.addi %412, %c13_i32_107 : i32
    %414 = arith.index_cast %413 : i32 to index
    %415 = memref.load %arg4[%414] : memref<192xf32, #tpu.memory_space<smem>>
    %416 = vector.broadcast %415 : f32 to vector<16x16xf32>
    %417 = arith.mulf %416, %362 : vector<16x16xf32>
    %418 = arith.addf %360, %417 : vector<16x16xf32>
    %419 = vector.extract_strided_slice %244 {offsets = [3, 0, 0], sizes = [1, 16, 16], strides = [1, 1, 1]} : vector<4x16x16xf32> to vector<1x16x16xf32>
    %420 = vector.shape_cast %419 : vector<1x16x16xf32> to vector<16x16xf32>
    %c0_i32_108 = arith.constant 0 : i32
    %421 = arith.addi %0, %c0_i32_108 : i32
    %c19_i32 = arith.constant 19 : i32
    %422 = arith.addi %421, %c19_i32 : i32
    %423 = arith.index_cast %422 : i32 to index
    %424 = memref.load %arg4[%423] : memref<192xf32, #tpu.memory_space<smem>>
    %425 = vector.broadcast %424 : f32 to vector<16x16xf32>
    %426 = arith.mulf %425, %420 : vector<16x16xf32>
    %427 = arith.addf %369, %426 : vector<16x16xf32>
    %c24_i32_109 = arith.constant 24 : i32
    %428 = arith.addi %0, %c24_i32_109 : i32
    %c19_i32_110 = arith.constant 19 : i32
    %429 = arith.addi %428, %c19_i32_110 : i32
    %430 = arith.index_cast %429 : i32 to index
    %431 = memref.load %arg4[%430] : memref<192xf32, #tpu.memory_space<smem>>
    %432 = vector.broadcast %431 : f32 to vector<16x16xf32>
    %433 = arith.mulf %432, %420 : vector<16x16xf32>
    %434 = arith.addf %376, %433 : vector<16x16xf32>
    %c48_i32_111 = arith.constant 48 : i32
    %435 = arith.addi %0, %c48_i32_111 : i32
    %c19_i32_112 = arith.constant 19 : i32
    %436 = arith.addi %435, %c19_i32_112 : i32
    %437 = arith.index_cast %436 : i32 to index
    %438 = memref.load %arg4[%437] : memref<192xf32, #tpu.memory_space<smem>>
    %439 = vector.broadcast %438 : f32 to vector<16x16xf32>
    %440 = arith.mulf %439, %420 : vector<16x16xf32>
    %441 = arith.addf %383, %440 : vector<16x16xf32>
    %c72_i32_113 = arith.constant 72 : i32
    %442 = arith.addi %0, %c72_i32_113 : i32
    %c19_i32_114 = arith.constant 19 : i32
    %443 = arith.addi %442, %c19_i32_114 : i32
    %444 = arith.index_cast %443 : i32 to index
    %445 = memref.load %arg4[%444] : memref<192xf32, #tpu.memory_space<smem>>
    %446 = vector.broadcast %445 : f32 to vector<16x16xf32>
    %447 = arith.mulf %446, %420 : vector<16x16xf32>
    %448 = arith.addf %390, %447 : vector<16x16xf32>
    %c96_i32_115 = arith.constant 96 : i32
    %449 = arith.addi %0, %c96_i32_115 : i32
    %c19_i32_116 = arith.constant 19 : i32
    %450 = arith.addi %449, %c19_i32_116 : i32
    %451 = arith.index_cast %450 : i32 to index
    %452 = memref.load %arg4[%451] : memref<192xf32, #tpu.memory_space<smem>>
    %453 = vector.broadcast %452 : f32 to vector<16x16xf32>
    %454 = arith.mulf %453, %420 : vector<16x16xf32>
    %455 = arith.addf %397, %454 : vector<16x16xf32>
    %c120_i32_117 = arith.constant 120 : i32
    %456 = arith.addi %0, %c120_i32_117 : i32
    %c19_i32_118 = arith.constant 19 : i32
    %457 = arith.addi %456, %c19_i32_118 : i32
    %458 = arith.index_cast %457 : i32 to index
    %459 = memref.load %arg4[%458] : memref<192xf32, #tpu.memory_space<smem>>
    %460 = vector.broadcast %459 : f32 to vector<16x16xf32>
    %461 = arith.mulf %460, %420 : vector<16x16xf32>
    %462 = arith.addf %404, %461 : vector<16x16xf32>
    %c144_i32_119 = arith.constant 144 : i32
    %463 = arith.addi %0, %c144_i32_119 : i32
    %c19_i32_120 = arith.constant 19 : i32
    %464 = arith.addi %463, %c19_i32_120 : i32
    %465 = arith.index_cast %464 : i32 to index
    %466 = memref.load %arg4[%465] : memref<192xf32, #tpu.memory_space<smem>>
    %467 = vector.broadcast %466 : f32 to vector<16x16xf32>
    %468 = arith.mulf %467, %420 : vector<16x16xf32>
    %469 = arith.addf %411, %468 : vector<16x16xf32>
    %c168_i32_121 = arith.constant 168 : i32
    %470 = arith.addi %0, %c168_i32_121 : i32
    %c19_i32_122 = arith.constant 19 : i32
    %471 = arith.addi %470, %c19_i32_122 : i32
    %472 = arith.index_cast %471 : i32 to index
    %473 = memref.load %arg4[%472] : memref<192xf32, #tpu.memory_space<smem>>
    %474 = vector.broadcast %473 : f32 to vector<16x16xf32>
    %475 = arith.mulf %474, %420 : vector<16x16xf32>
    %476 = arith.addf %418, %475 : vector<16x16xf32>
    %477 = vector.extract_strided_slice %10 {offsets = [0, 0, 2], sizes = [4, 16, 16], strides = [1, 1, 1]} : vector<4x16x18xf32> to vector<4x16x16xf32>
    %478 = vector.extract_strided_slice %477 {offsets = [0, 0, 0], sizes = [1, 16, 16], strides = [1, 1, 1]} : vector<4x16x16xf32> to vector<1x16x16xf32>
    %479 = vector.shape_cast %478 : vector<1x16x16xf32> to vector<16x16xf32>
    %c0_i32_123 = arith.constant 0 : i32
    %480 = arith.addi %0, %c0_i32_123 : i32
    %c2_i32 = arith.constant 2 : i32
    %481 = arith.addi %480, %c2_i32 : i32
    %482 = arith.index_cast %481 : i32 to index
    %483 = memref.load %arg4[%482] : memref<192xf32, #tpu.memory_space<smem>>
    %484 = vector.broadcast %483 : f32 to vector<16x16xf32>
    %485 = arith.mulf %484, %479 : vector<16x16xf32>
    %486 = arith.addf %427, %485 : vector<16x16xf32>
    %c24_i32_124 = arith.constant 24 : i32
    %487 = arith.addi %0, %c24_i32_124 : i32
    %c2_i32_125 = arith.constant 2 : i32
    %488 = arith.addi %487, %c2_i32_125 : i32
    %489 = arith.index_cast %488 : i32 to index
    %490 = memref.load %arg4[%489] : memref<192xf32, #tpu.memory_space<smem>>
    %491 = vector.broadcast %490 : f32 to vector<16x16xf32>
    %492 = arith.mulf %491, %479 : vector<16x16xf32>
    %493 = arith.addf %434, %492 : vector<16x16xf32>
    %c48_i32_126 = arith.constant 48 : i32
    %494 = arith.addi %0, %c48_i32_126 : i32
    %c2_i32_127 = arith.constant 2 : i32
    %495 = arith.addi %494, %c2_i32_127 : i32
    %496 = arith.index_cast %495 : i32 to index
    %497 = memref.load %arg4[%496] : memref<192xf32, #tpu.memory_space<smem>>
    %498 = vector.broadcast %497 : f32 to vector<16x16xf32>
    %499 = arith.mulf %498, %479 : vector<16x16xf32>
    %500 = arith.addf %441, %499 : vector<16x16xf32>
    %c72_i32_128 = arith.constant 72 : i32
    %501 = arith.addi %0, %c72_i32_128 : i32
    %c2_i32_129 = arith.constant 2 : i32
    %502 = arith.addi %501, %c2_i32_129 : i32
    %503 = arith.index_cast %502 : i32 to index
    %504 = memref.load %arg4[%503] : memref<192xf32, #tpu.memory_space<smem>>
    %505 = vector.broadcast %504 : f32 to vector<16x16xf32>
    %506 = arith.mulf %505, %479 : vector<16x16xf32>
    %507 = arith.addf %448, %506 : vector<16x16xf32>
    %c96_i32_130 = arith.constant 96 : i32
    %508 = arith.addi %0, %c96_i32_130 : i32
    %c2_i32_131 = arith.constant 2 : i32
    %509 = arith.addi %508, %c2_i32_131 : i32
    %510 = arith.index_cast %509 : i32 to index
    %511 = memref.load %arg4[%510] : memref<192xf32, #tpu.memory_space<smem>>
    %512 = vector.broadcast %511 : f32 to vector<16x16xf32>
    %513 = arith.mulf %512, %479 : vector<16x16xf32>
    %514 = arith.addf %455, %513 : vector<16x16xf32>
    %c120_i32_132 = arith.constant 120 : i32
    %515 = arith.addi %0, %c120_i32_132 : i32
    %c2_i32_133 = arith.constant 2 : i32
    %516 = arith.addi %515, %c2_i32_133 : i32
    %517 = arith.index_cast %516 : i32 to index
    %518 = memref.load %arg4[%517] : memref<192xf32, #tpu.memory_space<smem>>
    %519 = vector.broadcast %518 : f32 to vector<16x16xf32>
    %520 = arith.mulf %519, %479 : vector<16x16xf32>
    %521 = arith.addf %462, %520 : vector<16x16xf32>
    %c144_i32_134 = arith.constant 144 : i32
    %522 = arith.addi %0, %c144_i32_134 : i32
    %c2_i32_135 = arith.constant 2 : i32
    %523 = arith.addi %522, %c2_i32_135 : i32
    %524 = arith.index_cast %523 : i32 to index
    %525 = memref.load %arg4[%524] : memref<192xf32, #tpu.memory_space<smem>>
    %526 = vector.broadcast %525 : f32 to vector<16x16xf32>
    %527 = arith.mulf %526, %479 : vector<16x16xf32>
    %528 = arith.addf %469, %527 : vector<16x16xf32>
    %c168_i32_136 = arith.constant 168 : i32
    %529 = arith.addi %0, %c168_i32_136 : i32
    %c2_i32_137 = arith.constant 2 : i32
    %530 = arith.addi %529, %c2_i32_137 : i32
    %531 = arith.index_cast %530 : i32 to index
    %532 = memref.load %arg4[%531] : memref<192xf32, #tpu.memory_space<smem>>
    %533 = vector.broadcast %532 : f32 to vector<16x16xf32>
    %534 = arith.mulf %533, %479 : vector<16x16xf32>
    %535 = arith.addf %476, %534 : vector<16x16xf32>
    %536 = vector.extract_strided_slice %477 {offsets = [1, 0, 0], sizes = [1, 16, 16], strides = [1, 1, 1]} : vector<4x16x16xf32> to vector<1x16x16xf32>
    %537 = vector.shape_cast %536 : vector<1x16x16xf32> to vector<16x16xf32>
    %c0_i32_138 = arith.constant 0 : i32
    %538 = arith.addi %0, %c0_i32_138 : i32
    %c8_i32 = arith.constant 8 : i32
    %539 = arith.addi %538, %c8_i32 : i32
    %540 = arith.index_cast %539 : i32 to index
    %541 = memref.load %arg4[%540] : memref<192xf32, #tpu.memory_space<smem>>
    %542 = vector.broadcast %541 : f32 to vector<16x16xf32>
    %543 = arith.mulf %542, %537 : vector<16x16xf32>
    %544 = arith.addf %486, %543 : vector<16x16xf32>
    %c24_i32_139 = arith.constant 24 : i32
    %545 = arith.addi %0, %c24_i32_139 : i32
    %c8_i32_140 = arith.constant 8 : i32
    %546 = arith.addi %545, %c8_i32_140 : i32
    %547 = arith.index_cast %546 : i32 to index
    %548 = memref.load %arg4[%547] : memref<192xf32, #tpu.memory_space<smem>>
    %549 = vector.broadcast %548 : f32 to vector<16x16xf32>
    %550 = arith.mulf %549, %537 : vector<16x16xf32>
    %551 = arith.addf %493, %550 : vector<16x16xf32>
    %c48_i32_141 = arith.constant 48 : i32
    %552 = arith.addi %0, %c48_i32_141 : i32
    %c8_i32_142 = arith.constant 8 : i32
    %553 = arith.addi %552, %c8_i32_142 : i32
    %554 = arith.index_cast %553 : i32 to index
    %555 = memref.load %arg4[%554] : memref<192xf32, #tpu.memory_space<smem>>
    %556 = vector.broadcast %555 : f32 to vector<16x16xf32>
    %557 = arith.mulf %556, %537 : vector<16x16xf32>
    %558 = arith.addf %500, %557 : vector<16x16xf32>
    %c72_i32_143 = arith.constant 72 : i32
    %559 = arith.addi %0, %c72_i32_143 : i32
    %c8_i32_144 = arith.constant 8 : i32
    %560 = arith.addi %559, %c8_i32_144 : i32
    %561 = arith.index_cast %560 : i32 to index
    %562 = memref.load %arg4[%561] : memref<192xf32, #tpu.memory_space<smem>>
    %563 = vector.broadcast %562 : f32 to vector<16x16xf32>
    %564 = arith.mulf %563, %537 : vector<16x16xf32>
    %565 = arith.addf %507, %564 : vector<16x16xf32>
    %c96_i32_145 = arith.constant 96 : i32
    %566 = arith.addi %0, %c96_i32_145 : i32
    %c8_i32_146 = arith.constant 8 : i32
    %567 = arith.addi %566, %c8_i32_146 : i32
    %568 = arith.index_cast %567 : i32 to index
    %569 = memref.load %arg4[%568] : memref<192xf32, #tpu.memory_space<smem>>
    %570 = vector.broadcast %569 : f32 to vector<16x16xf32>
    %571 = arith.mulf %570, %537 : vector<16x16xf32>
    %572 = arith.addf %514, %571 : vector<16x16xf32>
    %c120_i32_147 = arith.constant 120 : i32
    %573 = arith.addi %0, %c120_i32_147 : i32
    %c8_i32_148 = arith.constant 8 : i32
    %574 = arith.addi %573, %c8_i32_148 : i32
    %575 = arith.index_cast %574 : i32 to index
    %576 = memref.load %arg4[%575] : memref<192xf32, #tpu.memory_space<smem>>
    %577 = vector.broadcast %576 : f32 to vector<16x16xf32>
    %578 = arith.mulf %577, %537 : vector<16x16xf32>
    %579 = arith.addf %521, %578 : vector<16x16xf32>
    %c144_i32_149 = arith.constant 144 : i32
    %580 = arith.addi %0, %c144_i32_149 : i32
    %c8_i32_150 = arith.constant 8 : i32
    %581 = arith.addi %580, %c8_i32_150 : i32
    %582 = arith.index_cast %581 : i32 to index
    %583 = memref.load %arg4[%582] : memref<192xf32, #tpu.memory_space<smem>>
    %584 = vector.broadcast %583 : f32 to vector<16x16xf32>
    %585 = arith.mulf %584, %537 : vector<16x16xf32>
    %586 = arith.addf %528, %585 : vector<16x16xf32>
    %c168_i32_151 = arith.constant 168 : i32
    %587 = arith.addi %0, %c168_i32_151 : i32
    %c8_i32_152 = arith.constant 8 : i32
    %588 = arith.addi %587, %c8_i32_152 : i32
    %589 = arith.index_cast %588 : i32 to index
    %590 = memref.load %arg4[%589] : memref<192xf32, #tpu.memory_space<smem>>
    %591 = vector.broadcast %590 : f32 to vector<16x16xf32>
    %592 = arith.mulf %591, %537 : vector<16x16xf32>
    %593 = arith.addf %535, %592 : vector<16x16xf32>
    %594 = vector.extract_strided_slice %477 {offsets = [2, 0, 0], sizes = [1, 16, 16], strides = [1, 1, 1]} : vector<4x16x16xf32> to vector<1x16x16xf32>
    %595 = vector.shape_cast %594 : vector<1x16x16xf32> to vector<16x16xf32>
    %c0_i32_153 = arith.constant 0 : i32
    %596 = arith.addi %0, %c0_i32_153 : i32
    %c14_i32 = arith.constant 14 : i32
    %597 = arith.addi %596, %c14_i32 : i32
    %598 = arith.index_cast %597 : i32 to index
    %599 = memref.load %arg4[%598] : memref<192xf32, #tpu.memory_space<smem>>
    %600 = vector.broadcast %599 : f32 to vector<16x16xf32>
    %601 = arith.mulf %600, %595 : vector<16x16xf32>
    %602 = arith.addf %544, %601 : vector<16x16xf32>
    %c24_i32_154 = arith.constant 24 : i32
    %603 = arith.addi %0, %c24_i32_154 : i32
    %c14_i32_155 = arith.constant 14 : i32
    %604 = arith.addi %603, %c14_i32_155 : i32
    %605 = arith.index_cast %604 : i32 to index
    %606 = memref.load %arg4[%605] : memref<192xf32, #tpu.memory_space<smem>>
    %607 = vector.broadcast %606 : f32 to vector<16x16xf32>
    %608 = arith.mulf %607, %595 : vector<16x16xf32>
    %609 = arith.addf %551, %608 : vector<16x16xf32>
    %c48_i32_156 = arith.constant 48 : i32
    %610 = arith.addi %0, %c48_i32_156 : i32
    %c14_i32_157 = arith.constant 14 : i32
    %611 = arith.addi %610, %c14_i32_157 : i32
    %612 = arith.index_cast %611 : i32 to index
    %613 = memref.load %arg4[%612] : memref<192xf32, #tpu.memory_space<smem>>
    %614 = vector.broadcast %613 : f32 to vector<16x16xf32>
    %615 = arith.mulf %614, %595 : vector<16x16xf32>
    %616 = arith.addf %558, %615 : vector<16x16xf32>
    %c72_i32_158 = arith.constant 72 : i32
    %617 = arith.addi %0, %c72_i32_158 : i32
    %c14_i32_159 = arith.constant 14 : i32
    %618 = arith.addi %617, %c14_i32_159 : i32
    %619 = arith.index_cast %618 : i32 to index
    %620 = memref.load %arg4[%619] : memref<192xf32, #tpu.memory_space<smem>>
    %621 = vector.broadcast %620 : f32 to vector<16x16xf32>
    %622 = arith.mulf %621, %595 : vector<16x16xf32>
    %623 = arith.addf %565, %622 : vector<16x16xf32>
    %c96_i32_160 = arith.constant 96 : i32
    %624 = arith.addi %0, %c96_i32_160 : i32
    %c14_i32_161 = arith.constant 14 : i32
    %625 = arith.addi %624, %c14_i32_161 : i32
    %626 = arith.index_cast %625 : i32 to index
    %627 = memref.load %arg4[%626] : memref<192xf32, #tpu.memory_space<smem>>
    %628 = vector.broadcast %627 : f32 to vector<16x16xf32>
    %629 = arith.mulf %628, %595 : vector<16x16xf32>
    %630 = arith.addf %572, %629 : vector<16x16xf32>
    %c120_i32_162 = arith.constant 120 : i32
    %631 = arith.addi %0, %c120_i32_162 : i32
    %c14_i32_163 = arith.constant 14 : i32
    %632 = arith.addi %631, %c14_i32_163 : i32
    %633 = arith.index_cast %632 : i32 to index
    %634 = memref.load %arg4[%633] : memref<192xf32, #tpu.memory_space<smem>>
    %635 = vector.broadcast %634 : f32 to vector<16x16xf32>
    %636 = arith.mulf %635, %595 : vector<16x16xf32>
    %637 = arith.addf %579, %636 : vector<16x16xf32>
    %c144_i32_164 = arith.constant 144 : i32
    %638 = arith.addi %0, %c144_i32_164 : i32
    %c14_i32_165 = arith.constant 14 : i32
    %639 = arith.addi %638, %c14_i32_165 : i32
    %640 = arith.index_cast %639 : i32 to index
    %641 = memref.load %arg4[%640] : memref<192xf32, #tpu.memory_space<smem>>
    %642 = vector.broadcast %641 : f32 to vector<16x16xf32>
    %643 = arith.mulf %642, %595 : vector<16x16xf32>
    %644 = arith.addf %586, %643 : vector<16x16xf32>
    %c168_i32_166 = arith.constant 168 : i32
    %645 = arith.addi %0, %c168_i32_166 : i32
    %c14_i32_167 = arith.constant 14 : i32
    %646 = arith.addi %645, %c14_i32_167 : i32
    %647 = arith.index_cast %646 : i32 to index
    %648 = memref.load %arg4[%647] : memref<192xf32, #tpu.memory_space<smem>>
    %649 = vector.broadcast %648 : f32 to vector<16x16xf32>
    %650 = arith.mulf %649, %595 : vector<16x16xf32>
    %651 = arith.addf %593, %650 : vector<16x16xf32>
    %652 = vector.extract_strided_slice %477 {offsets = [3, 0, 0], sizes = [1, 16, 16], strides = [1, 1, 1]} : vector<4x16x16xf32> to vector<1x16x16xf32>
    %653 = vector.shape_cast %652 : vector<1x16x16xf32> to vector<16x16xf32>
    %c0_i32_168 = arith.constant 0 : i32
    %654 = arith.addi %0, %c0_i32_168 : i32
    %c20_i32 = arith.constant 20 : i32
    %655 = arith.addi %654, %c20_i32 : i32
    %656 = arith.index_cast %655 : i32 to index
    %657 = memref.load %arg4[%656] : memref<192xf32, #tpu.memory_space<smem>>
    %658 = vector.broadcast %657 : f32 to vector<16x16xf32>
    %659 = arith.mulf %658, %653 : vector<16x16xf32>
    %660 = arith.addf %602, %659 : vector<16x16xf32>
    %c24_i32_169 = arith.constant 24 : i32
    %661 = arith.addi %0, %c24_i32_169 : i32
    %c20_i32_170 = arith.constant 20 : i32
    %662 = arith.addi %661, %c20_i32_170 : i32
    %663 = arith.index_cast %662 : i32 to index
    %664 = memref.load %arg4[%663] : memref<192xf32, #tpu.memory_space<smem>>
    %665 = vector.broadcast %664 : f32 to vector<16x16xf32>
    %666 = arith.mulf %665, %653 : vector<16x16xf32>
    %667 = arith.addf %609, %666 : vector<16x16xf32>
    %c48_i32_171 = arith.constant 48 : i32
    %668 = arith.addi %0, %c48_i32_171 : i32
    %c20_i32_172 = arith.constant 20 : i32
    %669 = arith.addi %668, %c20_i32_172 : i32
    %670 = arith.index_cast %669 : i32 to index
    %671 = memref.load %arg4[%670] : memref<192xf32, #tpu.memory_space<smem>>
    %672 = vector.broadcast %671 : f32 to vector<16x16xf32>
    %673 = arith.mulf %672, %653 : vector<16x16xf32>
    %674 = arith.addf %616, %673 : vector<16x16xf32>
    %c72_i32_173 = arith.constant 72 : i32
    %675 = arith.addi %0, %c72_i32_173 : i32
    %c20_i32_174 = arith.constant 20 : i32
    %676 = arith.addi %675, %c20_i32_174 : i32
    %677 = arith.index_cast %676 : i32 to index
    %678 = memref.load %arg4[%677] : memref<192xf32, #tpu.memory_space<smem>>
    %679 = vector.broadcast %678 : f32 to vector<16x16xf32>
    %680 = arith.mulf %679, %653 : vector<16x16xf32>
    %681 = arith.addf %623, %680 : vector<16x16xf32>
    %c96_i32_175 = arith.constant 96 : i32
    %682 = arith.addi %0, %c96_i32_175 : i32
    %c20_i32_176 = arith.constant 20 : i32
    %683 = arith.addi %682, %c20_i32_176 : i32
    %684 = arith.index_cast %683 : i32 to index
    %685 = memref.load %arg4[%684] : memref<192xf32, #tpu.memory_space<smem>>
    %686 = vector.broadcast %685 : f32 to vector<16x16xf32>
    %687 = arith.mulf %686, %653 : vector<16x16xf32>
    %688 = arith.addf %630, %687 : vector<16x16xf32>
    %c120_i32_177 = arith.constant 120 : i32
    %689 = arith.addi %0, %c120_i32_177 : i32
    %c20_i32_178 = arith.constant 20 : i32
    %690 = arith.addi %689, %c20_i32_178 : i32
    %691 = arith.index_cast %690 : i32 to index
    %692 = memref.load %arg4[%691] : memref<192xf32, #tpu.memory_space<smem>>
    %693 = vector.broadcast %692 : f32 to vector<16x16xf32>
    %694 = arith.mulf %693, %653 : vector<16x16xf32>
    %695 = arith.addf %637, %694 : vector<16x16xf32>
    %c144_i32_179 = arith.constant 144 : i32
    %696 = arith.addi %0, %c144_i32_179 : i32
    %c20_i32_180 = arith.constant 20 : i32
    %697 = arith.addi %696, %c20_i32_180 : i32
    %698 = arith.index_cast %697 : i32 to index
    %699 = memref.load %arg4[%698] : memref<192xf32, #tpu.memory_space<smem>>
    %700 = vector.broadcast %699 : f32 to vector<16x16xf32>
    %701 = arith.mulf %700, %653 : vector<16x16xf32>
    %702 = arith.addf %644, %701 : vector<16x16xf32>
    %c168_i32_181 = arith.constant 168 : i32
    %703 = arith.addi %0, %c168_i32_181 : i32
    %c20_i32_182 = arith.constant 20 : i32
    %704 = arith.addi %703, %c20_i32_182 : i32
    %705 = arith.index_cast %704 : i32 to index
    %706 = memref.load %arg4[%705] : memref<192xf32, #tpu.memory_space<smem>>
    %707 = vector.broadcast %706 : f32 to vector<16x16xf32>
    %708 = arith.mulf %707, %653 : vector<16x16xf32>
    %709 = arith.addf %651, %708 : vector<16x16xf32>
    %c0_183 = arith.constant 0 : index
    %c0_184 = arith.constant 0 : index
    %c1 = arith.constant 1 : index
    %c0_185 = arith.constant 0 : index
    %710 = vector.load %arg3[%c0_183, %c0_184, %c1, %c0_185] : memref<1x4x17x18xf32, #tpu.memory_space<vmem>>, vector<1x4x16x18xf32>
    %711 = vector.shape_cast %710 : vector<1x4x16x18xf32> to vector<4x16x18xf32>
    %712 = vector.extract_strided_slice %711 {offsets = [0, 0, 0], sizes = [4, 16, 16], strides = [1, 1, 1]} : vector<4x16x18xf32> to vector<4x16x16xf32>
    %713 = vector.extract_strided_slice %712 {offsets = [0, 0, 0], sizes = [1, 16, 16], strides = [1, 1, 1]} : vector<4x16x16xf32> to vector<1x16x16xf32>
    %714 = vector.shape_cast %713 : vector<1x16x16xf32> to vector<16x16xf32>
    %c0_i32_186 = arith.constant 0 : i32
    %715 = arith.addi %0, %c0_i32_186 : i32
    %c3_i32 = arith.constant 3 : i32
    %716 = arith.addi %715, %c3_i32 : i32
    %717 = arith.index_cast %716 : i32 to index
    %718 = memref.load %arg4[%717] : memref<192xf32, #tpu.memory_space<smem>>
    %719 = vector.broadcast %718 : f32 to vector<16x16xf32>
    %720 = arith.mulf %719, %714 : vector<16x16xf32>
    %721 = arith.addf %660, %720 : vector<16x16xf32>
    %c24_i32_187 = arith.constant 24 : i32
    %722 = arith.addi %0, %c24_i32_187 : i32
    %c3_i32_188 = arith.constant 3 : i32
    %723 = arith.addi %722, %c3_i32_188 : i32
    %724 = arith.index_cast %723 : i32 to index
    %725 = memref.load %arg4[%724] : memref<192xf32, #tpu.memory_space<smem>>
    %726 = vector.broadcast %725 : f32 to vector<16x16xf32>
    %727 = arith.mulf %726, %714 : vector<16x16xf32>
    %728 = arith.addf %667, %727 : vector<16x16xf32>
    %c48_i32_189 = arith.constant 48 : i32
    %729 = arith.addi %0, %c48_i32_189 : i32
    %c3_i32_190 = arith.constant 3 : i32
    %730 = arith.addi %729, %c3_i32_190 : i32
    %731 = arith.index_cast %730 : i32 to index
    %732 = memref.load %arg4[%731] : memref<192xf32, #tpu.memory_space<smem>>
    %733 = vector.broadcast %732 : f32 to vector<16x16xf32>
    %734 = arith.mulf %733, %714 : vector<16x16xf32>
    %735 = arith.addf %674, %734 : vector<16x16xf32>
    %c72_i32_191 = arith.constant 72 : i32
    %736 = arith.addi %0, %c72_i32_191 : i32
    %c3_i32_192 = arith.constant 3 : i32
    %737 = arith.addi %736, %c3_i32_192 : i32
    %738 = arith.index_cast %737 : i32 to index
    %739 = memref.load %arg4[%738] : memref<192xf32, #tpu.memory_space<smem>>
    %740 = vector.broadcast %739 : f32 to vector<16x16xf32>
    %741 = arith.mulf %740, %714 : vector<16x16xf32>
    %742 = arith.addf %681, %741 : vector<16x16xf32>
    %c96_i32_193 = arith.constant 96 : i32
    %743 = arith.addi %0, %c96_i32_193 : i32
    %c3_i32_194 = arith.constant 3 : i32
    %744 = arith.addi %743, %c3_i32_194 : i32
    %745 = arith.index_cast %744 : i32 to index
    %746 = memref.load %arg4[%745] : memref<192xf32, #tpu.memory_space<smem>>
    %747 = vector.broadcast %746 : f32 to vector<16x16xf32>
    %748 = arith.mulf %747, %714 : vector<16x16xf32>
    %749 = arith.addf %688, %748 : vector<16x16xf32>
    %c120_i32_195 = arith.constant 120 : i32
    %750 = arith.addi %0, %c120_i32_195 : i32
    %c3_i32_196 = arith.constant 3 : i32
    %751 = arith.addi %750, %c3_i32_196 : i32
    %752 = arith.index_cast %751 : i32 to index
    %753 = memref.load %arg4[%752] : memref<192xf32, #tpu.memory_space<smem>>
    %754 = vector.broadcast %753 : f32 to vector<16x16xf32>
    %755 = arith.mulf %754, %714 : vector<16x16xf32>
    %756 = arith.addf %695, %755 : vector<16x16xf32>
    %c144_i32_197 = arith.constant 144 : i32
    %757 = arith.addi %0, %c144_i32_197 : i32
    %c3_i32_198 = arith.constant 3 : i32
    %758 = arith.addi %757, %c3_i32_198 : i32
    %759 = arith.index_cast %758 : i32 to index
    %760 = memref.load %arg4[%759] : memref<192xf32, #tpu.memory_space<smem>>
    %761 = vector.broadcast %760 : f32 to vector<16x16xf32>
    %762 = arith.mulf %761, %714 : vector<16x16xf32>
    %763 = arith.addf %702, %762 : vector<16x16xf32>
    %c168_i32_199 = arith.constant 168 : i32
    %764 = arith.addi %0, %c168_i32_199 : i32
    %c3_i32_200 = arith.constant 3 : i32
    %765 = arith.addi %764, %c3_i32_200 : i32
    %766 = arith.index_cast %765 : i32 to index
    %767 = memref.load %arg4[%766] : memref<192xf32, #tpu.memory_space<smem>>
    %768 = vector.broadcast %767 : f32 to vector<16x16xf32>
    %769 = arith.mulf %768, %714 : vector<16x16xf32>
    %770 = arith.addf %709, %769 : vector<16x16xf32>
    %771 = vector.extract_strided_slice %712 {offsets = [1, 0, 0], sizes = [1, 16, 16], strides = [1, 1, 1]} : vector<4x16x16xf32> to vector<1x16x16xf32>
    %772 = vector.shape_cast %771 : vector<1x16x16xf32> to vector<16x16xf32>
    %c0_i32_201 = arith.constant 0 : i32
    %773 = arith.addi %0, %c0_i32_201 : i32
    %c9_i32 = arith.constant 9 : i32
    %774 = arith.addi %773, %c9_i32 : i32
    %775 = arith.index_cast %774 : i32 to index
    %776 = memref.load %arg4[%775] : memref<192xf32, #tpu.memory_space<smem>>
    %777 = vector.broadcast %776 : f32 to vector<16x16xf32>
    %778 = arith.mulf %777, %772 : vector<16x16xf32>
    %779 = arith.addf %721, %778 : vector<16x16xf32>
    %c24_i32_202 = arith.constant 24 : i32
    %780 = arith.addi %0, %c24_i32_202 : i32
    %c9_i32_203 = arith.constant 9 : i32
    %781 = arith.addi %780, %c9_i32_203 : i32
    %782 = arith.index_cast %781 : i32 to index
    %783 = memref.load %arg4[%782] : memref<192xf32, #tpu.memory_space<smem>>
    %784 = vector.broadcast %783 : f32 to vector<16x16xf32>
    %785 = arith.mulf %784, %772 : vector<16x16xf32>
    %786 = arith.addf %728, %785 : vector<16x16xf32>
    %c48_i32_204 = arith.constant 48 : i32
    %787 = arith.addi %0, %c48_i32_204 : i32
    %c9_i32_205 = arith.constant 9 : i32
    %788 = arith.addi %787, %c9_i32_205 : i32
    %789 = arith.index_cast %788 : i32 to index
    %790 = memref.load %arg4[%789] : memref<192xf32, #tpu.memory_space<smem>>
    %791 = vector.broadcast %790 : f32 to vector<16x16xf32>
    %792 = arith.mulf %791, %772 : vector<16x16xf32>
    %793 = arith.addf %735, %792 : vector<16x16xf32>
    %c72_i32_206 = arith.constant 72 : i32
    %794 = arith.addi %0, %c72_i32_206 : i32
    %c9_i32_207 = arith.constant 9 : i32
    %795 = arith.addi %794, %c9_i32_207 : i32
    %796 = arith.index_cast %795 : i32 to index
    %797 = memref.load %arg4[%796] : memref<192xf32, #tpu.memory_space<smem>>
    %798 = vector.broadcast %797 : f32 to vector<16x16xf32>
    %799 = arith.mulf %798, %772 : vector<16x16xf32>
    %800 = arith.addf %742, %799 : vector<16x16xf32>
    %c96_i32_208 = arith.constant 96 : i32
    %801 = arith.addi %0, %c96_i32_208 : i32
    %c9_i32_209 = arith.constant 9 : i32
    %802 = arith.addi %801, %c9_i32_209 : i32
    %803 = arith.index_cast %802 : i32 to index
    %804 = memref.load %arg4[%803] : memref<192xf32, #tpu.memory_space<smem>>
    %805 = vector.broadcast %804 : f32 to vector<16x16xf32>
    %806 = arith.mulf %805, %772 : vector<16x16xf32>
    %807 = arith.addf %749, %806 : vector<16x16xf32>
    %c120_i32_210 = arith.constant 120 : i32
    %808 = arith.addi %0, %c120_i32_210 : i32
    %c9_i32_211 = arith.constant 9 : i32
    %809 = arith.addi %808, %c9_i32_211 : i32
    %810 = arith.index_cast %809 : i32 to index
    %811 = memref.load %arg4[%810] : memref<192xf32, #tpu.memory_space<smem>>
    %812 = vector.broadcast %811 : f32 to vector<16x16xf32>
    %813 = arith.mulf %812, %772 : vector<16x16xf32>
    %814 = arith.addf %756, %813 : vector<16x16xf32>
    %c144_i32_212 = arith.constant 144 : i32
    %815 = arith.addi %0, %c144_i32_212 : i32
    %c9_i32_213 = arith.constant 9 : i32
    %816 = arith.addi %815, %c9_i32_213 : i32
    %817 = arith.index_cast %816 : i32 to index
    %818 = memref.load %arg4[%817] : memref<192xf32, #tpu.memory_space<smem>>
    %819 = vector.broadcast %818 : f32 to vector<16x16xf32>
    %820 = arith.mulf %819, %772 : vector<16x16xf32>
    %821 = arith.addf %763, %820 : vector<16x16xf32>
    %c168_i32_214 = arith.constant 168 : i32
    %822 = arith.addi %0, %c168_i32_214 : i32
    %c9_i32_215 = arith.constant 9 : i32
    %823 = arith.addi %822, %c9_i32_215 : i32
    %824 = arith.index_cast %823 : i32 to index
    %825 = memref.load %arg4[%824] : memref<192xf32, #tpu.memory_space<smem>>
    %826 = vector.broadcast %825 : f32 to vector<16x16xf32>
    %827 = arith.mulf %826, %772 : vector<16x16xf32>
    %828 = arith.addf %770, %827 : vector<16x16xf32>
    %829 = vector.extract_strided_slice %712 {offsets = [2, 0, 0], sizes = [1, 16, 16], strides = [1, 1, 1]} : vector<4x16x16xf32> to vector<1x16x16xf32>
    %830 = vector.shape_cast %829 : vector<1x16x16xf32> to vector<16x16xf32>
    %c0_i32_216 = arith.constant 0 : i32
    %831 = arith.addi %0, %c0_i32_216 : i32
    %c15_i32 = arith.constant 15 : i32
    %832 = arith.addi %831, %c15_i32 : i32
    %833 = arith.index_cast %832 : i32 to index
    %834 = memref.load %arg4[%833] : memref<192xf32, #tpu.memory_space<smem>>
    %835 = vector.broadcast %834 : f32 to vector<16x16xf32>
    %836 = arith.mulf %835, %830 : vector<16x16xf32>
    %837 = arith.addf %779, %836 : vector<16x16xf32>
    %c24_i32_217 = arith.constant 24 : i32
    %838 = arith.addi %0, %c24_i32_217 : i32
    %c15_i32_218 = arith.constant 15 : i32
    %839 = arith.addi %838, %c15_i32_218 : i32
    %840 = arith.index_cast %839 : i32 to index
    %841 = memref.load %arg4[%840] : memref<192xf32, #tpu.memory_space<smem>>
    %842 = vector.broadcast %841 : f32 to vector<16x16xf32>
    %843 = arith.mulf %842, %830 : vector<16x16xf32>
    %844 = arith.addf %786, %843 : vector<16x16xf32>
    %c48_i32_219 = arith.constant 48 : i32
    %845 = arith.addi %0, %c48_i32_219 : i32
    %c15_i32_220 = arith.constant 15 : i32
    %846 = arith.addi %845, %c15_i32_220 : i32
    %847 = arith.index_cast %846 : i32 to index
    %848 = memref.load %arg4[%847] : memref<192xf32, #tpu.memory_space<smem>>
    %849 = vector.broadcast %848 : f32 to vector<16x16xf32>
    %850 = arith.mulf %849, %830 : vector<16x16xf32>
    %851 = arith.addf %793, %850 : vector<16x16xf32>
    %c72_i32_221 = arith.constant 72 : i32
    %852 = arith.addi %0, %c72_i32_221 : i32
    %c15_i32_222 = arith.constant 15 : i32
    %853 = arith.addi %852, %c15_i32_222 : i32
    %854 = arith.index_cast %853 : i32 to index
    %855 = memref.load %arg4[%854] : memref<192xf32, #tpu.memory_space<smem>>
    %856 = vector.broadcast %855 : f32 to vector<16x16xf32>
    %857 = arith.mulf %856, %830 : vector<16x16xf32>
    %858 = arith.addf %800, %857 : vector<16x16xf32>
    %c96_i32_223 = arith.constant 96 : i32
    %859 = arith.addi %0, %c96_i32_223 : i32
    %c15_i32_224 = arith.constant 15 : i32
    %860 = arith.addi %859, %c15_i32_224 : i32
    %861 = arith.index_cast %860 : i32 to index
    %862 = memref.load %arg4[%861] : memref<192xf32, #tpu.memory_space<smem>>
    %863 = vector.broadcast %862 : f32 to vector<16x16xf32>
    %864 = arith.mulf %863, %830 : vector<16x16xf32>
    %865 = arith.addf %807, %864 : vector<16x16xf32>
    %c120_i32_225 = arith.constant 120 : i32
    %866 = arith.addi %0, %c120_i32_225 : i32
    %c15_i32_226 = arith.constant 15 : i32
    %867 = arith.addi %866, %c15_i32_226 : i32
    %868 = arith.index_cast %867 : i32 to index
    %869 = memref.load %arg4[%868] : memref<192xf32, #tpu.memory_space<smem>>
    %870 = vector.broadcast %869 : f32 to vector<16x16xf32>
    %871 = arith.mulf %870, %830 : vector<16x16xf32>
    %872 = arith.addf %814, %871 : vector<16x16xf32>
    %c144_i32_227 = arith.constant 144 : i32
    %873 = arith.addi %0, %c144_i32_227 : i32
    %c15_i32_228 = arith.constant 15 : i32
    %874 = arith.addi %873, %c15_i32_228 : i32
    %875 = arith.index_cast %874 : i32 to index
    %876 = memref.load %arg4[%875] : memref<192xf32, #tpu.memory_space<smem>>
    %877 = vector.broadcast %876 : f32 to vector<16x16xf32>
    %878 = arith.mulf %877, %830 : vector<16x16xf32>
    %879 = arith.addf %821, %878 : vector<16x16xf32>
    %c168_i32_229 = arith.constant 168 : i32
    %880 = arith.addi %0, %c168_i32_229 : i32
    %c15_i32_230 = arith.constant 15 : i32
    %881 = arith.addi %880, %c15_i32_230 : i32
    %882 = arith.index_cast %881 : i32 to index
    %883 = memref.load %arg4[%882] : memref<192xf32, #tpu.memory_space<smem>>
    %884 = vector.broadcast %883 : f32 to vector<16x16xf32>
    %885 = arith.mulf %884, %830 : vector<16x16xf32>
    %886 = arith.addf %828, %885 : vector<16x16xf32>
    %887 = vector.extract_strided_slice %712 {offsets = [3, 0, 0], sizes = [1, 16, 16], strides = [1, 1, 1]} : vector<4x16x16xf32> to vector<1x16x16xf32>
    %888 = vector.shape_cast %887 : vector<1x16x16xf32> to vector<16x16xf32>
    %c0_i32_231 = arith.constant 0 : i32
    %889 = arith.addi %0, %c0_i32_231 : i32
    %c21_i32 = arith.constant 21 : i32
    %890 = arith.addi %889, %c21_i32 : i32
    %891 = arith.index_cast %890 : i32 to index
    %892 = memref.load %arg4[%891] : memref<192xf32, #tpu.memory_space<smem>>
    %893 = vector.broadcast %892 : f32 to vector<16x16xf32>
    %894 = arith.mulf %893, %888 : vector<16x16xf32>
    %895 = arith.addf %837, %894 : vector<16x16xf32>
    %c24_i32_232 = arith.constant 24 : i32
    %896 = arith.addi %0, %c24_i32_232 : i32
    %c21_i32_233 = arith.constant 21 : i32
    %897 = arith.addi %896, %c21_i32_233 : i32
    %898 = arith.index_cast %897 : i32 to index
    %899 = memref.load %arg4[%898] : memref<192xf32, #tpu.memory_space<smem>>
    %900 = vector.broadcast %899 : f32 to vector<16x16xf32>
    %901 = arith.mulf %900, %888 : vector<16x16xf32>
    %902 = arith.addf %844, %901 : vector<16x16xf32>
    %c48_i32_234 = arith.constant 48 : i32
    %903 = arith.addi %0, %c48_i32_234 : i32
    %c21_i32_235 = arith.constant 21 : i32
    %904 = arith.addi %903, %c21_i32_235 : i32
    %905 = arith.index_cast %904 : i32 to index
    %906 = memref.load %arg4[%905] : memref<192xf32, #tpu.memory_space<smem>>
    %907 = vector.broadcast %906 : f32 to vector<16x16xf32>
    %908 = arith.mulf %907, %888 : vector<16x16xf32>
    %909 = arith.addf %851, %908 : vector<16x16xf32>
    %c72_i32_236 = arith.constant 72 : i32
    %910 = arith.addi %0, %c72_i32_236 : i32
    %c21_i32_237 = arith.constant 21 : i32
    %911 = arith.addi %910, %c21_i32_237 : i32
    %912 = arith.index_cast %911 : i32 to index
    %913 = memref.load %arg4[%912] : memref<192xf32, #tpu.memory_space<smem>>
    %914 = vector.broadcast %913 : f32 to vector<16x16xf32>
    %915 = arith.mulf %914, %888 : vector<16x16xf32>
    %916 = arith.addf %858, %915 : vector<16x16xf32>
    %c96_i32_238 = arith.constant 96 : i32
    %917 = arith.addi %0, %c96_i32_238 : i32
    %c21_i32_239 = arith.constant 21 : i32
    %918 = arith.addi %917, %c21_i32_239 : i32
    %919 = arith.index_cast %918 : i32 to index
    %920 = memref.load %arg4[%919] : memref<192xf32, #tpu.memory_space<smem>>
    %921 = vector.broadcast %920 : f32 to vector<16x16xf32>
    %922 = arith.mulf %921, %888 : vector<16x16xf32>
    %923 = arith.addf %865, %922 : vector<16x16xf32>
    %c120_i32_240 = arith.constant 120 : i32
    %924 = arith.addi %0, %c120_i32_240 : i32
    %c21_i32_241 = arith.constant 21 : i32
    %925 = arith.addi %924, %c21_i32_241 : i32
    %926 = arith.index_cast %925 : i32 to index
    %927 = memref.load %arg4[%926] : memref<192xf32, #tpu.memory_space<smem>>
    %928 = vector.broadcast %927 : f32 to vector<16x16xf32>
    %929 = arith.mulf %928, %888 : vector<16x16xf32>
    %930 = arith.addf %872, %929 : vector<16x16xf32>
    %c144_i32_242 = arith.constant 144 : i32
    %931 = arith.addi %0, %c144_i32_242 : i32
    %c21_i32_243 = arith.constant 21 : i32
    %932 = arith.addi %931, %c21_i32_243 : i32
    %933 = arith.index_cast %932 : i32 to index
    %934 = memref.load %arg4[%933] : memref<192xf32, #tpu.memory_space<smem>>
    %935 = vector.broadcast %934 : f32 to vector<16x16xf32>
    %936 = arith.mulf %935, %888 : vector<16x16xf32>
    %937 = arith.addf %879, %936 : vector<16x16xf32>
    %c168_i32_244 = arith.constant 168 : i32
    %938 = arith.addi %0, %c168_i32_244 : i32
    %c21_i32_245 = arith.constant 21 : i32
    %939 = arith.addi %938, %c21_i32_245 : i32
    %940 = arith.index_cast %939 : i32 to index
    %941 = memref.load %arg4[%940] : memref<192xf32, #tpu.memory_space<smem>>
    %942 = vector.broadcast %941 : f32 to vector<16x16xf32>
    %943 = arith.mulf %942, %888 : vector<16x16xf32>
    %944 = arith.addf %886, %943 : vector<16x16xf32>
    %945 = vector.extract_strided_slice %711 {offsets = [0, 0, 1], sizes = [4, 16, 16], strides = [1, 1, 1]} : vector<4x16x18xf32> to vector<4x16x16xf32>
    %946 = vector.extract_strided_slice %945 {offsets = [0, 0, 0], sizes = [1, 16, 16], strides = [1, 1, 1]} : vector<4x16x16xf32> to vector<1x16x16xf32>
    %947 = vector.shape_cast %946 : vector<1x16x16xf32> to vector<16x16xf32>
    %c0_i32_246 = arith.constant 0 : i32
    %948 = arith.addi %0, %c0_i32_246 : i32
    %c4_i32 = arith.constant 4 : i32
    %949 = arith.addi %948, %c4_i32 : i32
    %950 = arith.index_cast %949 : i32 to index
    %951 = memref.load %arg4[%950] : memref<192xf32, #tpu.memory_space<smem>>
    %952 = vector.broadcast %951 : f32 to vector<16x16xf32>
    %953 = arith.mulf %952, %947 : vector<16x16xf32>
    %954 = arith.addf %895, %953 : vector<16x16xf32>
    %c24_i32_247 = arith.constant 24 : i32
    %955 = arith.addi %0, %c24_i32_247 : i32
    %c4_i32_248 = arith.constant 4 : i32
    %956 = arith.addi %955, %c4_i32_248 : i32
    %957 = arith.index_cast %956 : i32 to index
    %958 = memref.load %arg4[%957] : memref<192xf32, #tpu.memory_space<smem>>
    %959 = vector.broadcast %958 : f32 to vector<16x16xf32>
    %960 = arith.mulf %959, %947 : vector<16x16xf32>
    %961 = arith.addf %902, %960 : vector<16x16xf32>
    %c48_i32_249 = arith.constant 48 : i32
    %962 = arith.addi %0, %c48_i32_249 : i32
    %c4_i32_250 = arith.constant 4 : i32
    %963 = arith.addi %962, %c4_i32_250 : i32
    %964 = arith.index_cast %963 : i32 to index
    %965 = memref.load %arg4[%964] : memref<192xf32, #tpu.memory_space<smem>>
    %966 = vector.broadcast %965 : f32 to vector<16x16xf32>
    %967 = arith.mulf %966, %947 : vector<16x16xf32>
    %968 = arith.addf %909, %967 : vector<16x16xf32>
    %c72_i32_251 = arith.constant 72 : i32
    %969 = arith.addi %0, %c72_i32_251 : i32
    %c4_i32_252 = arith.constant 4 : i32
    %970 = arith.addi %969, %c4_i32_252 : i32
    %971 = arith.index_cast %970 : i32 to index
    %972 = memref.load %arg4[%971] : memref<192xf32, #tpu.memory_space<smem>>
    %973 = vector.broadcast %972 : f32 to vector<16x16xf32>
    %974 = arith.mulf %973, %947 : vector<16x16xf32>
    %975 = arith.addf %916, %974 : vector<16x16xf32>
    %c96_i32_253 = arith.constant 96 : i32
    %976 = arith.addi %0, %c96_i32_253 : i32
    %c4_i32_254 = arith.constant 4 : i32
    %977 = arith.addi %976, %c4_i32_254 : i32
    %978 = arith.index_cast %977 : i32 to index
    %979 = memref.load %arg4[%978] : memref<192xf32, #tpu.memory_space<smem>>
    %980 = vector.broadcast %979 : f32 to vector<16x16xf32>
    %981 = arith.mulf %980, %947 : vector<16x16xf32>
    %982 = arith.addf %923, %981 : vector<16x16xf32>
    %c120_i32_255 = arith.constant 120 : i32
    %983 = arith.addi %0, %c120_i32_255 : i32
    %c4_i32_256 = arith.constant 4 : i32
    %984 = arith.addi %983, %c4_i32_256 : i32
    %985 = arith.index_cast %984 : i32 to index
    %986 = memref.load %arg4[%985] : memref<192xf32, #tpu.memory_space<smem>>
    %987 = vector.broadcast %986 : f32 to vector<16x16xf32>
    %988 = arith.mulf %987, %947 : vector<16x16xf32>
    %989 = arith.addf %930, %988 : vector<16x16xf32>
    %c144_i32_257 = arith.constant 144 : i32
    %990 = arith.addi %0, %c144_i32_257 : i32
    %c4_i32_258 = arith.constant 4 : i32
    %991 = arith.addi %990, %c4_i32_258 : i32
    %992 = arith.index_cast %991 : i32 to index
    %993 = memref.load %arg4[%992] : memref<192xf32, #tpu.memory_space<smem>>
    %994 = vector.broadcast %993 : f32 to vector<16x16xf32>
    %995 = arith.mulf %994, %947 : vector<16x16xf32>
    %996 = arith.addf %937, %995 : vector<16x16xf32>
    %c168_i32_259 = arith.constant 168 : i32
    %997 = arith.addi %0, %c168_i32_259 : i32
    %c4_i32_260 = arith.constant 4 : i32
    %998 = arith.addi %997, %c4_i32_260 : i32
    %999 = arith.index_cast %998 : i32 to index
    %1000 = memref.load %arg4[%999] : memref<192xf32, #tpu.memory_space<smem>>
    %1001 = vector.broadcast %1000 : f32 to vector<16x16xf32>
    %1002 = arith.mulf %1001, %947 : vector<16x16xf32>
    %1003 = arith.addf %944, %1002 : vector<16x16xf32>
    %1004 = vector.extract_strided_slice %945 {offsets = [1, 0, 0], sizes = [1, 16, 16], strides = [1, 1, 1]} : vector<4x16x16xf32> to vector<1x16x16xf32>
    %1005 = vector.shape_cast %1004 : vector<1x16x16xf32> to vector<16x16xf32>
    %c0_i32_261 = arith.constant 0 : i32
    %1006 = arith.addi %0, %c0_i32_261 : i32
    %c10_i32 = arith.constant 10 : i32
    %1007 = arith.addi %1006, %c10_i32 : i32
    %1008 = arith.index_cast %1007 : i32 to index
    %1009 = memref.load %arg4[%1008] : memref<192xf32, #tpu.memory_space<smem>>
    %1010 = vector.broadcast %1009 : f32 to vector<16x16xf32>
    %1011 = arith.mulf %1010, %1005 : vector<16x16xf32>
    %1012 = arith.addf %954, %1011 : vector<16x16xf32>
    %c24_i32_262 = arith.constant 24 : i32
    %1013 = arith.addi %0, %c24_i32_262 : i32
    %c10_i32_263 = arith.constant 10 : i32
    %1014 = arith.addi %1013, %c10_i32_263 : i32
    %1015 = arith.index_cast %1014 : i32 to index
    %1016 = memref.load %arg4[%1015] : memref<192xf32, #tpu.memory_space<smem>>
    %1017 = vector.broadcast %1016 : f32 to vector<16x16xf32>
    %1018 = arith.mulf %1017, %1005 : vector<16x16xf32>
    %1019 = arith.addf %961, %1018 : vector<16x16xf32>
    %c48_i32_264 = arith.constant 48 : i32
    %1020 = arith.addi %0, %c48_i32_264 : i32
    %c10_i32_265 = arith.constant 10 : i32
    %1021 = arith.addi %1020, %c10_i32_265 : i32
    %1022 = arith.index_cast %1021 : i32 to index
    %1023 = memref.load %arg4[%1022] : memref<192xf32, #tpu.memory_space<smem>>
    %1024 = vector.broadcast %1023 : f32 to vector<16x16xf32>
    %1025 = arith.mulf %1024, %1005 : vector<16x16xf32>
    %1026 = arith.addf %968, %1025 : vector<16x16xf32>
    %c72_i32_266 = arith.constant 72 : i32
    %1027 = arith.addi %0, %c72_i32_266 : i32
    %c10_i32_267 = arith.constant 10 : i32
    %1028 = arith.addi %1027, %c10_i32_267 : i32
    %1029 = arith.index_cast %1028 : i32 to index
    %1030 = memref.load %arg4[%1029] : memref<192xf32, #tpu.memory_space<smem>>
    %1031 = vector.broadcast %1030 : f32 to vector<16x16xf32>
    %1032 = arith.mulf %1031, %1005 : vector<16x16xf32>
    %1033 = arith.addf %975, %1032 : vector<16x16xf32>
    %c96_i32_268 = arith.constant 96 : i32
    %1034 = arith.addi %0, %c96_i32_268 : i32
    %c10_i32_269 = arith.constant 10 : i32
    %1035 = arith.addi %1034, %c10_i32_269 : i32
    %1036 = arith.index_cast %1035 : i32 to index
    %1037 = memref.load %arg4[%1036] : memref<192xf32, #tpu.memory_space<smem>>
    %1038 = vector.broadcast %1037 : f32 to vector<16x16xf32>
    %1039 = arith.mulf %1038, %1005 : vector<16x16xf32>
    %1040 = arith.addf %982, %1039 : vector<16x16xf32>
    %c120_i32_270 = arith.constant 120 : i32
    %1041 = arith.addi %0, %c120_i32_270 : i32
    %c10_i32_271 = arith.constant 10 : i32
    %1042 = arith.addi %1041, %c10_i32_271 : i32
    %1043 = arith.index_cast %1042 : i32 to index
    %1044 = memref.load %arg4[%1043] : memref<192xf32, #tpu.memory_space<smem>>
    %1045 = vector.broadcast %1044 : f32 to vector<16x16xf32>
    %1046 = arith.mulf %1045, %1005 : vector<16x16xf32>
    %1047 = arith.addf %989, %1046 : vector<16x16xf32>
    %c144_i32_272 = arith.constant 144 : i32
    %1048 = arith.addi %0, %c144_i32_272 : i32
    %c10_i32_273 = arith.constant 10 : i32
    %1049 = arith.addi %1048, %c10_i32_273 : i32
    %1050 = arith.index_cast %1049 : i32 to index
    %1051 = memref.load %arg4[%1050] : memref<192xf32, #tpu.memory_space<smem>>
    %1052 = vector.broadcast %1051 : f32 to vector<16x16xf32>
    %1053 = arith.mulf %1052, %1005 : vector<16x16xf32>
    %1054 = arith.addf %996, %1053 : vector<16x16xf32>
    %c168_i32_274 = arith.constant 168 : i32
    %1055 = arith.addi %0, %c168_i32_274 : i32
    %c10_i32_275 = arith.constant 10 : i32
    %1056 = arith.addi %1055, %c10_i32_275 : i32
    %1057 = arith.index_cast %1056 : i32 to index
    %1058 = memref.load %arg4[%1057] : memref<192xf32, #tpu.memory_space<smem>>
    %1059 = vector.broadcast %1058 : f32 to vector<16x16xf32>
    %1060 = arith.mulf %1059, %1005 : vector<16x16xf32>
    %1061 = arith.addf %1003, %1060 : vector<16x16xf32>
    %1062 = vector.extract_strided_slice %945 {offsets = [2, 0, 0], sizes = [1, 16, 16], strides = [1, 1, 1]} : vector<4x16x16xf32> to vector<1x16x16xf32>
    %1063 = vector.shape_cast %1062 : vector<1x16x16xf32> to vector<16x16xf32>
    %c0_i32_276 = arith.constant 0 : i32
    %1064 = arith.addi %0, %c0_i32_276 : i32
    %c16_i32 = arith.constant 16 : i32
    %1065 = arith.addi %1064, %c16_i32 : i32
    %1066 = arith.index_cast %1065 : i32 to index
    %1067 = memref.load %arg4[%1066] : memref<192xf32, #tpu.memory_space<smem>>
    %1068 = vector.broadcast %1067 : f32 to vector<16x16xf32>
    %1069 = arith.mulf %1068, %1063 : vector<16x16xf32>
    %1070 = arith.addf %1012, %1069 : vector<16x16xf32>
    %c24_i32_277 = arith.constant 24 : i32
    %1071 = arith.addi %0, %c24_i32_277 : i32
    %c16_i32_278 = arith.constant 16 : i32
    %1072 = arith.addi %1071, %c16_i32_278 : i32
    %1073 = arith.index_cast %1072 : i32 to index
    %1074 = memref.load %arg4[%1073] : memref<192xf32, #tpu.memory_space<smem>>
    %1075 = vector.broadcast %1074 : f32 to vector<16x16xf32>
    %1076 = arith.mulf %1075, %1063 : vector<16x16xf32>
    %1077 = arith.addf %1019, %1076 : vector<16x16xf32>
    %c48_i32_279 = arith.constant 48 : i32
    %1078 = arith.addi %0, %c48_i32_279 : i32
    %c16_i32_280 = arith.constant 16 : i32
    %1079 = arith.addi %1078, %c16_i32_280 : i32
    %1080 = arith.index_cast %1079 : i32 to index
    %1081 = memref.load %arg4[%1080] : memref<192xf32, #tpu.memory_space<smem>>
    %1082 = vector.broadcast %1081 : f32 to vector<16x16xf32>
    %1083 = arith.mulf %1082, %1063 : vector<16x16xf32>
    %1084 = arith.addf %1026, %1083 : vector<16x16xf32>
    %c72_i32_281 = arith.constant 72 : i32
    %1085 = arith.addi %0, %c72_i32_281 : i32
    %c16_i32_282 = arith.constant 16 : i32
    %1086 = arith.addi %1085, %c16_i32_282 : i32
    %1087 = arith.index_cast %1086 : i32 to index
    %1088 = memref.load %arg4[%1087] : memref<192xf32, #tpu.memory_space<smem>>
    %1089 = vector.broadcast %1088 : f32 to vector<16x16xf32>
    %1090 = arith.mulf %1089, %1063 : vector<16x16xf32>
    %1091 = arith.addf %1033, %1090 : vector<16x16xf32>
    %c96_i32_283 = arith.constant 96 : i32
    %1092 = arith.addi %0, %c96_i32_283 : i32
    %c16_i32_284 = arith.constant 16 : i32
    %1093 = arith.addi %1092, %c16_i32_284 : i32
    %1094 = arith.index_cast %1093 : i32 to index
    %1095 = memref.load %arg4[%1094] : memref<192xf32, #tpu.memory_space<smem>>
    %1096 = vector.broadcast %1095 : f32 to vector<16x16xf32>
    %1097 = arith.mulf %1096, %1063 : vector<16x16xf32>
    %1098 = arith.addf %1040, %1097 : vector<16x16xf32>
    %c120_i32_285 = arith.constant 120 : i32
    %1099 = arith.addi %0, %c120_i32_285 : i32
    %c16_i32_286 = arith.constant 16 : i32
    %1100 = arith.addi %1099, %c16_i32_286 : i32
    %1101 = arith.index_cast %1100 : i32 to index
    %1102 = memref.load %arg4[%1101] : memref<192xf32, #tpu.memory_space<smem>>
    %1103 = vector.broadcast %1102 : f32 to vector<16x16xf32>
    %1104 = arith.mulf %1103, %1063 : vector<16x16xf32>
    %1105 = arith.addf %1047, %1104 : vector<16x16xf32>
    %c144_i32_287 = arith.constant 144 : i32
    %1106 = arith.addi %0, %c144_i32_287 : i32
    %c16_i32_288 = arith.constant 16 : i32
    %1107 = arith.addi %1106, %c16_i32_288 : i32
    %1108 = arith.index_cast %1107 : i32 to index
    %1109 = memref.load %arg4[%1108] : memref<192xf32, #tpu.memory_space<smem>>
    %1110 = vector.broadcast %1109 : f32 to vector<16x16xf32>
    %1111 = arith.mulf %1110, %1063 : vector<16x16xf32>
    %1112 = arith.addf %1054, %1111 : vector<16x16xf32>
    %c168_i32_289 = arith.constant 168 : i32
    %1113 = arith.addi %0, %c168_i32_289 : i32
    %c16_i32_290 = arith.constant 16 : i32
    %1114 = arith.addi %1113, %c16_i32_290 : i32
    %1115 = arith.index_cast %1114 : i32 to index
    %1116 = memref.load %arg4[%1115] : memref<192xf32, #tpu.memory_space<smem>>
    %1117 = vector.broadcast %1116 : f32 to vector<16x16xf32>
    %1118 = arith.mulf %1117, %1063 : vector<16x16xf32>
    %1119 = arith.addf %1061, %1118 : vector<16x16xf32>
    %1120 = vector.extract_strided_slice %945 {offsets = [3, 0, 0], sizes = [1, 16, 16], strides = [1, 1, 1]} : vector<4x16x16xf32> to vector<1x16x16xf32>
    %1121 = vector.shape_cast %1120 : vector<1x16x16xf32> to vector<16x16xf32>
    %c0_i32_291 = arith.constant 0 : i32
    %1122 = arith.addi %0, %c0_i32_291 : i32
    %c22_i32 = arith.constant 22 : i32
    %1123 = arith.addi %1122, %c22_i32 : i32
    %1124 = arith.index_cast %1123 : i32 to index
    %1125 = memref.load %arg4[%1124] : memref<192xf32, #tpu.memory_space<smem>>
    %1126 = vector.broadcast %1125 : f32 to vector<16x16xf32>
    %1127 = arith.mulf %1126, %1121 : vector<16x16xf32>
    %1128 = arith.addf %1070, %1127 : vector<16x16xf32>
    %c24_i32_292 = arith.constant 24 : i32
    %1129 = arith.addi %0, %c24_i32_292 : i32
    %c22_i32_293 = arith.constant 22 : i32
    %1130 = arith.addi %1129, %c22_i32_293 : i32
    %1131 = arith.index_cast %1130 : i32 to index
    %1132 = memref.load %arg4[%1131] : memref<192xf32, #tpu.memory_space<smem>>
    %1133 = vector.broadcast %1132 : f32 to vector<16x16xf32>
    %1134 = arith.mulf %1133, %1121 : vector<16x16xf32>
    %1135 = arith.addf %1077, %1134 : vector<16x16xf32>
    %c48_i32_294 = arith.constant 48 : i32
    %1136 = arith.addi %0, %c48_i32_294 : i32
    %c22_i32_295 = arith.constant 22 : i32
    %1137 = arith.addi %1136, %c22_i32_295 : i32
    %1138 = arith.index_cast %1137 : i32 to index
    %1139 = memref.load %arg4[%1138] : memref<192xf32, #tpu.memory_space<smem>>
    %1140 = vector.broadcast %1139 : f32 to vector<16x16xf32>
    %1141 = arith.mulf %1140, %1121 : vector<16x16xf32>
    %1142 = arith.addf %1084, %1141 : vector<16x16xf32>
    %c72_i32_296 = arith.constant 72 : i32
    %1143 = arith.addi %0, %c72_i32_296 : i32
    %c22_i32_297 = arith.constant 22 : i32
    %1144 = arith.addi %1143, %c22_i32_297 : i32
    %1145 = arith.index_cast %1144 : i32 to index
    %1146 = memref.load %arg4[%1145] : memref<192xf32, #tpu.memory_space<smem>>
    %1147 = vector.broadcast %1146 : f32 to vector<16x16xf32>
    %1148 = arith.mulf %1147, %1121 : vector<16x16xf32>
    %1149 = arith.addf %1091, %1148 : vector<16x16xf32>
    %c96_i32_298 = arith.constant 96 : i32
    %1150 = arith.addi %0, %c96_i32_298 : i32
    %c22_i32_299 = arith.constant 22 : i32
    %1151 = arith.addi %1150, %c22_i32_299 : i32
    %1152 = arith.index_cast %1151 : i32 to index
    %1153 = memref.load %arg4[%1152] : memref<192xf32, #tpu.memory_space<smem>>
    %1154 = vector.broadcast %1153 : f32 to vector<16x16xf32>
    %1155 = arith.mulf %1154, %1121 : vector<16x16xf32>
    %1156 = arith.addf %1098, %1155 : vector<16x16xf32>
    %c120_i32_300 = arith.constant 120 : i32
    %1157 = arith.addi %0, %c120_i32_300 : i32
    %c22_i32_301 = arith.constant 22 : i32
    %1158 = arith.addi %1157, %c22_i32_301 : i32
    %1159 = arith.index_cast %1158 : i32 to index
    %1160 = memref.load %arg4[%1159] : memref<192xf32, #tpu.memory_space<smem>>
    %1161 = vector.broadcast %1160 : f32 to vector<16x16xf32>
    %1162 = arith.mulf %1161, %1121 : vector<16x16xf32>
    %1163 = arith.addf %1105, %1162 : vector<16x16xf32>
    %c144_i32_302 = arith.constant 144 : i32
    %1164 = arith.addi %0, %c144_i32_302 : i32
    %c22_i32_303 = arith.constant 22 : i32
    %1165 = arith.addi %1164, %c22_i32_303 : i32
    %1166 = arith.index_cast %1165 : i32 to index
    %1167 = memref.load %arg4[%1166] : memref<192xf32, #tpu.memory_space<smem>>
    %1168 = vector.broadcast %1167 : f32 to vector<16x16xf32>
    %1169 = arith.mulf %1168, %1121 : vector<16x16xf32>
    %1170 = arith.addf %1112, %1169 : vector<16x16xf32>
    %c168_i32_304 = arith.constant 168 : i32
    %1171 = arith.addi %0, %c168_i32_304 : i32
    %c22_i32_305 = arith.constant 22 : i32
    %1172 = arith.addi %1171, %c22_i32_305 : i32
    %1173 = arith.index_cast %1172 : i32 to index
    %1174 = memref.load %arg4[%1173] : memref<192xf32, #tpu.memory_space<smem>>
    %1175 = vector.broadcast %1174 : f32 to vector<16x16xf32>
    %1176 = arith.mulf %1175, %1121 : vector<16x16xf32>
    %1177 = arith.addf %1119, %1176 : vector<16x16xf32>
    %1178 = vector.extract_strided_slice %711 {offsets = [0, 0, 2], sizes = [4, 16, 16], strides = [1, 1, 1]} : vector<4x16x18xf32> to vector<4x16x16xf32>
    %1179 = vector.extract_strided_slice %1178 {offsets = [0, 0, 0], sizes = [1, 16, 16], strides = [1, 1, 1]} : vector<4x16x16xf32> to vector<1x16x16xf32>
    %1180 = vector.shape_cast %1179 : vector<1x16x16xf32> to vector<16x16xf32>
    %c0_i32_306 = arith.constant 0 : i32
    %1181 = arith.addi %0, %c0_i32_306 : i32
    %c5_i32 = arith.constant 5 : i32
    %1182 = arith.addi %1181, %c5_i32 : i32
    %1183 = arith.index_cast %1182 : i32 to index
    %1184 = memref.load %arg4[%1183] : memref<192xf32, #tpu.memory_space<smem>>
    %1185 = vector.broadcast %1184 : f32 to vector<16x16xf32>
    %1186 = arith.mulf %1185, %1180 : vector<16x16xf32>
    %1187 = arith.addf %1128, %1186 : vector<16x16xf32>
    %c24_i32_307 = arith.constant 24 : i32
    %1188 = arith.addi %0, %c24_i32_307 : i32
    %c5_i32_308 = arith.constant 5 : i32
    %1189 = arith.addi %1188, %c5_i32_308 : i32
    %1190 = arith.index_cast %1189 : i32 to index
    %1191 = memref.load %arg4[%1190] : memref<192xf32, #tpu.memory_space<smem>>
    %1192 = vector.broadcast %1191 : f32 to vector<16x16xf32>
    %1193 = arith.mulf %1192, %1180 : vector<16x16xf32>
    %1194 = arith.addf %1135, %1193 : vector<16x16xf32>
    %c48_i32_309 = arith.constant 48 : i32
    %1195 = arith.addi %0, %c48_i32_309 : i32
    %c5_i32_310 = arith.constant 5 : i32
    %1196 = arith.addi %1195, %c5_i32_310 : i32
    %1197 = arith.index_cast %1196 : i32 to index
    %1198 = memref.load %arg4[%1197] : memref<192xf32, #tpu.memory_space<smem>>
    %1199 = vector.broadcast %1198 : f32 to vector<16x16xf32>
    %1200 = arith.mulf %1199, %1180 : vector<16x16xf32>
    %1201 = arith.addf %1142, %1200 : vector<16x16xf32>
    %c72_i32_311 = arith.constant 72 : i32
    %1202 = arith.addi %0, %c72_i32_311 : i32
    %c5_i32_312 = arith.constant 5 : i32
    %1203 = arith.addi %1202, %c5_i32_312 : i32
    %1204 = arith.index_cast %1203 : i32 to index
    %1205 = memref.load %arg4[%1204] : memref<192xf32, #tpu.memory_space<smem>>
    %1206 = vector.broadcast %1205 : f32 to vector<16x16xf32>
    %1207 = arith.mulf %1206, %1180 : vector<16x16xf32>
    %1208 = arith.addf %1149, %1207 : vector<16x16xf32>
    %c96_i32_313 = arith.constant 96 : i32
    %1209 = arith.addi %0, %c96_i32_313 : i32
    %c5_i32_314 = arith.constant 5 : i32
    %1210 = arith.addi %1209, %c5_i32_314 : i32
    %1211 = arith.index_cast %1210 : i32 to index
    %1212 = memref.load %arg4[%1211] : memref<192xf32, #tpu.memory_space<smem>>
    %1213 = vector.broadcast %1212 : f32 to vector<16x16xf32>
    %1214 = arith.mulf %1213, %1180 : vector<16x16xf32>
    %1215 = arith.addf %1156, %1214 : vector<16x16xf32>
    %c120_i32_315 = arith.constant 120 : i32
    %1216 = arith.addi %0, %c120_i32_315 : i32
    %c5_i32_316 = arith.constant 5 : i32
    %1217 = arith.addi %1216, %c5_i32_316 : i32
    %1218 = arith.index_cast %1217 : i32 to index
    %1219 = memref.load %arg4[%1218] : memref<192xf32, #tpu.memory_space<smem>>
    %1220 = vector.broadcast %1219 : f32 to vector<16x16xf32>
    %1221 = arith.mulf %1220, %1180 : vector<16x16xf32>
    %1222 = arith.addf %1163, %1221 : vector<16x16xf32>
    %c144_i32_317 = arith.constant 144 : i32
    %1223 = arith.addi %0, %c144_i32_317 : i32
    %c5_i32_318 = arith.constant 5 : i32
    %1224 = arith.addi %1223, %c5_i32_318 : i32
    %1225 = arith.index_cast %1224 : i32 to index
    %1226 = memref.load %arg4[%1225] : memref<192xf32, #tpu.memory_space<smem>>
    %1227 = vector.broadcast %1226 : f32 to vector<16x16xf32>
    %1228 = arith.mulf %1227, %1180 : vector<16x16xf32>
    %1229 = arith.addf %1170, %1228 : vector<16x16xf32>
    %c168_i32_319 = arith.constant 168 : i32
    %1230 = arith.addi %0, %c168_i32_319 : i32
    %c5_i32_320 = arith.constant 5 : i32
    %1231 = arith.addi %1230, %c5_i32_320 : i32
    %1232 = arith.index_cast %1231 : i32 to index
    %1233 = memref.load %arg4[%1232] : memref<192xf32, #tpu.memory_space<smem>>
    %1234 = vector.broadcast %1233 : f32 to vector<16x16xf32>
    %1235 = arith.mulf %1234, %1180 : vector<16x16xf32>
    %1236 = arith.addf %1177, %1235 : vector<16x16xf32>
    %1237 = vector.extract_strided_slice %1178 {offsets = [1, 0, 0], sizes = [1, 16, 16], strides = [1, 1, 1]} : vector<4x16x16xf32> to vector<1x16x16xf32>
    %1238 = vector.shape_cast %1237 : vector<1x16x16xf32> to vector<16x16xf32>
    %c0_i32_321 = arith.constant 0 : i32
    %1239 = arith.addi %0, %c0_i32_321 : i32
    %c11_i32 = arith.constant 11 : i32
    %1240 = arith.addi %1239, %c11_i32 : i32
    %1241 = arith.index_cast %1240 : i32 to index
    %1242 = memref.load %arg4[%1241] : memref<192xf32, #tpu.memory_space<smem>>
    %1243 = vector.broadcast %1242 : f32 to vector<16x16xf32>
    %1244 = arith.mulf %1243, %1238 : vector<16x16xf32>
    %1245 = arith.addf %1187, %1244 : vector<16x16xf32>
    %c24_i32_322 = arith.constant 24 : i32
    %1246 = arith.addi %0, %c24_i32_322 : i32
    %c11_i32_323 = arith.constant 11 : i32
    %1247 = arith.addi %1246, %c11_i32_323 : i32
    %1248 = arith.index_cast %1247 : i32 to index
    %1249 = memref.load %arg4[%1248] : memref<192xf32, #tpu.memory_space<smem>>
    %1250 = vector.broadcast %1249 : f32 to vector<16x16xf32>
    %1251 = arith.mulf %1250, %1238 : vector<16x16xf32>
    %1252 = arith.addf %1194, %1251 : vector<16x16xf32>
    %c48_i32_324 = arith.constant 48 : i32
    %1253 = arith.addi %0, %c48_i32_324 : i32
    %c11_i32_325 = arith.constant 11 : i32
    %1254 = arith.addi %1253, %c11_i32_325 : i32
    %1255 = arith.index_cast %1254 : i32 to index
    %1256 = memref.load %arg4[%1255] : memref<192xf32, #tpu.memory_space<smem>>
    %1257 = vector.broadcast %1256 : f32 to vector<16x16xf32>
    %1258 = arith.mulf %1257, %1238 : vector<16x16xf32>
    %1259 = arith.addf %1201, %1258 : vector<16x16xf32>
    %c72_i32_326 = arith.constant 72 : i32
    %1260 = arith.addi %0, %c72_i32_326 : i32
    %c11_i32_327 = arith.constant 11 : i32
    %1261 = arith.addi %1260, %c11_i32_327 : i32
    %1262 = arith.index_cast %1261 : i32 to index
    %1263 = memref.load %arg4[%1262] : memref<192xf32, #tpu.memory_space<smem>>
    %1264 = vector.broadcast %1263 : f32 to vector<16x16xf32>
    %1265 = arith.mulf %1264, %1238 : vector<16x16xf32>
    %1266 = arith.addf %1208, %1265 : vector<16x16xf32>
    %c96_i32_328 = arith.constant 96 : i32
    %1267 = arith.addi %0, %c96_i32_328 : i32
    %c11_i32_329 = arith.constant 11 : i32
    %1268 = arith.addi %1267, %c11_i32_329 : i32
    %1269 = arith.index_cast %1268 : i32 to index
    %1270 = memref.load %arg4[%1269] : memref<192xf32, #tpu.memory_space<smem>>
    %1271 = vector.broadcast %1270 : f32 to vector<16x16xf32>
    %1272 = arith.mulf %1271, %1238 : vector<16x16xf32>
    %1273 = arith.addf %1215, %1272 : vector<16x16xf32>
    %c120_i32_330 = arith.constant 120 : i32
    %1274 = arith.addi %0, %c120_i32_330 : i32
    %c11_i32_331 = arith.constant 11 : i32
    %1275 = arith.addi %1274, %c11_i32_331 : i32
    %1276 = arith.index_cast %1275 : i32 to index
    %1277 = memref.load %arg4[%1276] : memref<192xf32, #tpu.memory_space<smem>>
    %1278 = vector.broadcast %1277 : f32 to vector<16x16xf32>
    %1279 = arith.mulf %1278, %1238 : vector<16x16xf32>
    %1280 = arith.addf %1222, %1279 : vector<16x16xf32>
    %c144_i32_332 = arith.constant 144 : i32
    %1281 = arith.addi %0, %c144_i32_332 : i32
    %c11_i32_333 = arith.constant 11 : i32
    %1282 = arith.addi %1281, %c11_i32_333 : i32
    %1283 = arith.index_cast %1282 : i32 to index
    %1284 = memref.load %arg4[%1283] : memref<192xf32, #tpu.memory_space<smem>>
    %1285 = vector.broadcast %1284 : f32 to vector<16x16xf32>
    %1286 = arith.mulf %1285, %1238 : vector<16x16xf32>
    %1287 = arith.addf %1229, %1286 : vector<16x16xf32>
    %c168_i32_334 = arith.constant 168 : i32
    %1288 = arith.addi %0, %c168_i32_334 : i32
    %c11_i32_335 = arith.constant 11 : i32
    %1289 = arith.addi %1288, %c11_i32_335 : i32
    %1290 = arith.index_cast %1289 : i32 to index
    %1291 = memref.load %arg4[%1290] : memref<192xf32, #tpu.memory_space<smem>>
    %1292 = vector.broadcast %1291 : f32 to vector<16x16xf32>
    %1293 = arith.mulf %1292, %1238 : vector<16x16xf32>
    %1294 = arith.addf %1236, %1293 : vector<16x16xf32>
    %1295 = vector.extract_strided_slice %1178 {offsets = [2, 0, 0], sizes = [1, 16, 16], strides = [1, 1, 1]} : vector<4x16x16xf32> to vector<1x16x16xf32>
    %1296 = vector.shape_cast %1295 : vector<1x16x16xf32> to vector<16x16xf32>
    %c0_i32_336 = arith.constant 0 : i32
    %1297 = arith.addi %0, %c0_i32_336 : i32
    %c17_i32 = arith.constant 17 : i32
    %1298 = arith.addi %1297, %c17_i32 : i32
    %1299 = arith.index_cast %1298 : i32 to index
    %1300 = memref.load %arg4[%1299] : memref<192xf32, #tpu.memory_space<smem>>
    %1301 = vector.broadcast %1300 : f32 to vector<16x16xf32>
    %1302 = arith.mulf %1301, %1296 : vector<16x16xf32>
    %1303 = arith.addf %1245, %1302 : vector<16x16xf32>
    %c24_i32_337 = arith.constant 24 : i32
    %1304 = arith.addi %0, %c24_i32_337 : i32
    %c17_i32_338 = arith.constant 17 : i32
    %1305 = arith.addi %1304, %c17_i32_338 : i32
    %1306 = arith.index_cast %1305 : i32 to index
    %1307 = memref.load %arg4[%1306] : memref<192xf32, #tpu.memory_space<smem>>
    %1308 = vector.broadcast %1307 : f32 to vector<16x16xf32>
    %1309 = arith.mulf %1308, %1296 : vector<16x16xf32>
    %1310 = arith.addf %1252, %1309 : vector<16x16xf32>
    %c48_i32_339 = arith.constant 48 : i32
    %1311 = arith.addi %0, %c48_i32_339 : i32
    %c17_i32_340 = arith.constant 17 : i32
    %1312 = arith.addi %1311, %c17_i32_340 : i32
    %1313 = arith.index_cast %1312 : i32 to index
    %1314 = memref.load %arg4[%1313] : memref<192xf32, #tpu.memory_space<smem>>
    %1315 = vector.broadcast %1314 : f32 to vector<16x16xf32>
    %1316 = arith.mulf %1315, %1296 : vector<16x16xf32>
    %1317 = arith.addf %1259, %1316 : vector<16x16xf32>
    %c72_i32_341 = arith.constant 72 : i32
    %1318 = arith.addi %0, %c72_i32_341 : i32
    %c17_i32_342 = arith.constant 17 : i32
    %1319 = arith.addi %1318, %c17_i32_342 : i32
    %1320 = arith.index_cast %1319 : i32 to index
    %1321 = memref.load %arg4[%1320] : memref<192xf32, #tpu.memory_space<smem>>
    %1322 = vector.broadcast %1321 : f32 to vector<16x16xf32>
    %1323 = arith.mulf %1322, %1296 : vector<16x16xf32>
    %1324 = arith.addf %1266, %1323 : vector<16x16xf32>
    %c96_i32_343 = arith.constant 96 : i32
    %1325 = arith.addi %0, %c96_i32_343 : i32
    %c17_i32_344 = arith.constant 17 : i32
    %1326 = arith.addi %1325, %c17_i32_344 : i32
    %1327 = arith.index_cast %1326 : i32 to index
    %1328 = memref.load %arg4[%1327] : memref<192xf32, #tpu.memory_space<smem>>
    %1329 = vector.broadcast %1328 : f32 to vector<16x16xf32>
    %1330 = arith.mulf %1329, %1296 : vector<16x16xf32>
    %1331 = arith.addf %1273, %1330 : vector<16x16xf32>
    %c120_i32_345 = arith.constant 120 : i32
    %1332 = arith.addi %0, %c120_i32_345 : i32
    %c17_i32_346 = arith.constant 17 : i32
    %1333 = arith.addi %1332, %c17_i32_346 : i32
    %1334 = arith.index_cast %1333 : i32 to index
    %1335 = memref.load %arg4[%1334] : memref<192xf32, #tpu.memory_space<smem>>
    %1336 = vector.broadcast %1335 : f32 to vector<16x16xf32>
    %1337 = arith.mulf %1336, %1296 : vector<16x16xf32>
    %1338 = arith.addf %1280, %1337 : vector<16x16xf32>
    %c144_i32_347 = arith.constant 144 : i32
    %1339 = arith.addi %0, %c144_i32_347 : i32
    %c17_i32_348 = arith.constant 17 : i32
    %1340 = arith.addi %1339, %c17_i32_348 : i32
    %1341 = arith.index_cast %1340 : i32 to index
    %1342 = memref.load %arg4[%1341] : memref<192xf32, #tpu.memory_space<smem>>
    %1343 = vector.broadcast %1342 : f32 to vector<16x16xf32>
    %1344 = arith.mulf %1343, %1296 : vector<16x16xf32>
    %1345 = arith.addf %1287, %1344 : vector<16x16xf32>
    %c168_i32_349 = arith.constant 168 : i32
    %1346 = arith.addi %0, %c168_i32_349 : i32
    %c17_i32_350 = arith.constant 17 : i32
    %1347 = arith.addi %1346, %c17_i32_350 : i32
    %1348 = arith.index_cast %1347 : i32 to index
    %1349 = memref.load %arg4[%1348] : memref<192xf32, #tpu.memory_space<smem>>
    %1350 = vector.broadcast %1349 : f32 to vector<16x16xf32>
    %1351 = arith.mulf %1350, %1296 : vector<16x16xf32>
    %1352 = arith.addf %1294, %1351 : vector<16x16xf32>
    %1353 = vector.extract_strided_slice %1178 {offsets = [3, 0, 0], sizes = [1, 16, 16], strides = [1, 1, 1]} : vector<4x16x16xf32> to vector<1x16x16xf32>
    %1354 = vector.shape_cast %1353 : vector<1x16x16xf32> to vector<16x16xf32>
    %c0_i32_351 = arith.constant 0 : i32
    %1355 = arith.addi %0, %c0_i32_351 : i32
    %c23_i32 = arith.constant 23 : i32
    %1356 = arith.addi %1355, %c23_i32 : i32
    %1357 = arith.index_cast %1356 : i32 to index
    %1358 = memref.load %arg4[%1357] : memref<192xf32, #tpu.memory_space<smem>>
    %1359 = vector.broadcast %1358 : f32 to vector<16x16xf32>
    %1360 = arith.mulf %1359, %1354 : vector<16x16xf32>
    %1361 = arith.addf %1303, %1360 : vector<16x16xf32>
    %c24_i32_352 = arith.constant 24 : i32
    %1362 = arith.addi %0, %c24_i32_352 : i32
    %c23_i32_353 = arith.constant 23 : i32
    %1363 = arith.addi %1362, %c23_i32_353 : i32
    %1364 = arith.index_cast %1363 : i32 to index
    %1365 = memref.load %arg4[%1364] : memref<192xf32, #tpu.memory_space<smem>>
    %1366 = vector.broadcast %1365 : f32 to vector<16x16xf32>
    %1367 = arith.mulf %1366, %1354 : vector<16x16xf32>
    %1368 = arith.addf %1310, %1367 : vector<16x16xf32>
    %c48_i32_354 = arith.constant 48 : i32
    %1369 = arith.addi %0, %c48_i32_354 : i32
    %c23_i32_355 = arith.constant 23 : i32
    %1370 = arith.addi %1369, %c23_i32_355 : i32
    %1371 = arith.index_cast %1370 : i32 to index
    %1372 = memref.load %arg4[%1371] : memref<192xf32, #tpu.memory_space<smem>>
    %1373 = vector.broadcast %1372 : f32 to vector<16x16xf32>
    %1374 = arith.mulf %1373, %1354 : vector<16x16xf32>
    %1375 = arith.addf %1317, %1374 : vector<16x16xf32>
    %c72_i32_356 = arith.constant 72 : i32
    %1376 = arith.addi %0, %c72_i32_356 : i32
    %c23_i32_357 = arith.constant 23 : i32
    %1377 = arith.addi %1376, %c23_i32_357 : i32
    %1378 = arith.index_cast %1377 : i32 to index
    %1379 = memref.load %arg4[%1378] : memref<192xf32, #tpu.memory_space<smem>>
    %1380 = vector.broadcast %1379 : f32 to vector<16x16xf32>
    %1381 = arith.mulf %1380, %1354 : vector<16x16xf32>
    %1382 = arith.addf %1324, %1381 : vector<16x16xf32>
    %c96_i32_358 = arith.constant 96 : i32
    %1383 = arith.addi %0, %c96_i32_358 : i32
    %c23_i32_359 = arith.constant 23 : i32
    %1384 = arith.addi %1383, %c23_i32_359 : i32
    %1385 = arith.index_cast %1384 : i32 to index
    %1386 = memref.load %arg4[%1385] : memref<192xf32, #tpu.memory_space<smem>>
    %1387 = vector.broadcast %1386 : f32 to vector<16x16xf32>
    %1388 = arith.mulf %1387, %1354 : vector<16x16xf32>
    %1389 = arith.addf %1331, %1388 : vector<16x16xf32>
    %c120_i32_360 = arith.constant 120 : i32
    %1390 = arith.addi %0, %c120_i32_360 : i32
    %c23_i32_361 = arith.constant 23 : i32
    %1391 = arith.addi %1390, %c23_i32_361 : i32
    %1392 = arith.index_cast %1391 : i32 to index
    %1393 = memref.load %arg4[%1392] : memref<192xf32, #tpu.memory_space<smem>>
    %1394 = vector.broadcast %1393 : f32 to vector<16x16xf32>
    %1395 = arith.mulf %1394, %1354 : vector<16x16xf32>
    %1396 = arith.addf %1338, %1395 : vector<16x16xf32>
    %c144_i32_362 = arith.constant 144 : i32
    %1397 = arith.addi %0, %c144_i32_362 : i32
    %c23_i32_363 = arith.constant 23 : i32
    %1398 = arith.addi %1397, %c23_i32_363 : i32
    %1399 = arith.index_cast %1398 : i32 to index
    %1400 = memref.load %arg4[%1399] : memref<192xf32, #tpu.memory_space<smem>>
    %1401 = vector.broadcast %1400 : f32 to vector<16x16xf32>
    %1402 = arith.mulf %1401, %1354 : vector<16x16xf32>
    %1403 = arith.addf %1345, %1402 : vector<16x16xf32>
    %c168_i32_364 = arith.constant 168 : i32
    %1404 = arith.addi %0, %c168_i32_364 : i32
    %c23_i32_365 = arith.constant 23 : i32
    %1405 = arith.addi %1404, %c23_i32_365 : i32
    %1406 = arith.index_cast %1405 : i32 to index
    %1407 = memref.load %arg4[%1406] : memref<192xf32, #tpu.memory_space<smem>>
    %1408 = vector.broadcast %1407 : f32 to vector<16x16xf32>
    %1409 = arith.mulf %1408, %1354 : vector<16x16xf32>
    %1410 = arith.addf %1352, %1409 : vector<16x16xf32>
    %1411 = vector.shape_cast %1361 : vector<16x16xf32> to vector<1x16x16xf32>
    %1412 = vector.shape_cast %1368 : vector<16x16xf32> to vector<1x16x16xf32>
    %1413 = vector.shape_cast %1375 : vector<16x16xf32> to vector<1x16x16xf32>
    %1414 = vector.shape_cast %1382 : vector<16x16xf32> to vector<1x16x16xf32>
    %1415 = vector.shape_cast %1389 : vector<16x16xf32> to vector<1x16x16xf32>
    %1416 = vector.shape_cast %1396 : vector<16x16xf32> to vector<1x16x16xf32>
    %1417 = vector.shape_cast %1403 : vector<16x16xf32> to vector<1x16x16xf32>
    %1418 = vector.shape_cast %1410 : vector<16x16xf32> to vector<1x16x16xf32>
    %1419 = tpu.concatenate %1411, %1412, %1413, %1414, %1415, %1416, %1417, %1418 in 0 : vector<1x16x16xf32>, vector<1x16x16xf32>, vector<1x16x16xf32>, vector<1x16x16xf32>, vector<1x16x16xf32>, vector<1x16x16xf32>, vector<1x16x16xf32>, vector<1x16x16xf32> -> vector<8x16x16xf32>
    %1420 = vector.shape_cast %1419 : vector<8x16x16xf32> to vector<8x256xf32>
    %c0_366 = arith.constant 0 : index
    %c0_367 = arith.constant 0 : index
    %c0_368 = arith.constant 0 : index
    %c0_369 = arith.constant 0 : index
    %1421 = vector.load %arg5[%c0_366, %c0_367, %c0_368, %c0_369] : memref<1x1x8x256xf32, #tpu.memory_space<vmem>>, vector<1x1x8x256xf32>
    %1422 = vector.shape_cast %1421 : vector<1x1x8x256xf32> to vector<8x256xf32>
    %1423 = vector.shape_cast %1420 : vector<8x256xf32> to vector<1x1x8x256xf32>
    tpu.vector_store %arg5[%c0_366, %c0_367, %c0_368, %c0_369], %1423 {strides = array<i32>} : memref<1x1x8x256xf32, #tpu.memory_space<vmem>>, vector<1x1x8x256xf32>,
    return
  }
  func.func @transform_0(%arg0: i32, %arg1: i32, %arg2: i32) -> (i32, i32, i32, i32) {
    %c0_i32 = arith.constant 0 : i32
    %c0_i32_0 = arith.constant 0 : i32
    %c0_i32_1 = arith.constant 0 : i32
    return %arg0, %arg1, %c0_i32, %c0_i32_0 : i32, i32, i32, i32
  }
  func.func @transform_1(%arg0: i32, %arg1: i32, %arg2: i32) -> i32 {
    %c0_i32 = arith.constant 0 : i32
    %c0_i32_0 = arith.constant 0 : i32
    return %c0_i32 : i32
  }
  func.func @transform_2(%arg0: i32, %arg1: i32, %arg2: i32) -> (i32, i32, i32, i32) {
    %c0_i32 = arith.constant 0 : i32
    %c0_i32_0 = arith.constant 0 : i32
    return %arg0, %arg1, %c0_i32, %arg2 : i32, i32, i32, i32
  }
}

</mosaic_0001>

<llo_original>
// kernel: tpu_custom_call.1
$region0: #{tpu_custom_call.1}
  #allocation0 [shape = 'u32[]', space=smem, size = 0x4, offset = 0x4, fixed_abs, tag = 'smem constant byte address 0x4 - core index']
  #allocation1 [shape = 'u32[144,128]{1,0:T(1,128)}', space=vmem, size = 0x12000, scoped, tag = 'internal scratch']
  %s0 = inlined_call_operand.vmem [shape: f32[2,4,17,18], index: 0, kind: input, shape index: {}]
  %s1 = inlined_call_operand.vmem [shape: f32[192], index: 1, kind: input, shape index: {}]
  %s2 = inlined_call_operand.hbm [shape: f32[2,1,8,256], index: 2, kind: output, shape index: {}]
  %s3 = sld [smem:[#allocation0]]
  $region45: #{tpu_custom_call.1} parent=0
    _
  %s5 = ssub.s32 1, %s3
  %s6 = scalar_select 0, %s5, %s3
  $region1: #{tpu_custom_call.1} parent=0
    #allocation2 [shape = 'u8[1024]{0}', space=smem, size = 0x400, scoped, tag = 'input window, operand 1, single buffered']
    #allocation3 [shape = 's32[2]{0}', space=sflag, size = 0x8, scoped, tag = 'scoped memory for tpu_custom_call.1']
    #allocation4 [shape = 's32[2]{0}', space=sflag, size = 0x8, scoped, tag = 'scoped memory for tpu_custom_call.1']
    #allocation5 [shape = 'u8[16384]{0}', space=vmem, size = 0x4000, scoped, tag = 'output window, operand 0']
    %7 = vsyncpa [#allocation4], 0
    %8 = vsyncpa [#allocation3], 0
    %s9 = scalar_lea.sflag [#allocation3], 1
    %10 = vsyncpa %s9, 0
    loop: start=0, step=1, limit=4
    $region2: #{tpu_custom_call.1} parent=1 // loop_pre_header
      _
    $region3: #{tpu_custom_call.1} parent=1 // loop_header
      %s12 = sphi 0, %s16
      %p13 = scmp.ge.s32.totalorder %s12, 4
      %s19 = sphi 0, %s38
      %s20 = sphi 0, %s34
      %s21 = sphi 0, %s30
      %s22 = sphi 0, %s19
      %s23 = sphi 0, %s20
      %s24 = sphi 0, %s21
      %s25 = sphi 0, %s22
      %s26 = sphi 0, %s23
      %s27 = sphi 0, %s24
      %s43 = sphi 0, %s45
      %s46 = sphi 0, %s43
      %s47 = sphi 0, %s46
      %s63 = sphi 0, %s47
      %s67 = sphi 0, %s67
      %s69 = sphi 0, %s67
      %s70 = sphi 0, %s69
      %s84 = sphi 0, %s70
      %s94 = sphi 0, %s96
      %s97 = sphi 0, %s94
      %s98 = sphi 0, %s97
      %s114 = sphi 0, %s98
    $region4: #{tpu_custom_call.1} parent=1 // loop_header_branch
      %15 = sbr.rel (%p13) target = $region8
    $region5: #{tpu_custom_call.1} parent=1 // loop_body
      %s17 = ssub.s32 %s12, 1
      %s18 = ssub.s32 %s12, 2
      %s28 = sadd.s32 1, %s21
      %p29 = scmp.ge.s32.totalorder %s28, 1
      %s30 = scalar_select %p29, 0, %s28
      %s31 = sadd.s32 1, %s20
      %s32 = scalar_select %p29, %s31, %s20
      %p33 = scmp.ge.s32.totalorder %s32, 1
      %s34 = scalar_select %p33, 0, %s32
      %s35 = sadd.s32 1, %s19
      %s36 = scalar_select %p33, %s35, %s19
      %p37 = scmp.ge.s32.totalorder %s36, 2
      %s38 = scalar_select %p37, 0, %s36
      %s39 = ssub.s32 %s19, %s38
      %s40 = ssub.s32 %s20, %s34
      %s41 = sor.u32 %s39, %s40
      %p42 = scmp.eq.s32.totalorder %s41, 0
      %s44 = sadd.s32 %s43, 1
      %s45 = scalar_select %p42, %s43, %s44
      %p48 = pneg %p42
      %p49 = scmp.eq.s32.totalorder %s12, 1
      %p50 = por %p48, %p49
      %p51 = scmp.ne.s32.totalorder %s43, %s46
      %p52 = scmp.eq.s32.totalorder %s12, 0
      %p53 = por %p51, %p52
      %p54 = scmp.ne.s32.totalorder %s43, %s46
      %p55 = scmp.eq.s32.totalorder %s17, 1
      %p56 = por %p54, %p55
      %p57 = scmp.ne.s32.totalorder %s46, %s47
      %p58 = scmp.eq.s32.totalorder %s17, 0
      %p59 = por %p57, %p58
      %p60 = scmp.ne.s32.totalorder %s46, %s47
      %p61 = scmp.eq.s32.totalorder %s18, 1
      %p62 = por %p60, %p61
      %p64 = scmp.ne.s32.totalorder %s47, %s63
      %p65 = scmp.eq.s32.totalorder %s18, 0
      %p66 = por %p64, %p65
      %s68 = sadd.s32 %s67, 1
      %p71 = scmp.eq.s32.totalorder %s12, 1
      %p72 = scmp.ne.s32.totalorder %s67, %s69
      %p73 = scmp.eq.s32.totalorder %s12, 0
      %p74 = por %p72, %p73
      %p75 = scmp.ne.s32.totalorder %s67, %s69
      %p76 = scmp.eq.s32.totalorder %s17, 1
      %p77 = por %p75, %p76
      %p78 = scmp.ne.s32.totalorder %s69, %s70
      %p79 = scmp.eq.s32.totalorder %s17, 0
      %p80 = por %p78, %p79
      %p81 = scmp.ne.s32.totalorder %s69, %s70
      %p82 = scmp.eq.s32.totalorder %s18, 1
      %p83 = por %p81, %p82
      %p85 = scmp.ne.s32.totalorder %s70, %s84
      %p86 = scmp.eq.s32.totalorder %s18, 0
      %p87 = por %p85, %p86
      %s88 = ssub.s32 %s19, %s38
      %s89 = ssub.s32 %s20, %s34
      %s90 = sor.u32 %s88, %s89
      %s91 = ssub.s32 %s21, %s30
      %s92 = sor.u32 %s90, %s91
      %p93 = scmp.eq.s32.totalorder %s92, 0
      %s95 = sadd.s32 %s94, 1
      %s96 = scalar_select %p93, %s94, %s95
      %p99 = pneg %p93
      %p100 = scmp.eq.s32.totalorder %s12, 1
      %p101 = por %p99, %p100
      %p102 = scmp.ne.s32.totalorder %s94, %s97
      %p103 = scmp.eq.s32.totalorder %s12, 0
      %p104 = por %p102, %p103
      %p105 = scmp.ne.s32.totalorder %s94, %s97
      %p106 = scmp.eq.s32.totalorder %s17, 1
      %p107 = por %p105, %p106
      %p108 = scmp.ne.s32.totalorder %s97, %s98
      %p109 = scmp.eq.s32.totalorder %s17, 0
      %p110 = por %p108, %p109
      %p111 = scmp.ne.s32.totalorder %s97, %s98
      %p112 = scmp.eq.s32.totalorder %s18, 1
      %p113 = por %p111, %p112
      %p115 = scmp.ne.s32.totalorder %s98, %s114
      %p116 = scmp.eq.s32.totalorder %s18, 0
      %p117 = por %p115, %p116
      %p118 = scmp.le.s32.totalorder 1, %s12
      %p119 = scmp.lt.s32.totalorder %s12, 3
      %p120 = pnand %p118, %p119
      %p121 = pneg %p120
      // Predicated region
      $region9: #{tpu_custom_call.1} parent=5 // pred_check
        _
      $region10: #{tpu_custom_call.1} parent=5 // pred_check_branch
        %123 = sbr.rel (%p120) target = $region12
      $region11: #{tpu_custom_call.1} parent=5 // pred_region
        %s124 = ssub.s32 %s12, 1
        // Predicated region
        $region13: #{tpu_custom_call.1} parent=11 // pred_check
          %p125 = pneg %p80
        $region14: #{tpu_custom_call.1} parent=11 // pred_check_branch
          %127 = sbr.rel (%p125) target = $region16
        $region15: #{tpu_custom_call.1} parent=11 // pred_region
          %s129 = ssub.s32 32, 32
          %130 = vsyncadd [#allocation4], %s129
          %s132 = sshll.u32 %s1, 4
          %s133 = int_to_ptr.vmem [resolvable:$true] %s132
          %135 = dma.vmem_to_smem %s133, 32, [#allocation2], [#allocation4]
        $region16: #{tpu_custom_call.1} parent=11 // pred_fallthru
          _
      $region12: #{tpu_custom_call.1} parent=5 // pred_fallthru
        _
      %p136 = scmp.lt.s32.totalorder %s12, 2
      // Predicated region
      $region17: #{tpu_custom_call.1} parent=5 // pred_check
        %p137 = pneg %p136
      $region18: #{tpu_custom_call.1} parent=5 // pred_check_branch
        %139 = sbr.rel (%p137) target = $region20
      $region19: #{tpu_custom_call.1} parent=5 // pred_region
        // Predicated region
        $region21: #{tpu_custom_call.1} parent=19 // pred_check
          %p140 = pneg %p53
        $region22: #{tpu_custom_call.1} parent=19 // pred_check_branch
          %142 = sbr.rel (%p140) target = $region24
        $region23: #{tpu_custom_call.1} parent=19 // pred_region
          %s143 = smul.u32 4, %s20
          %p144 = scmp.lt.s32.totalorder %s19, 1
          %s145 = scalar_select %p144, %s19, 1
          %p146 = scmp.lt.s32.totalorder %s143, 3
          %s147 = scalar_select %p146, %s143, 3
          %s148 = smul.addr %s147, 3
          %s149 = smul.addr %s145, 12
          %s150 = sadd.s32 %s148, %s149
          %s151 = smul.addr %s150, 8
          %s152 = scalar_lea.vmem %s0, %s151
          %s153 = smul.u32 4, %s20
        $region24: #{tpu_custom_call.1} parent=19 // pred_fallthru
          _
      $region20: #{tpu_custom_call.1} parent=5 // pred_fallthru
        _
      %p154 = scmp.le.s32.totalorder 1, %s12
      %p155 = scmp.lt.s32.totalorder %s12, 3
      %p156 = pnand %p154, %p155
      %p157 = pneg %p156
      // Predicated region
      $region25: #{tpu_custom_call.1} parent=5 // pred_check
        _
      $region26: #{tpu_custom_call.1} parent=5 // pred_check_branch
        %159 = sbr.rel (%p156) target = $region28
      $region27: #{tpu_custom_call.1} parent=5 // pred_region
        %s160 = ssub.s32 %s12, 1
        // Predicated region
        $region29: #{tpu_custom_call.1} parent=27 // pred_check
          %p161 = pneg %p80
        $region30: #{tpu_custom_call.1} parent=27 // pred_check_branch
          %163 = sbr.rel (%p161) target = $region32
        $region31: #{tpu_custom_call.1} parent=27 // pred_region
          %164 = dma.done [#allocation4], 32
        $region32: #{tpu_custom_call.1} parent=27 // pred_fallthru
          _
        %165 = sfence
        %s166 = smul.u32 4, %s23
        %p167 = scmp.lt.s32.totalorder %s22, 1
        %s168 = scalar_select %p167, %s22, 1
        %p169 = scmp.lt.s32.totalorder %s166, 3
        %s170 = scalar_select %p169, %s166, 3
        %s171 = smul.addr %s170, 3
        %s172 = smul.addr %s168, 12
        %s173 = sadd.s32 %s171, %s172
        %s174 = smul.addr %s173, 8
        %s175 = scalar_lea.vmem %s0, %s174
        %p176 = pneg %p59
        %p177 = pneg %p56
        %p178 = pneg %p80
        %p179 = pneg %p77
        %p180 = pneg %p110
        %p181 = pneg %p107
        %s182 = sand.u32 %s97, 1
        %s183 = scalar_lea.sflag [#allocation3], %s182
        %s184 = sand.u32 %s97, 1
        %s185 = smul.addr %s184, 16
        %s186 = scalar_lea.vmem [#allocation5], %s185
        %s187 = smul.u32 4, %s23
        %p188 = scmp.lt.s32.totalorder %s22, 1
        %s189 = scalar_select %p188, %s22, 1
        %p190 = scmp.lt.s32.totalorder %s187, 3
        %s191 = scalar_select %p190, %s187, 3
        %s192 = smul.addr %s191, 3
        %s193 = smul.addr %s189, 12
        %s194 = sadd.s32 %s192, %s193
        %s195 = smul.addr %s194, 8
        %s196 = scalar_lea.vmem %s0, %s195
        %s197 = smul.u32 4, %s23
        %s198 = smul.u32 2, %s24
        %s199 = smul.u32 %s23, 192
        %v200 = vld [vmem:[%s196] sm:$0xff]
        %v201 = vld [vmem:[%s196 + $0x8] sm:$0xff]
        %v202 = vld [vmem:[%s196 + $0x18] sm:$0xff]
        %v203 = vld [vmem:[%s196 + $0x20] sm:$0xff]
        %v204 = vld [vmem:[%s196 + $0x30] sm:$0xff]
        %v205 = vld [vmem:[%s196 + $0x38] sm:$0xff]
        %v206 = vld [vmem:[%s196 + $0x48] sm:$0xff]
        %v207 = vld [vmem:[%s196 + $0x50] sm:$0xff]
        %s208 = sld [smem:[#allocation2 + %s199]]
        %v209 = vstv %s208
        %v210 = vmul.f32 %v209, %v200
        %v211 = vmul.f32 %v209, %v201
        %v212 = vadd.f32 %v210, 0.0
        %v213 = vadd.f32 %v211, 0.0
        %s214 = sadd.s32 %s199, 24
        %s215 = sld [smem:[#allocation2 + %s214]]
        %v216 = vstv %s215
        %v217 = vmul.f32 %v216, %v200
        %v218 = vmul.f32 %v216, %v201
        %v219 = vadd.f32 %v217, 0.0
        %v220 = vadd.f32 %v218, 0.0
        %s221 = sadd.s32 %s199, 48
        %s222 = sld [smem:[#allocation2 + %s221]]
        %v223 = vstv %s222
        %v224 = vmul.f32 %v223, %v200
        %v225 = vmul.f32 %v223, %v201
        %v226 = vadd.f32 %v224, 0.0
        %v227 = vadd.f32 %v225, 0.0
        %s228 = sadd.s32 %s199, 72
        %s229 = sld [smem:[#allocation2 + %s228]]
        %v230 = vstv %s229
        %v231 = vmul.f32 %v230, %v200
        %v232 = vmul.f32 %v230, %v201
        %v233 = vadd.f32 %v231, 0.0
        %v234 = vadd.f32 %v232, 0.0
        %s235 = sadd.s32 %s199, 96
        %s236 = sld [smem:[#allocation2 + %s235]]
        %v237 = vstv %s236
        %v238 = vmul.f32 %v237, %v200
        %v239 = vmul.f32 %v237, %v201
        %v240 = vadd.f32 %v238, 0.0
        %v241 = vadd.f32 %v239, 0.0
        %s242 = sadd.s32 %s199, 120
        %s243 = sld [smem:[#allocation2 + %s242]]
        %v244 = vstv %s243
        %v245 = vmul.f32 %v244, %v200
        %v246 = vmul.f32 %v244, %v201
        %v247 = vadd.f32 %v245, 0.0
        %v248 = vadd.f32 %v246, 0.0
        %s249 = sadd.s32 %s199, 144
        %s250 = sld [smem:[#allocation2 + %s249]]
        %v251 = vstv %s250
        %v252 = vmul.f32 %v251, %v200
        %v253 = vmul.f32 %v251, %v201
        %v254 = vadd.f32 %v252, 0.0
        %v255 = vadd.f32 %v253, 0.0
        %s256 = sadd.s32 %s199, 168
        %s257 = sld [smem:[#allocation2 + %s256]]
        %v258 = vstv %s257
        %v259 = vmul.f32 %v258, %v200
        %v260 = vmul.f32 %v258, %v201
        %v261 = vadd.f32 %v259, 0.0
        %v262 = vadd.f32 %v260, 0.0
        %s263 = sadd.s32 %s199, 6
        %s264 = sld [smem:[#allocation2 + %s263]]
        %v265 = vstv %s264
        %v266 = vmul.f32 %v265, %v202
        %v267 = vmul.f32 %v265, %v203
        %v268 = vadd.f32 %v212, %v266
        %v269 = vadd.f32 %v213, %v267
        %s270 = sadd.s32 %s199, 30
        %s271 = sld [smem:[#allocation2 + %s270]]
        %v272 = vstv %s271
        %v273 = vmul.f32 %v272, %v202
        %v274 = vmul.f32 %v272, %v203
        %v275 = vadd.f32 %v219, %v273
        %v276 = vadd.f32 %v220, %v274
        %s277 = sadd.s32 %s199, 54
        %s278 = sld [smem:[#allocation2 + %s277]]
        %v279 = vstv %s278
        %v280 = vmul.f32 %v279, %v202
        %v281 = vmul.f32 %v279, %v203
        %v282 = vadd.f32 %v226, %v280
        %v283 = vadd.f32 %v227, %v281
        %s284 = sadd.s32 %s199, 78
        %s285 = sld [smem:[#allocation2 + %s284]]
        %v286 = vstv %s285
        %v287 = vmul.f32 %v286, %v202
        %v288 = vmul.f32 %v286, %v203
        %v289 = vadd.f32 %v233, %v287
        %v290 = vadd.f32 %v234, %v288
        %s291 = sadd.s32 %s199, 102
        %s292 = sld [smem:[#allocation2 + %s291]]
        %v293 = vstv %s292
        %v294 = vmul.f32 %v293, %v202
        %v295 = vmul.f32 %v293, %v203
        %v296 = vadd.f32 %v240, %v294
        %v297 = vadd.f32 %v241, %v295
        %s298 = sadd.s32 %s199, 126
        %s299 = sld [smem:[#allocation2 + %s298]]
        %v300 = vstv %s299
        %v301 = vmul.f32 %v300, %v202
        %v302 = vmul.f32 %v300, %v203
        %v303 = vadd.f32 %v247, %v301
        %v304 = vadd.f32 %v248, %v302
        %s305 = sadd.s32 %s199, 150
        %s306 = sld [smem:[#allocation2 + %s305]]
        %v307 = vstv %s306
        %v308 = vmul.f32 %v307, %v202
        %v309 = vmul.f32 %v307, %v203
        %v310 = vadd.f32 %v254, %v308
        %v311 = vadd.f32 %v255, %v309
        %s312 = sadd.s32 %s199, 174
        %s313 = sld [smem:[#allocation2 + %s312]]
        %v314 = vstv %s313
        %v315 = vmul.f32 %v314, %v202
        %v316 = vmul.f32 %v314, %v203
        %v317 = vadd.f32 %v261, %v315
        %v318 = vadd.f32 %v262, %v316
        %s319 = sadd.s32 %s199, 12
        %s320 = sld [smem:[#allocation2 + %s319]]
        %v321 = vstv %s320
        %v322 = vmul.f32 %v321, %v204
        %v323 = vmul.f32 %v321, %v205
        %v324 = vadd.f32 %v268, %v322
        %v325 = vadd.f32 %v269, %v323
        %s326 = sadd.s32 %s199, 36
        %s327 = sld [smem:[#allocation2 + %s326]]
        %v328 = vstv %s327
        %v329 = vmul.f32 %v328, %v204
        %v330 = vmul.f32 %v328, %v205
        %v331 = vadd.f32 %v275, %v329
        %v332 = vadd.f32 %v276, %v330
        %s333 = sadd.s32 %s199, 60
        %s334 = sld [smem:[#allocation2 + %s333]]
        %v335 = vstv %s334
        %v336 = vmul.f32 %v335, %v204
        %v337 = vmul.f32 %v335, %v205
        %v338 = vadd.f32 %v282, %v336
        %v339 = vadd.f32 %v283, %v337
        %s340 = sadd.s32 %s199, 84
        %s341 = sld [smem:[#allocation2 + %s340]]
        %v342 = vstv %s341
        %v343 = vmul.f32 %v342, %v204
        %v344 = vmul.f32 %v342, %v205
        %v345 = vadd.f32 %v289, %v343
        %v346 = vadd.f32 %v290, %v344
        %s347 = sadd.s32 %s199, 108
        %s348 = sld [smem:[#allocation2 + %s347]]
        %v349 = vstv %s348
        %v350 = vmul.f32 %v349, %v204
        %v351 = vmul.f32 %v349, %v205
        %v352 = vadd.f32 %v296, %v350
        %v353 = vadd.f32 %v297, %v351
        %s354 = sadd.s32 %s199, 132
        %s355 = sld [smem:[#allocation2 + %s354]]
        %v356 = vstv %s355
        %v357 = vmul.f32 %v356, %v204
        %v358 = vmul.f32 %v356, %v205
        %v359 = vadd.f32 %v303, %v357
        %v360 = vadd.f32 %v304, %v358
        %s361 = sadd.s32 %s199, 156
        %s362 = sld [smem:[#allocation2 + %s361]]
        %v363 = vstv %s362
        %v364 = vmul.f32 %v363, %v204
        %v365 = vmul.f32 %v363, %v205
        %v366 = vadd.f32 %v310, %v364
        %v367 = vadd.f32 %v311, %v365
        %s368 = sadd.s32 %s199, 180
        %s369 = sld [smem:[#allocation2 + %s368]]
        %v370 = vstv %s369
        %v371 = vmul.f32 %v370, %v204
        %v372 = vmul.f32 %v370, %v205
        %v373 = vadd.f32 %v317, %v371
        %v374 = vadd.f32 %v318, %v372
        %s375 = sadd.s32 %s199, 18
        %s376 = sld [smem:[#allocation2 + %s375]]
        %v377 = vstv %s376
        %v378 = vmul.f32 %v377, %v206
        %v379 = vmul.f32 %v377, %v207
        %v380 = vadd.f32 %v324, %v378
        %v381 = vadd.f32 %v325, %v379
        %s382 = sadd.s32 %s199, 42
        %s383 = sld [smem:[#allocation2 + %s382]]
        %v384 = vstv %s383
        %v385 = vmul.f32 %v384, %v206
        %v386 = vmul.f32 %v384, %v207
        %v387 = vadd.f32 %v331, %v385
        %v388 = vadd.f32 %v332, %v386
        %s389 = sadd.s32 %s199, 66
        %s390 = sld [smem:[#allocation2 + %s389]]
        %v391 = vstv %s390
        %v392 = vmul.f32 %v391, %v206
        %v393 = vmul.f32 %v391, %v207
        %v394 = vadd.f32 %v338, %v392
        %v395 = vadd.f32 %v339, %v393
        %s396 = sadd.s32 %s199, 90
        %s397 = sld [smem:[#allocation2 + %s396]]
        %v398 = vstv %s397
        %v399 = vmul.f32 %v398, %v206
        %v400 = vmul.f32 %v398, %v207
        %v401 = vadd.f32 %v345, %v399
        %v402 = vadd.f32 %v346, %v400
        %s403 = sadd.s32 %s199, 114
        %s404 = sld [smem:[#allocation2 + %s403]]
        %v405 = vstv %s404
        %v406 = vmul.f32 %v405, %v206
        %v407 = vmul.f32 %v405, %v207
        %v408 = vadd.f32 %v352, %v406
        %v409 = vadd.f32 %v353, %v407
        %s410 = sadd.s32 %s199, 138
        %s411 = sld [smem:[#allocation2 + %s410]]
        %v412 = vstv %s411
        %v413 = vmul.f32 %v412, %v206
        %v414 = vmul.f32 %v412, %v207
        %v415 = vadd.f32 %v359, %v413
        %v416 = vadd.f32 %v360, %v414
        %s417 = sadd.s32 %s199, 162
        %s418 = sld [smem:[#allocation2 + %s417]]
        %v419 = vstv %s418
        %v420 = vmul.f32 %v419, %v206
        %v421 = vmul.f32 %v419, %v207
        %v422 = vadd.f32 %v366, %v420
        %v423 = vadd.f32 %v367, %v421
        %s424 = sadd.s32 %s199, 186
        %s425 = sld [smem:[#allocation2 + %s424]]
        %v426 = vstv %s425
        %v427 = vmul.f32 %v426, %v206
        %v428 = vmul.f32 %v426, %v207
        %v429 = vadd.f32 %v373, %v427
        %v430 = vadd.f32 %v374, %v428
        %s431 = sadd.s32 %s199, 1
        %s432 = sld [smem:[#allocation2 + %s431]]
        %v433 = vstv %s432
        %v434 = vmul.f32 %v433, %v200
        %v435 = vmul.f32 %v433, %v201
        %438 = vrot.lane.b32.xlu0 %v434, 127
        %v439 = vpop.permute.xlu0 %438
        %440 = vrot.lane.b32.xlu0 %v435, 127
        %v441 = vpop.permute.xlu0 %440
        %v444 = vadd.f32 %v380, %v439
        %v445 = vadd.f32 %v381, %v441
        %s446 = sadd.s32 %s199, 25
        %s447 = sld [smem:[#allocation2 + %s446]]
        %v448 = vstv %s447
        %v449 = vmul.f32 %v448, %v200
        %v450 = vmul.f32 %v448, %v201
        %453 = vrot.lane.b32.xlu0 %v449, 127
        %v454 = vpop.permute.xlu0 %453
        %455 = vrot.lane.b32.xlu0 %v450, 127
        %v456 = vpop.permute.xlu0 %455
        %v459 = vadd.f32 %v387, %v454
        %v460 = vadd.f32 %v388, %v456
        %s461 = sadd.s32 %s199, 49
        %s462 = sld [smem:[#allocation2 + %s461]]
        %v463 = vstv %s462
        %v464 = vmul.f32 %v463, %v200
        %v465 = vmul.f32 %v463, %v201
        %468 = vrot.lane.b32.xlu0 %v464, 127
        %v469 = vpop.permute.xlu0 %468
        %470 = vrot.lane.b32.xlu0 %v465, 127
        %v471 = vpop.permute.xlu0 %470
        %v474 = vadd.f32 %v394, %v469
        %v475 = vadd.f32 %v395, %v471
        %s476 = sadd.s32 %s199, 73
        %s477 = sld [smem:[#allocation2 + %s476]]
        %v478 = vstv %s477
        %v479 = vmul.f32 %v478, %v200
        %v480 = vmul.f32 %v478, %v201
        %483 = vrot.lane.b32.xlu0 %v479, 127
        %v484 = vpop.permute.xlu0 %483
        %485 = vrot.lane.b32.xlu0 %v480, 127
        %v486 = vpop.permute.xlu0 %485
        %v489 = vadd.f32 %v401, %v484
        %v490 = vadd.f32 %v402, %v486
        %s491 = sadd.s32 %s199, 97
        %s492 = sld [smem:[#allocation2 + %s491]]
        %v493 = vstv %s492
        %v494 = vmul.f32 %v493, %v200
        %v495 = vmul.f32 %v493, %v201
        %498 = vrot.lane.b32.xlu0 %v494, 127
        %v499 = vpop.permute.xlu0 %498
        %500 = vrot.lane.b32.xlu0 %v495, 127
        %v501 = vpop.permute.xlu0 %500
        %v504 = vadd.f32 %v408, %v499
        %v505 = vadd.f32 %v409, %v501
        %s506 = sadd.s32 %s199, 121
        %s507 = sld [smem:[#allocation2 + %s506]]
        %v508 = vstv %s507
        %v509 = vmul.f32 %v508, %v200
        %v510 = vmul.f32 %v508, %v201
        %513 = vrot.lane.b32.xlu0 %v509, 127
        %v514 = vpop.permute.xlu0 %513
        %515 = vrot.lane.b32.xlu0 %v510, 127
        %v516 = vpop.permute.xlu0 %515
        %v519 = vadd.f32 %v415, %v514
        %v520 = vadd.f32 %v416, %v516
        %s521 = sadd.s32 %s199, 145
        %s522 = sld [smem:[#allocation2 + %s521]]
        %v523 = vstv %s522
        %v524 = vmul.f32 %v523, %v200
        %v525 = vmul.f32 %v523, %v201
        %528 = vrot.lane.b32.xlu0 %v524, 127
        %v529 = vpop.permute.xlu0 %528
        %530 = vrot.lane.b32.xlu0 %v525, 127
        %v531 = vpop.permute.xlu0 %530
        %v534 = vadd.f32 %v422, %v529
        %v535 = vadd.f32 %v423, %v531
        %s536 = sadd.s32 %s199, 169
        %s537 = sld [smem:[#allocation2 + %s536]]
        %v538 = vstv %s537
        %v539 = vmul.f32 %v538, %v200
        %v540 = vmul.f32 %v538, %v201
        %543 = vrot.lane.b32.xlu0 %v539, 127
        %v544 = vpop.permute.xlu0 %543
        %545 = vrot.lane.b32.xlu0 %v540, 127
        %v546 = vpop.permute.xlu0 %545
        %v549 = vadd.f32 %v429, %v544
        %v550 = vadd.f32 %v430, %v546
        %s551 = sadd.s32 %s199, 7
        %s552 = sld [smem:[#allocation2 + %s551]]
        %v553 = vstv %s552
        %v554 = vmul.f32 %v553, %v202
        %v555 = vmul.f32 %v553, %v203
        %558 = vrot.lane.b32.xlu0 %v554, 127
        %v559 = vpop.permute.xlu0 %558
        %560 = vrot.lane.b32.xlu0 %v555, 127
        %v561 = vpop.permute.xlu0 %560
        %v564 = vadd.f32 %v444, %v559
        %v565 = vadd.f32 %v445, %v561
        %s566 = sadd.s32 %s199, 31
        %s567 = sld [smem:[#allocation2 + %s566]]
        %v568 = vstv %s567
        %v569 = vmul.f32 %v568, %v202
        %v570 = vmul.f32 %v568, %v203
        %573 = vrot.lane.b32.xlu0 %v569, 127
        %v574 = vpop.permute.xlu0 %573
        %575 = vrot.lane.b32.xlu0 %v570, 127
        %v576 = vpop.permute.xlu0 %575
        %v579 = vadd.f32 %v459, %v574
        %v580 = vadd.f32 %v460, %v576
        %s581 = sadd.s32 %s199, 55
        %s582 = sld [smem:[#allocation2 + %s581]]
        %v583 = vstv %s582
        %v584 = vmul.f32 %v583, %v202
        %v585 = vmul.f32 %v583, %v203
        %588 = vrot.lane.b32.xlu0 %v584, 127
        %v589 = vpop.permute.xlu0 %588
        %590 = vrot.lane.b32.xlu0 %v585, 127
        %v591 = vpop.permute.xlu0 %590
        %v594 = vadd.f32 %v474, %v589
        %v595 = vadd.f32 %v475, %v591
        %s596 = sadd.s32 %s199, 79
        %s597 = sld [smem:[#allocation2 + %s596]]
        %v598 = vstv %s597
        %v599 = vmul.f32 %v598, %v202
        %v600 = vmul.f32 %v598, %v203
        %603 = vrot.lane.b32.xlu0 %v599, 127
        %v604 = vpop.permute.xlu0 %603
        %605 = vrot.lane.b32.xlu0 %v600, 127
        %v606 = vpop.permute.xlu0 %605
        %v609 = vadd.f32 %v489, %v604
        %v610 = vadd.f32 %v490, %v606
        %s611 = sadd.s32 %s199, 103
        %s612 = sld [smem:[#allocation2 + %s611]]
        %v613 = vstv %s612
        %v614 = vmul.f32 %v613, %v202
        %v615 = vmul.f32 %v613, %v203
        %618 = vrot.lane.b32.xlu0 %v614, 127
        %v619 = vpop.permute.xlu0 %618
        %620 = vrot.lane.b32.xlu0 %v615, 127
        %v621 = vpop.permute.xlu0 %620
        %v624 = vadd.f32 %v504, %v619
        %v625 = vadd.f32 %v505, %v621
        %s626 = sadd.s32 %s199, 127
        %s627 = sld [smem:[#allocation2 + %s626]]
        %v628 = vstv %s627
        %v629 = vmul.f32 %v628, %v202
        %v630 = vmul.f32 %v628, %v203
        %633 = vrot.lane.b32.xlu0 %v629, 127
        %v634 = vpop.permute.xlu0 %633
        %635 = vrot.lane.b32.xlu0 %v630, 127
        %v636 = vpop.permute.xlu0 %635
        %v639 = vadd.f32 %v519, %v634
        %v640 = vadd.f32 %v520, %v636
        %s641 = sadd.s32 %s199, 151
        %s642 = sld [smem:[#allocation2 + %s641]]
        %v643 = vstv %s642
        %v644 = vmul.f32 %v643, %v202
        %v645 = vmul.f32 %v643, %v203
        %648 = vrot.lane.b32.xlu0 %v644, 127
        %v649 = vpop.permute.xlu0 %648
        %650 = vrot.lane.b32.xlu0 %v645, 127
        %v651 = vpop.permute.xlu0 %650
        %v654 = vadd.f32 %v534, %v649
        %v655 = vadd.f32 %v535, %v651
        %s656 = sadd.s32 %s199, 175
        %s657 = sld [smem:[#allocation2 + %s656]]
        %v658 = vstv %s657
        %v659 = vmul.f32 %v658, %v202
        %v660 = vmul.f32 %v658, %v203
        %663 = vrot.lane.b32.xlu0 %v659, 127
        %v664 = vpop.permute.xlu0 %663
        %665 = vrot.lane.b32.xlu0 %v660, 127
        %v666 = vpop.permute.xlu0 %665
        %v669 = vadd.f32 %v549, %v664
        %v670 = vadd.f32 %v550, %v666
        %s671 = sadd.s32 %s199, 13
        %s672 = sld [smem:[#allocation2 + %s671]]
        %v673 = vstv %s672
        %v674 = vmul.f32 %v673, %v204
        %v675 = vmul.f32 %v673, %v205
        %678 = vrot.lane.b32.xlu0 %v674, 127
        %v679 = vpop.permute.xlu0 %678
        %680 = vrot.lane.b32.xlu0 %v675, 127
        %v681 = vpop.permute.xlu0 %680
        %v684 = vadd.f32 %v564, %v679
        %v685 = vadd.f32 %v565, %v681
        %s686 = sadd.s32 %s199, 37
        %s687 = sld [smem:[#allocation2 + %s686]]
        %v688 = vstv %s687
        %v689 = vmul.f32 %v688, %v204
        %v690 = vmul.f32 %v688, %v205
        %693 = vrot.lane.b32.xlu0 %v689, 127
        %v694 = vpop.permute.xlu0 %693
        %695 = vrot.lane.b32.xlu0 %v690, 127
        %v696 = vpop.permute.xlu0 %695
        %v699 = vadd.f32 %v579, %v694
        %v700 = vadd.f32 %v580, %v696
        %s701 = sadd.s32 %s199, 61
        %s702 = sld [smem:[#allocation2 + %s701]]
        %v703 = vstv %s702
        %v704 = vmul.f32 %v703, %v204
        %v705 = vmul.f32 %v703, %v205
        %708 = vrot.lane.b32.xlu0 %v704, 127
        %v709 = vpop.permute.xlu0 %708
        %710 = vrot.lane.b32.xlu0 %v705, 127
        %v711 = vpop.permute.xlu0 %710
        %v714 = vadd.f32 %v594, %v709
        %v715 = vadd.f32 %v595, %v711
        %s716 = sadd.s32 %s199, 85
        %s717 = sld [smem:[#allocation2 + %s716]]
        %v718 = vstv %s717
        %v719 = vmul.f32 %v718, %v204
        %v720 = vmul.f32 %v718, %v205
        %723 = vrot.lane.b32.xlu0 %v719, 127
        %v724 = vpop.permute.xlu0 %723
        %725 = vrot.lane.b32.xlu0 %v720, 127
        %v726 = vpop.permute.xlu0 %725
        %v729 = vadd.f32 %v609, %v724
        %v730 = vadd.f32 %v610, %v726
        %s731 = sadd.s32 %s199, 109
        %s732 = sld [smem:[#allocation2 + %s731]]
        %v733 = vstv %s732
        %v734 = vmul.f32 %v733, %v204
        %v735 = vmul.f32 %v733, %v205
        %738 = vrot.lane.b32.xlu0 %v734, 127
        %v739 = vpop.permute.xlu0 %738
        %740 = vrot.lane.b32.xlu0 %v735, 127
        %v741 = vpop.permute.xlu0 %740
        %v744 = vadd.f32 %v624, %v739
        %v745 = vadd.f32 %v625, %v741
        %s746 = sadd.s32 %s199, 133
        %s747 = sld [smem:[#allocation2 + %s746]]
        %v748 = vstv %s747
        %v749 = vmul.f32 %v748, %v204
        %v750 = vmul.f32 %v748, %v205
        %753 = vrot.lane.b32.xlu0 %v749, 127
        %v754 = vpop.permute.xlu0 %753
        %755 = vrot.lane.b32.xlu0 %v750, 127
        %v756 = vpop.permute.xlu0 %755
        %v759 = vadd.f32 %v639, %v754
        %v760 = vadd.f32 %v640, %v756
        %s761 = sadd.s32 %s199, 157
        %s762 = sld [smem:[#allocation2 + %s761]]
        %v763 = vstv %s762
        %v764 = vmul.f32 %v763, %v204
        %v765 = vmul.f32 %v763, %v205
        %768 = vrot.lane.b32.xlu0 %v764, 127
        %v769 = vpop.permute.xlu0 %768
        %770 = vrot.lane.b32.xlu0 %v765, 127
        %v771 = vpop.permute.xlu0 %770
        %v774 = vadd.f32 %v654, %v769
        %v775 = vadd.f32 %v655, %v771
        %s776 = sadd.s32 %s199, 181
        %s777 = sld [smem:[#allocation2 + %s776]]
        %v778 = vstv %s777
        %v779 = vmul.f32 %v778, %v204
        %v780 = vmul.f32 %v778, %v205
        %783 = vrot.lane.b32.xlu0 %v779, 127
        %v784 = vpop.permute.xlu0 %783
        %785 = vrot.lane.b32.xlu0 %v780, 127
        %v786 = vpop.permute.xlu0 %785
        %v789 = vadd.f32 %v669, %v784
        %v790 = vadd.f32 %v670, %v786
        %s791 = sadd.s32 %s199, 19
        %s792 = sld [smem:[#allocation2 + %s791]]
        %v793 = vstv %s792
        %v794 = vmul.f32 %v793, %v206
        %v795 = vmul.f32 %v793, %v207
        %798 = vrot.lane.b32.xlu0 %v794, 127
        %v799 = vpop.permute.xlu0 %798
        %800 = vrot.lane.b32.xlu0 %v795, 127
        %v801 = vpop.permute.xlu0 %800
        %v804 = vadd.f32 %v684, %v799
        %v805 = vadd.f32 %v685, %v801
        %s806 = sadd.s32 %s199, 43
        %s807 = sld [smem:[#allocation2 + %s806]]
        %v808 = vstv %s807
        %v809 = vmul.f32 %v808, %v206
        %v810 = vmul.f32 %v808, %v207
        %813 = vrot.lane.b32.xlu0 %v809, 127
        %v814 = vpop.permute.xlu0 %813
        %815 = vrot.lane.b32.xlu0 %v810, 127
        %v816 = vpop.permute.xlu0 %815
        %v819 = vadd.f32 %v699, %v814
        %v820 = vadd.f32 %v700, %v816
        %s821 = sadd.s32 %s199, 67
        %s822 = sld [smem:[#allocation2 + %s821]]
        %v823 = vstv %s822
        %v824 = vmul.f32 %v823, %v206
        %v825 = vmul.f32 %v823, %v207
        %828 = vrot.lane.b32.xlu0 %v824, 127
        %v829 = vpop.permute.xlu0 %828
        %830 = vrot.lane.b32.xlu0 %v825, 127
        %v831 = vpop.permute.xlu0 %830
        %v834 = vadd.f32 %v714, %v829
        %v835 = vadd.f32 %v715, %v831
        %s836 = sadd.s32 %s199, 91
        %s837 = sld [smem:[#allocation2 + %s836]]
        %v838 = vstv %s837
        %v839 = vmul.f32 %v838, %v206
        %v840 = vmul.f32 %v838, %v207
        %843 = vrot.lane.b32.xlu0 %v839, 127
        %v844 = vpop.permute.xlu0 %843
        %845 = vrot.lane.b32.xlu0 %v840, 127
        %v846 = vpop.permute.xlu0 %845
        %v849 = vadd.f32 %v729, %v844
        %v850 = vadd.f32 %v730, %v846
        %s851 = sadd.s32 %s199, 115
        %s852 = sld [smem:[#allocation2 + %s851]]
        %v853 = vstv %s852
        %v854 = vmul.f32 %v853, %v206
        %v855 = vmul.f32 %v853, %v207
        %858 = vrot.lane.b32.xlu0 %v854, 127
        %v859 = vpop.permute.xlu0 %858
        %860 = vrot.lane.b32.xlu0 %v855, 127
        %v861 = vpop.permute.xlu0 %860
        %v864 = vadd.f32 %v744, %v859
        %v865 = vadd.f32 %v745, %v861
        %s866 = sadd.s32 %s199, 139
        %s867 = sld [smem:[#allocation2 + %s866]]
        %v868 = vstv %s867
        %v869 = vmul.f32 %v868, %v206
        %v870 = vmul.f32 %v868, %v207
        %873 = vrot.lane.b32.xlu0 %v869, 127
        %v874 = vpop.permute.xlu0 %873
        %875 = vrot.lane.b32.xlu0 %v870, 127
        %v876 = vpop.permute.xlu0 %875
        %v879 = vadd.f32 %v759, %v874
        %v880 = vadd.f32 %v760, %v876
        %s881 = sadd.s32 %s199, 163
        %s882 = sld [smem:[#allocation2 + %s881]]
        %v883 = vstv %s882
        %v884 = vmul.f32 %v883, %v206
        %v885 = vmul.f32 %v883, %v207
        %888 = vrot.lane.b32.xlu0 %v884, 127
        %v889 = vpop.permute.xlu0 %888
        %890 = vrot.lane.b32.xlu0 %v885, 127
        %v891 = vpop.permute.xlu0 %890
        %v894 = vadd.f32 %v774, %v889
        %v895 = vadd.f32 %v775, %v891
        %s896 = sadd.s32 %s199, 187
        %s897 = sld [smem:[#allocation2 + %s896]]
        %v898 = vstv %s897
        %v899 = vmul.f32 %v898, %v206
        %v900 = vmul.f32 %v898, %v207
        %903 = vrot.lane.b32.xlu0 %v899, 127
        %v904 = vpop.permute.xlu0 %903
        %905 = vrot.lane.b32.xlu0 %v900, 127
        %v906 = vpop.permute.xlu0 %905
        %v909 = vadd.f32 %v789, %v904
        %v910 = vadd.f32 %v790, %v906
        %s911 = sadd.s32 %s199, 2
        %s912 = sld [smem:[#allocation2 + %s911]]
        %v913 = vstv %s912
        %v914 = vmul.f32 %v913, %v200
        %v915 = vmul.f32 %v913, %v201
        %918 = vrot.lane.b32.xlu0 %v914, 126
        %v919 = vpop.permute.xlu0 %918
        %920 = vrot.lane.b32.xlu0 %v915, 126
        %v921 = vpop.permute.xlu0 %920
        %v924 = vadd.f32 %v804, %v919
        %v925 = vadd.f32 %v805, %v921
        %s926 = sadd.s32 %s199, 26
        %s927 = sld [smem:[#allocation2 + %s926]]
        %v928 = vstv %s927
        %v929 = vmul.f32 %v928, %v200
        %v930 = vmul.f32 %v928, %v201
        %933 = vrot.lane.b32.xlu0 %v929, 126
        %v934 = vpop.permute.xlu0 %933
        %935 = vrot.lane.b32.xlu0 %v930, 126
        %v936 = vpop.permute.xlu0 %935
        %v939 = vadd.f32 %v819, %v934
        %v940 = vadd.f32 %v820, %v936
        %s941 = sadd.s32 %s199, 50
        %s942 = sld [smem:[#allocation2 + %s941]]
        %v943 = vstv %s942
        %v944 = vmul.f32 %v943, %v200
        %v945 = vmul.f32 %v943, %v201
        %948 = vrot.lane.b32.xlu0 %v944, 126
        %v949 = vpop.permute.xlu0 %948
        %950 = vrot.lane.b32.xlu0 %v945, 126
        %v951 = vpop.permute.xlu0 %950
        %v954 = vadd.f32 %v834, %v949
        %v955 = vadd.f32 %v835, %v951
        %s956 = sadd.s32 %s199, 74
        %s957 = sld [smem:[#allocation2 + %s956]]
        %v958 = vstv %s957
        %v959 = vmul.f32 %v958, %v200
        %v960 = vmul.f32 %v958, %v201
        %963 = vrot.lane.b32.xlu0 %v959, 126
        %v964 = vpop.permute.xlu0 %963
        %965 = vrot.lane.b32.xlu0 %v960, 126
        %v966 = vpop.permute.xlu0 %965
        %v969 = vadd.f32 %v849, %v964
        %v970 = vadd.f32 %v850, %v966
        %s971 = sadd.s32 %s199, 98
        %s972 = sld [smem:[#allocation2 + %s971]]
        %v973 = vstv %s972
        %v974 = vmul.f32 %v973, %v200
        %v975 = vmul.f32 %v973, %v201
        %978 = vrot.lane.b32.xlu0 %v974, 126
        %v979 = vpop.permute.xlu0 %978
        %980 = vrot.lane.b32.xlu0 %v975, 126
        %v981 = vpop.permute.xlu0 %980
        %v984 = vadd.f32 %v864, %v979
        %v985 = vadd.f32 %v865, %v981
        %s986 = sadd.s32 %s199, 122
        %s987 = sld [smem:[#allocation2 + %s986]]
        %v988 = vstv %s987
        %v989 = vmul.f32 %v988, %v200
        %v990 = vmul.f32 %v988, %v201
        %993 = vrot.lane.b32.xlu0 %v989, 126
        %v994 = vpop.permute.xlu0 %993
        %995 = vrot.lane.b32.xlu0 %v990, 126
        %v996 = vpop.permute.xlu0 %995
        %v999 = vadd.f32 %v879, %v994
        %v1000 = vadd.f32 %v880, %v996
        %s1001 = sadd.s32 %s199, 146
        %s1002 = sld [smem:[#allocation2 + %s1001]]
        %v1003 = vstv %s1002
        %v1004 = vmul.f32 %v1003, %v200
        %v1005 = vmul.f32 %v1003, %v201
        %1008 = vrot.lane.b32.xlu0 %v1004, 126
        %v1009 = vpop.permute.xlu0 %1008
        %1010 = vrot.lane.b32.xlu0 %v1005, 126
        %v1011 = vpop.permute.xlu0 %1010
        %v1014 = vadd.f32 %v894, %v1009
        %v1015 = vadd.f32 %v895, %v1011
        %s1016 = sadd.s32 %s199, 170
        %s1017 = sld [smem:[#allocation2 + %s1016]]
        %v1018 = vstv %s1017
        %v1019 = vmul.f32 %v1018, %v200
        %v1020 = vmul.f32 %v1018, %v201
        %1023 = vrot.lane.b32.xlu0 %v1019, 126
        %v1024 = vpop.permute.xlu0 %1023
        %1025 = vrot.lane.b32.xlu0 %v1020, 126
        %v1026 = vpop.permute.xlu0 %1025
        %v1029 = vadd.f32 %v909, %v1024
        %v1030 = vadd.f32 %v910, %v1026
        %s1031 = sadd.s32 %s199, 8
        %s1032 = sld [smem:[#allocation2 + %s1031]]
        %v1033 = vstv %s1032
        %v1034 = vmul.f32 %v1033, %v202
        %v1035 = vmul.f32 %v1033, %v203
        %1038 = vrot.lane.b32.xlu0 %v1034, 126
        %v1039 = vpop.permute.xlu0 %1038
        %1040 = vrot.lane.b32.xlu0 %v1035, 126
        %v1041 = vpop.permute.xlu0 %1040
        %v1044 = vadd.f32 %v924, %v1039
        %v1045 = vadd.f32 %v925, %v1041
        %s1046 = sadd.s32 %s199, 32
        %s1047 = sld [smem:[#allocation2 + %s1046]]
        %v1048 = vstv %s1047
        %v1049 = vmul.f32 %v1048, %v202
        %v1050 = vmul.f32 %v1048, %v203
        %1053 = vrot.lane.b32.xlu0 %v1049, 126
        %v1054 = vpop.permute.xlu0 %1053
        %1055 = vrot.lane.b32.xlu0 %v1050, 126
        %v1056 = vpop.permute.xlu0 %1055
        %v1059 = vadd.f32 %v939, %v1054
        %v1060 = vadd.f32 %v940, %v1056
        %s1061 = sadd.s32 %s199, 56
        %s1062 = sld [smem:[#allocation2 + %s1061]]
        %v1063 = vstv %s1062
        %v1064 = vmul.f32 %v1063, %v202
        %v1065 = vmul.f32 %v1063, %v203
        %1068 = vrot.lane.b32.xlu0 %v1064, 126
        %v1069 = vpop.permute.xlu0 %1068
        %1070 = vrot.lane.b32.xlu0 %v1065, 126
        %v1071 = vpop.permute.xlu0 %1070
        %v1074 = vadd.f32 %v954, %v1069
        %v1075 = vadd.f32 %v955, %v1071
        %s1076 = sadd.s32 %s199, 80
        %s1077 = sld [smem:[#allocation2 + %s1076]]
        %v1078 = vstv %s1077
        %v1079 = vmul.f32 %v1078, %v202
        %v1080 = vmul.f32 %v1078, %v203
        %1083 = vrot.lane.b32.xlu0 %v1079, 126
        %v1084 = vpop.permute.xlu0 %1083
        %1085 = vrot.lane.b32.xlu0 %v1080, 126
        %v1086 = vpop.permute.xlu0 %1085
        %v1089 = vadd.f32 %v969, %v1084
        %v1090 = vadd.f32 %v970, %v1086
        %s1091 = sadd.s32 %s199, 104
        %s1092 = sld [smem:[#allocation2 + %s1091]]
        %v1093 = vstv %s1092
        %v1094 = vmul.f32 %v1093, %v202
        %v1095 = vmul.f32 %v1093, %v203
        %1098 = vrot.lane.b32.xlu0 %v1094, 126
        %v1099 = vpop.permute.xlu0 %1098
        %1100 = vrot.lane.b32.xlu0 %v1095, 126
        %v1101 = vpop.permute.xlu0 %1100
        %v1104 = vadd.f32 %v984, %v1099
        %v1105 = vadd.f32 %v985, %v1101
        %s1106 = sadd.s32 %s199, 128
        %s1107 = sld [smem:[#allocation2 + %s1106]]
        %v1108 = vstv %s1107
        %v1109 = vmul.f32 %v1108, %v202
        %v1110 = vmul.f32 %v1108, %v203
        %1113 = vrot.lane.b32.xlu0 %v1109, 126
        %v1114 = vpop.permute.xlu0 %1113
        %1115 = vrot.lane.b32.xlu0 %v1110, 126
        %v1116 = vpop.permute.xlu0 %1115
        %v1119 = vadd.f32 %v999, %v1114
        %v1120 = vadd.f32 %v1000, %v1116
        %s1121 = sadd.s32 %s199, 152
        %s1122 = sld [smem:[#allocation2 + %s1121]]
        %v1123 = vstv %s1122
        %v1124 = vmul.f32 %v1123, %v202
        %v1125 = vmul.f32 %v1123, %v203
        %1128 = vrot.lane.b32.xlu0 %v1124, 126
        %v1129 = vpop.permute.xlu0 %1128
        %1130 = vrot.lane.b32.xlu0 %v1125, 126
        %v1131 = vpop.permute.xlu0 %1130
        %v1134 = vadd.f32 %v1014, %v1129
        %v1135 = vadd.f32 %v1015, %v1131
        %s1136 = sadd.s32 %s199, 176
        %s1137 = sld [smem:[#allocation2 + %s1136]]
        %v1138 = vstv %s1137
        %v1139 = vmul.f32 %v1138, %v202
        %v1140 = vmul.f32 %v1138, %v203
        %1143 = vrot.lane.b32.xlu0 %v1139, 126
        %v1144 = vpop.permute.xlu0 %1143
        %1145 = vrot.lane.b32.xlu0 %v1140, 126
        %v1146 = vpop.permute.xlu0 %1145
        %v1149 = vadd.f32 %v1029, %v1144
        %v1150 = vadd.f32 %v1030, %v1146
        %s1151 = sadd.s32 %s199, 14
        %s1152 = sld [smem:[#allocation2 + %s1151]]
        %v1153 = vstv %s1152
        %v1154 = vmul.f32 %v1153, %v204
        %v1155 = vmul.f32 %v1153, %v205
        %1158 = vrot.lane.b32.xlu0 %v1154, 126
        %v1159 = vpop.permute.xlu0 %1158
        %1160 = vrot.lane.b32.xlu0 %v1155, 126
        %v1161 = vpop.permute.xlu0 %1160
        %v1164 = vadd.f32 %v1044, %v1159
        %v1165 = vadd.f32 %v1045, %v1161
        %s1166 = sadd.s32 %s199, 38
        %s1167 = sld [smem:[#allocation2 + %s1166]]
        %v1168 = vstv %s1167
        %v1169 = vmul.f32 %v1168, %v204
        %v1170 = vmul.f32 %v1168, %v205
        %1173 = vrot.lane.b32.xlu0 %v1169, 126
        %v1174 = vpop.permute.xlu0 %1173
        %1175 = vrot.lane.b32.xlu0 %v1170, 126
        %v1176 = vpop.permute.xlu0 %1175
        %v1179 = vadd.f32 %v1059, %v1174
        %v1180 = vadd.f32 %v1060, %v1176
        %s1181 = sadd.s32 %s199, 62
        %s1182 = sld [smem:[#allocation2 + %s1181]]
        %v1183 = vstv %s1182
        %v1184 = vmul.f32 %v1183, %v204
        %v1185 = vmul.f32 %v1183, %v205
        %1188 = vrot.lane.b32.xlu0 %v1184, 126
        %v1189 = vpop.permute.xlu0 %1188
        %1190 = vrot.lane.b32.xlu0 %v1185, 126
        %v1191 = vpop.permute.xlu0 %1190
        %v1194 = vadd.f32 %v1074, %v1189
        %v1195 = vadd.f32 %v1075, %v1191
        %s1196 = sadd.s32 %s199, 86
        %s1197 = sld [smem:[#allocation2 + %s1196]]
        %v1198 = vstv %s1197
        %v1199 = vmul.f32 %v1198, %v204
        %v1200 = vmul.f32 %v1198, %v205
        %1203 = vrot.lane.b32.xlu0 %v1199, 126
        %v1204 = vpop.permute.xlu0 %1203
        %1205 = vrot.lane.b32.xlu0 %v1200, 126
        %v1206 = vpop.permute.xlu0 %1205
        %v1209 = vadd.f32 %v1089, %v1204
        %v1210 = vadd.f32 %v1090, %v1206
        %s1211 = sadd.s32 %s199, 110
        %s1212 = sld [smem:[#allocation2 + %s1211]]
        %v1213 = vstv %s1212
        %v1214 = vmul.f32 %v1213, %v204
        %v1215 = vmul.f32 %v1213, %v205
        %1218 = vrot.lane.b32.xlu0 %v1214, 126
        %v1219 = vpop.permute.xlu0 %1218
        %1220 = vrot.lane.b32.xlu0 %v1215, 126
        %v1221 = vpop.permute.xlu0 %1220
        %v1224 = vadd.f32 %v1104, %v1219
        %v1225 = vadd.f32 %v1105, %v1221
        %s1226 = sadd.s32 %s199, 134
        %s1227 = sld [smem:[#allocation2 + %s1226]]
        %v1228 = vstv %s1227
        %v1229 = vmul.f32 %v1228, %v204
        %v1230 = vmul.f32 %v1228, %v205
        %1233 = vrot.lane.b32.xlu0 %v1229, 126
        %v1234 = vpop.permute.xlu0 %1233
        %1235 = vrot.lane.b32.xlu0 %v1230, 126
        %v1236 = vpop.permute.xlu0 %1235
        %v1239 = vadd.f32 %v1119, %v1234
        %v1240 = vadd.f32 %v1120, %v1236
        %s1241 = sadd.s32 %s199, 158
        %s1242 = sld [smem:[#allocation2 + %s1241]]
        %v1243 = vstv %s1242
        %v1244 = vmul.f32 %v1243, %v204
        %v1245 = vmul.f32 %v1243, %v205
        %1248 = vrot.lane.b32.xlu0 %v1244, 126
        %v1249 = vpop.permute.xlu0 %1248
        %1250 = vrot.lane.b32.xlu0 %v1245, 126
        %v1251 = vpop.permute.xlu0 %1250
        %v1254 = vadd.f32 %v1134, %v1249
        %v1255 = vadd.f32 %v1135, %v1251
        %s1256 = sadd.s32 %s199, 182
        %s1257 = sld [smem:[#allocation2 + %s1256]]
        %v1258 = vstv %s1257
        %v1259 = vmul.f32 %v1258, %v204
        %v1260 = vmul.f32 %v1258, %v205
        %1263 = vrot.lane.b32.xlu0 %v1259, 126
        %v1264 = vpop.permute.xlu0 %1263
        %1265 = vrot.lane.b32.xlu0 %v1260, 126
        %v1266 = vpop.permute.xlu0 %1265
        %v1269 = vadd.f32 %v1149, %v1264
        %v1270 = vadd.f32 %v1150, %v1266
        %s1271 = sadd.s32 %s199, 20
        %s1272 = sld [smem:[#allocation2 + %s1271]]
        %v1273 = vstv %s1272
        %v1274 = vmul.f32 %v1273, %v206
        %v1275 = vmul.f32 %v1273, %v207
        %1278 = vrot.lane.b32.xlu0 %v1274, 126
        %v1279 = vpop.permute.xlu0 %1278
        %1280 = vrot.lane.b32.xlu0 %v1275, 126
        %v1281 = vpop.permute.xlu0 %1280
        %v1284 = vadd.f32 %v1164, %v1279
        %v1285 = vadd.f32 %v1165, %v1281
        %s1286 = sadd.s32 %s199, 44
        %s1287 = sld [smem:[#allocation2 + %s1286]]
        %v1288 = vstv %s1287
        %v1289 = vmul.f32 %v1288, %v206
        %v1290 = vmul.f32 %v1288, %v207
        %1293 = vrot.lane.b32.xlu0 %v1289, 126
        %v1294 = vpop.permute.xlu0 %1293
        %1295 = vrot.lane.b32.xlu0 %v1290, 126
        %v1296 = vpop.permute.xlu0 %1295
        %v1299 = vadd.f32 %v1179, %v1294
        %v1300 = vadd.f32 %v1180, %v1296
        %s1301 = sadd.s32 %s199, 68
        %s1302 = sld [smem:[#allocation2 + %s1301]]
        %v1303 = vstv %s1302
        %v1304 = vmul.f32 %v1303, %v206
        %v1305 = vmul.f32 %v1303, %v207
        %1308 = vrot.lane.b32.xlu0 %v1304, 126
        %v1309 = vpop.permute.xlu0 %1308
        %1310 = vrot.lane.b32.xlu0 %v1305, 126
        %v1311 = vpop.permute.xlu0 %1310
        %v1314 = vadd.f32 %v1194, %v1309
        %v1315 = vadd.f32 %v1195, %v1311
        %s1316 = sadd.s32 %s199, 92
        %s1317 = sld [smem:[#allocation2 + %s1316]]
        %v1318 = vstv %s1317
        %v1319 = vmul.f32 %v1318, %v206
        %v1320 = vmul.f32 %v1318, %v207
        %1323 = vrot.lane.b32.xlu0 %v1319, 126
        %v1324 = vpop.permute.xlu0 %1323
        %1325 = vrot.lane.b32.xlu0 %v1320, 126
        %v1326 = vpop.permute.xlu0 %1325
        %v1329 = vadd.f32 %v1209, %v1324
        %v1330 = vadd.f32 %v1210, %v1326
        %s1331 = sadd.s32 %s199, 116
        %s1332 = sld [smem:[#allocation2 + %s1331]]
        %v1333 = vstv %s1332
        %v1334 = vmul.f32 %v1333, %v206
        %v1335 = vmul.f32 %v1333, %v207
        %1338 = vrot.lane.b32.xlu0 %v1334, 126
        %v1339 = vpop.permute.xlu0 %1338
        %1340 = vrot.lane.b32.xlu0 %v1335, 126
        %v1341 = vpop.permute.xlu0 %1340
        %v1344 = vadd.f32 %v1224, %v1339
        %v1345 = vadd.f32 %v1225, %v1341
        %s1346 = sadd.s32 %s199, 140
        %s1347 = sld [smem:[#allocation2 + %s1346]]
        %v1348 = vstv %s1347
        %v1349 = vmul.f32 %v1348, %v206
        %v1350 = vmul.f32 %v1348, %v207
        %1353 = vrot.lane.b32.xlu0 %v1349, 126
        %v1354 = vpop.permute.xlu0 %1353
        %1355 = vrot.lane.b32.xlu0 %v1350, 126
        %v1356 = vpop.permute.xlu0 %1355
        %v1359 = vadd.f32 %v1239, %v1354
        %v1360 = vadd.f32 %v1240, %v1356
        %s1361 = sadd.s32 %s199, 164
        %s1362 = sld [smem:[#allocation2 + %s1361]]
        %v1363 = vstv %s1362
        %v1364 = vmul.f32 %v1363, %v206
        %v1365 = vmul.f32 %v1363, %v207
        %1368 = vrot.lane.b32.xlu0 %v1364, 126
        %v1369 = vpop.permute.xlu0 %1368
        %1370 = vrot.lane.b32.xlu0 %v1365, 126
        %v1371 = vpop.permute.xlu0 %1370
        %v1374 = vadd.f32 %v1254, %v1369
        %v1375 = vadd.f32 %v1255, %v1371
        %s1376 = sadd.s32 %s199, 188
        %s1377 = sld [smem:[#allocation2 + %s1376]]
        %v1378 = vstv %s1377
        %v1379 = vmul.f32 %v1378, %v206
        %v1380 = vmul.f32 %v1378, %v207
        %1383 = vrot.lane.b32.xlu0 %v1379, 126
        %v1384 = vpop.permute.xlu0 %1383
        %1385 = vrot.lane.b32.xlu0 %v1380, 126
        %v1386 = vpop.permute.xlu0 %1385
        %v1389 = vadd.f32 %v1269, %v1384
        %v1390 = vadd.f32 %v1270, %v1386
        %v1391 = vld [vmem:[%s196 + $0x1] sm:$0xff]
        %v1392 = vld [vmem:[%s196 + $0x9] sm:$0xff]
        %v1393 = vld [vmem:[%s196 + $0x19] sm:$0xff]
        %v1394 = vld [vmem:[%s196 + $0x21] sm:$0xff]
        %v1395 = vld [vmem:[%s196 + $0x31] sm:$0xff]
        %v1396 = vld [vmem:[%s196 + $0x39] sm:$0xff]
        %v1397 = vld [vmem:[%s196 + $0x49] sm:$0xff]
        %v1398 = vld [vmem:[%s196 + $0x51] sm:$0xff]
        %s1399 = sadd.s32 %s199, 3
        %s1400 = sld [smem:[#allocation2 + %s1399]]
        %v1401 = vstv %s1400
        %v1402 = vmul.f32 %v1401, %v1391
        %v1403 = vmul.f32 %v1401, %v1392
        %v1404 = vadd.f32 %v1284, %v1402
        %v1405 = vadd.f32 %v1285, %v1403
        %s1406 = sadd.s32 %s199, 27
        %s1407 = sld [smem:[#allocation2 + %s1406]]
        %v1408 = vstv %s1407
        %v1409 = vmul.f32 %v1408, %v1391
        %v1410 = vmul.f32 %v1408, %v1392
        %v1411 = vadd.f32 %v1299, %v1409
        %v1412 = vadd.f32 %v1300, %v1410
        %s1413 = sadd.s32 %s199, 51
        %s1414 = sld [smem:[#allocation2 + %s1413]]
        %v1415 = vstv %s1414
        %v1416 = vmul.f32 %v1415, %v1391
        %v1417 = vmul.f32 %v1415, %v1392
        %v1418 = vadd.f32 %v1314, %v1416
        %v1419 = vadd.f32 %v1315, %v1417
        %s1420 = sadd.s32 %s199, 75
        %s1421 = sld [smem:[#allocation2 + %s1420]]
        %v1422 = vstv %s1421
        %v1423 = vmul.f32 %v1422, %v1391
        %v1424 = vmul.f32 %v1422, %v1392
        %v1425 = vadd.f32 %v1329, %v1423
        %v1426 = vadd.f32 %v1330, %v1424
        %s1427 = sadd.s32 %s199, 99
        %s1428 = sld [smem:[#allocation2 + %s1427]]
        %v1429 = vstv %s1428
        %v1430 = vmul.f32 %v1429, %v1391
        %v1431 = vmul.f32 %v1429, %v1392
        %v1432 = vadd.f32 %v1344, %v1430
        %v1433 = vadd.f32 %v1345, %v1431
        %s1434 = sadd.s32 %s199, 123
        %s1435 = sld [smem:[#allocation2 + %s1434]]
        %v1436 = vstv %s1435
        %v1437 = vmul.f32 %v1436, %v1391
        %v1438 = vmul.f32 %v1436, %v1392
        %v1439 = vadd.f32 %v1359, %v1437
        %v1440 = vadd.f32 %v1360, %v1438
        %s1441 = sadd.s32 %s199, 147
        %s1442 = sld [smem:[#allocation2 + %s1441]]
        %v1443 = vstv %s1442
        %v1444 = vmul.f32 %v1443, %v1391
        %v1445 = vmul.f32 %v1443, %v1392
        %v1446 = vadd.f32 %v1374, %v1444
        %v1447 = vadd.f32 %v1375, %v1445
        %s1448 = sadd.s32 %s199, 171
        %s1449 = sld [smem:[#allocation2 + %s1448]]
        %v1450 = vstv %s1449
        %v1451 = vmul.f32 %v1450, %v1391
        %v1452 = vmul.f32 %v1450, %v1392
        %v1453 = vadd.f32 %v1389, %v1451
        %v1454 = vadd.f32 %v1390, %v1452
        %s1455 = sadd.s32 %s199, 9
        %s1456 = sld [smem:[#allocation2 + %s1455]]
        %v1457 = vstv %s1456
        %v1458 = vmul.f32 %v1457, %v1393
        %v1459 = vmul.f32 %v1457, %v1394
        %v1460 = vadd.f32 %v1404, %v1458
        %v1461 = vadd.f32 %v1405, %v1459
        %s1462 = sadd.s32 %s199, 33
        %s1463 = sld [smem:[#allocation2 + %s1462]]
        %v1464 = vstv %s1463
        %v1465 = vmul.f32 %v1464, %v1393
        %v1466 = vmul.f32 %v1464, %v1394
        %v1467 = vadd.f32 %v1411, %v1465
        %v1468 = vadd.f32 %v1412, %v1466
        %s1469 = sadd.s32 %s199, 57
        %s1470 = sld [smem:[#allocation2 + %s1469]]
        %v1471 = vstv %s1470
        %v1472 = vmul.f32 %v1471, %v1393
        %v1473 = vmul.f32 %v1471, %v1394
        %v1474 = vadd.f32 %v1418, %v1472
        %v1475 = vadd.f32 %v1419, %v1473
        %s1476 = sadd.s32 %s199, 81
        %s1477 = sld [smem:[#allocation2 + %s1476]]
        %v1478 = vstv %s1477
        %v1479 = vmul.f32 %v1478, %v1393
        %v1480 = vmul.f32 %v1478, %v1394
        %v1481 = vadd.f32 %v1425, %v1479
        %v1482 = vadd.f32 %v1426, %v1480
        %s1483 = sadd.s32 %s199, 105
        %s1484 = sld [smem:[#allocation2 + %s1483]]
        %v1485 = vstv %s1484
        %v1486 = vmul.f32 %v1485, %v1393
        %v1487 = vmul.f32 %v1485, %v1394
        %v1488 = vadd.f32 %v1432, %v1486
        %v1489 = vadd.f32 %v1433, %v1487
        %s1490 = sadd.s32 %s199, 129
        %s1491 = sld [smem:[#allocation2 + %s1490]]
        %v1492 = vstv %s1491
        %v1493 = vmul.f32 %v1492, %v1393
        %v1494 = vmul.f32 %v1492, %v1394
        %v1495 = vadd.f32 %v1439, %v1493
        %v1496 = vadd.f32 %v1440, %v1494
        %s1497 = sadd.s32 %s199, 153
        %s1498 = sld [smem:[#allocation2 + %s1497]]
        %v1499 = vstv %s1498
        %v1500 = vmul.f32 %v1499, %v1393
        %v1501 = vmul.f32 %v1499, %v1394
        %v1502 = vadd.f32 %v1446, %v1500
        %v1503 = vadd.f32 %v1447, %v1501
        %s1504 = sadd.s32 %s199, 177
        %s1505 = sld [smem:[#allocation2 + %s1504]]
        %v1506 = vstv %s1505
        %v1507 = vmul.f32 %v1506, %v1393
        %v1508 = vmul.f32 %v1506, %v1394
        %v1509 = vadd.f32 %v1453, %v1507
        %v1510 = vadd.f32 %v1454, %v1508
        %s1511 = sadd.s32 %s199, 15
        %s1512 = sld [smem:[#allocation2 + %s1511]]
        %v1513 = vstv %s1512
        %v1514 = vmul.f32 %v1513, %v1395
        %v1515 = vmul.f32 %v1513, %v1396
        %v1516 = vadd.f32 %v1460, %v1514
        %v1517 = vadd.f32 %v1461, %v1515
        %s1518 = sadd.s32 %s199, 39
        %s1519 = sld [smem:[#allocation2 + %s1518]]
        %v1520 = vstv %s1519
        %v1521 = vmul.f32 %v1520, %v1395
        %v1522 = vmul.f32 %v1520, %v1396
        %v1523 = vadd.f32 %v1467, %v1521
        %v1524 = vadd.f32 %v1468, %v1522
        %s1525 = sadd.s32 %s199, 63
        %s1526 = sld [smem:[#allocation2 + %s1525]]
        %v1527 = vstv %s1526
        %v1528 = vmul.f32 %v1527, %v1395
        %v1529 = vmul.f32 %v1527, %v1396
        %v1530 = vadd.f32 %v1474, %v1528
        %v1531 = vadd.f32 %v1475, %v1529
        %s1532 = sadd.s32 %s199, 87
        %s1533 = sld [smem:[#allocation2 + %s1532]]
        %v1534 = vstv %s1533
        %v1535 = vmul.f32 %v1534, %v1395
        %v1536 = vmul.f32 %v1534, %v1396
        %v1537 = vadd.f32 %v1481, %v1535
        %v1538 = vadd.f32 %v1482, %v1536
        %s1539 = sadd.s32 %s199, 111
        %s1540 = sld [smem:[#allocation2 + %s1539]]
        %v1541 = vstv %s1540
        %v1542 = vmul.f32 %v1541, %v1395
        %v1543 = vmul.f32 %v1541, %v1396
        %v1544 = vadd.f32 %v1488, %v1542
        %v1545 = vadd.f32 %v1489, %v1543
        %s1546 = sadd.s32 %s199, 135
        %s1547 = sld [smem:[#allocation2 + %s1546]]
        %v1548 = vstv %s1547
        %v1549 = vmul.f32 %v1548, %v1395
        %v1550 = vmul.f32 %v1548, %v1396
        %v1551 = vadd.f32 %v1495, %v1549
        %v1552 = vadd.f32 %v1496, %v1550
        %s1553 = sadd.s32 %s199, 159
        %s1554 = sld [smem:[#allocation2 + %s1553]]
        %v1555 = vstv %s1554
        %v1556 = vmul.f32 %v1555, %v1395
        %v1557 = vmul.f32 %v1555, %v1396
        %v1558 = vadd.f32 %v1502, %v1556
        %v1559 = vadd.f32 %v1503, %v1557
        %s1560 = sadd.s32 %s199, 183
        %s1561 = sld [smem:[#allocation2 + %s1560]]
        %v1562 = vstv %s1561
        %v1563 = vmul.f32 %v1562, %v1395
        %v1564 = vmul.f32 %v1562, %v1396
        %v1565 = vadd.f32 %v1509, %v1563
        %v1566 = vadd.f32 %v1510, %v1564
        %s1567 = sadd.s32 %s199, 21
        %s1568 = sld [smem:[#allocation2 + %s1567]]
        %v1569 = vstv %s1568
        %v1570 = vmul.f32 %v1569, %v1397
        %v1571 = vmul.f32 %v1569, %v1398
        %v1572 = vadd.f32 %v1516, %v1570
        %v1573 = vadd.f32 %v1517, %v1571
        %s1574 = sadd.s32 %s199, 45
        %s1575 = sld [smem:[#allocation2 + %s1574]]
        %v1576 = vstv %s1575
        %v1577 = vmul.f32 %v1576, %v1397
        %v1578 = vmul.f32 %v1576, %v1398
        %v1579 = vadd.f32 %v1523, %v1577
        %v1580 = vadd.f32 %v1524, %v1578
        %s1581 = sadd.s32 %s199, 69
        %s1582 = sld [smem:[#allocation2 + %s1581]]
        %v1583 = vstv %s1582
        %v1584 = vmul.f32 %v1583, %v1397
        %v1585 = vmul.f32 %v1583, %v1398
        %v1586 = vadd.f32 %v1530, %v1584
        %v1587 = vadd.f32 %v1531, %v1585
        %s1588 = sadd.s32 %s199, 93
        %s1589 = sld [smem:[#allocation2 + %s1588]]
        %v1590 = vstv %s1589
        %v1591 = vmul.f32 %v1590, %v1397
        %v1592 = vmul.f32 %v1590, %v1398
        %v1593 = vadd.f32 %v1537, %v1591
        %v1594 = vadd.f32 %v1538, %v1592
        %s1595 = sadd.s32 %s199, 117
        %s1596 = sld [smem:[#allocation2 + %s1595]]
        %v1597 = vstv %s1596
        %v1598 = vmul.f32 %v1597, %v1397
        %v1599 = vmul.f32 %v1597, %v1398
        %v1600 = vadd.f32 %v1544, %v1598
        %v1601 = vadd.f32 %v1545, %v1599
        %s1602 = sadd.s32 %s199, 141
        %s1603 = sld [smem:[#allocation2 + %s1602]]
        %v1604 = vstv %s1603
        %v1605 = vmul.f32 %v1604, %v1397
        %v1606 = vmul.f32 %v1604, %v1398
        %v1607 = vadd.f32 %v1551, %v1605
        %v1608 = vadd.f32 %v1552, %v1606
        %s1609 = sadd.s32 %s199, 165
        %s1610 = sld [smem:[#allocation2 + %s1609]]
        %v1611 = vstv %s1610
        %v1612 = vmul.f32 %v1611, %v1397
        %v1613 = vmul.f32 %v1611, %v1398
        %v1614 = vadd.f32 %v1558, %v1612
        %v1615 = vadd.f32 %v1559, %v1613
        %s1616 = sadd.s32 %s199, 189
        %s1617 = sld [smem:[#allocation2 + %s1616]]
        %v1618 = vstv %s1617
        %v1619 = vmul.f32 %v1618, %v1397
        %v1620 = vmul.f32 %v1618, %v1398
        %v1621 = vadd.f32 %v1565, %v1619
        %v1622 = vadd.f32 %v1566, %v1620
        %s1623 = sadd.s32 %s199, 4
        %s1624 = sld [smem:[#allocation2 + %s1623]]
        %v1625 = vstv %s1624
        %v1626 = vmul.f32 %v1625, %v1391
        %v1627 = vmul.f32 %v1625, %v1392
        %1630 = vrot.lane.b32.xlu0 %v1626, 127
        %v1631 = vpop.permute.xlu0 %1630
        %1632 = vrot.lane.b32.xlu0 %v1627, 127
        %v1633 = vpop.permute.xlu0 %1632
        %v1636 = vadd.f32 %v1572, %v1631
        %v1637 = vadd.f32 %v1573, %v1633
        %s1638 = sadd.s32 %s199, 28
        %s1639 = sld [smem:[#allocation2 + %s1638]]
        %v1640 = vstv %s1639
        %v1641 = vmul.f32 %v1640, %v1391
        %v1642 = vmul.f32 %v1640, %v1392
        %1645 = vrot.lane.b32.xlu0 %v1641, 127
        %v1646 = vpop.permute.xlu0 %1645
        %1647 = vrot.lane.b32.xlu0 %v1642, 127
        %v1648 = vpop.permute.xlu0 %1647
        %v1651 = vadd.f32 %v1579, %v1646
        %v1652 = vadd.f32 %v1580, %v1648
        %s1653 = sadd.s32 %s199, 52
        %s1654 = sld [smem:[#allocation2 + %s1653]]
        %v1655 = vstv %s1654
        %v1656 = vmul.f32 %v1655, %v1391
        %v1657 = vmul.f32 %v1655, %v1392
        %1660 = vrot.lane.b32.xlu0 %v1656, 127
        %v1661 = vpop.permute.xlu0 %1660
        %1662 = vrot.lane.b32.xlu0 %v1657, 127
        %v1663 = vpop.permute.xlu0 %1662
        %v1666 = vadd.f32 %v1586, %v1661
        %v1667 = vadd.f32 %v1587, %v1663
        %s1668 = sadd.s32 %s199, 76
        %s1669 = sld [smem:[#allocation2 + %s1668]]
        %v1670 = vstv %s1669
        %v1671 = vmul.f32 %v1670, %v1391
        %v1672 = vmul.f32 %v1670, %v1392
        %1675 = vrot.lane.b32.xlu0 %v1671, 127
        %v1676 = vpop.permute.xlu0 %1675
        %1677 = vrot.lane.b32.xlu0 %v1672, 127
        %v1678 = vpop.permute.xlu0 %1677
        %v1681 = vadd.f32 %v1593, %v1676
        %v1682 = vadd.f32 %v1594, %v1678
        %s1683 = sadd.s32 %s199, 100
        %s1684 = sld [smem:[#allocation2 + %s1683]]
        %v1685 = vstv %s1684
        %v1686 = vmul.f32 %v1685, %v1391
        %v1687 = vmul.f32 %v1685, %v1392
        %1690 = vrot.lane.b32.xlu0 %v1686, 127
        %v1691 = vpop.permute.xlu0 %1690
        %1692 = vrot.lane.b32.xlu0 %v1687, 127
        %v1693 = vpop.permute.xlu0 %1692
        %v1696 = vadd.f32 %v1600, %v1691
        %v1697 = vadd.f32 %v1601, %v1693
        %s1698 = sadd.s32 %s199, 124
        %s1699 = sld [smem:[#allocation2 + %s1698]]
        %v1700 = vstv %s1699
        %v1701 = vmul.f32 %v1700, %v1391
        %v1702 = vmul.f32 %v1700, %v1392
        %1705 = vrot.lane.b32.xlu0 %v1701, 127
        %v1706 = vpop.permute.xlu0 %1705
        %1707 = vrot.lane.b32.xlu0 %v1702, 127
        %v1708 = vpop.permute.xlu0 %1707
        %v1711 = vadd.f32 %v1607, %v1706
        %v1712 = vadd.f32 %v1608, %v1708
        %s1713 = sadd.s32 %s199, 148
        %s1714 = sld [smem:[#allocation2 + %s1713]]
        %v1715 = vstv %s1714
        %v1716 = vmul.f32 %v1715, %v1391
        %v1717 = vmul.f32 %v1715, %v1392
        %1720 = vrot.lane.b32.xlu0 %v1716, 127
        %v1721 = vpop.permute.xlu0 %1720
        %1722 = vrot.lane.b32.xlu0 %v1717, 127
        %v1723 = vpop.permute.xlu0 %1722
        %v1726 = vadd.f32 %v1614, %v1721
        %v1727 = vadd.f32 %v1615, %v1723
        %s1728 = sadd.s32 %s199, 172
        %s1729 = sld [smem:[#allocation2 + %s1728]]
        %v1730 = vstv %s1729
        %v1731 = vmul.f32 %v1730, %v1391
        %v1732 = vmul.f32 %v1730, %v1392
        %1735 = vrot.lane.b32.xlu0 %v1731, 127
        %v1736 = vpop.permute.xlu0 %1735
        %1737 = vrot.lane.b32.xlu0 %v1732, 127
        %v1738 = vpop.permute.xlu0 %1737
        %v1741 = vadd.f32 %v1621, %v1736
        %v1742 = vadd.f32 %v1622, %v1738
        %s1743 = sadd.s32 %s199, 10
        %s1744 = sld [smem:[#allocation2 + %s1743]]
        %v1745 = vstv %s1744
        %v1746 = vmul.f32 %v1745, %v1393
        %v1747 = vmul.f32 %v1745, %v1394
        %1750 = vrot.lane.b32.xlu0 %v1746, 127
        %v1751 = vpop.permute.xlu0 %1750
        %1752 = vrot.lane.b32.xlu0 %v1747, 127
        %v1753 = vpop.permute.xlu0 %1752
        %v1756 = vadd.f32 %v1636, %v1751
        %v1757 = vadd.f32 %v1637, %v1753
        %s1758 = sadd.s32 %s199, 34
        %s1759 = sld [smem:[#allocation2 + %s1758]]
        %v1760 = vstv %s1759
        %v1761 = vmul.f32 %v1760, %v1393
        %v1762 = vmul.f32 %v1760, %v1394
        %1765 = vrot.lane.b32.xlu0 %v1761, 127
        %v1766 = vpop.permute.xlu0 %1765
        %1767 = vrot.lane.b32.xlu0 %v1762, 127
        %v1768 = vpop.permute.xlu0 %1767
        %v1771 = vadd.f32 %v1651, %v1766
        %v1772 = vadd.f32 %v1652, %v1768
        %s1773 = sadd.s32 %s199, 58
        %s1774 = sld [smem:[#allocation2 + %s1773]]
        %v1775 = vstv %s1774
        %v1776 = vmul.f32 %v1775, %v1393
        %v1777 = vmul.f32 %v1775, %v1394
        %1780 = vrot.lane.b32.xlu0 %v1776, 127
        %v1781 = vpop.permute.xlu0 %1780
        %1782 = vrot.lane.b32.xlu0 %v1777, 127
        %v1783 = vpop.permute.xlu0 %1782
        %v1786 = vadd.f32 %v1666, %v1781
        %v1787 = vadd.f32 %v1667, %v1783
        %s1788 = sadd.s32 %s199, 82
        %s1789 = sld [smem:[#allocation2 + %s1788]]
        %v1790 = vstv %s1789
        %v1791 = vmul.f32 %v1790, %v1393
        %v1792 = vmul.f32 %v1790, %v1394
        %1795 = vrot.lane.b32.xlu0 %v1791, 127
        %v1796 = vpop.permute.xlu0 %1795
        %1797 = vrot.lane.b32.xlu0 %v1792, 127
        %v1798 = vpop.permute.xlu0 %1797
        %v1801 = vadd.f32 %v1681, %v1796
        %v1802 = vadd.f32 %v1682, %v1798
        %s1803 = sadd.s32 %s199, 106
        %s1804 = sld [smem:[#allocation2 + %s1803]]
        %v1805 = vstv %s1804
        %v1806 = vmul.f32 %v1805, %v1393
        %v1807 = vmul.f32 %v1805, %v1394
        %1810 = vrot.lane.b32.xlu0 %v1806, 127
        %v1811 = vpop.permute.xlu0 %1810
        %1812 = vrot.lane.b32.xlu0 %v1807, 127
        %v1813 = vpop.permute.xlu0 %1812
        %v1816 = vadd.f32 %v1696, %v1811
        %v1817 = vadd.f32 %v1697, %v1813
        %s1818 = sadd.s32 %s199, 130
        %s1819 = sld [smem:[#allocation2 + %s1818]]
        %v1820 = vstv %s1819
        %v1821 = vmul.f32 %v1820, %v1393
        %v1822 = vmul.f32 %v1820, %v1394
        %1825 = vrot.lane.b32.xlu0 %v1821, 127
        %v1826 = vpop.permute.xlu0 %1825
        %1827 = vrot.lane.b32.xlu0 %v1822, 127
        %v1828 = vpop.permute.xlu0 %1827
        %v1831 = vadd.f32 %v1711, %v1826
        %v1832 = vadd.f32 %v1712, %v1828
        %s1833 = sadd.s32 %s199, 154
        %s1834 = sld [smem:[#allocation2 + %s1833]]
        %v1835 = vstv %s1834
        %v1836 = vmul.f32 %v1835, %v1393
        %v1837 = vmul.f32 %v1835, %v1394
        %1840 = vrot.lane.b32.xlu0 %v1836, 127
        %v1841 = vpop.permute.xlu0 %1840
        %1842 = vrot.lane.b32.xlu0 %v1837, 127
        %v1843 = vpop.permute.xlu0 %1842
        %v1846 = vadd.f32 %v1726, %v1841
        %v1847 = vadd.f32 %v1727, %v1843
        %s1848 = sadd.s32 %s199, 178
        %s1849 = sld [smem:[#allocation2 + %s1848]]
        %v1850 = vstv %s1849
        %v1851 = vmul.f32 %v1850, %v1393
        %v1852 = vmul.f32 %v1850, %v1394
        %1855 = vrot.lane.b32.xlu0 %v1851, 127
        %v1856 = vpop.permute.xlu0 %1855
        %1857 = vrot.lane.b32.xlu0 %v1852, 127
        %v1858 = vpop.permute.xlu0 %1857
        %v1861 = vadd.f32 %v1741, %v1856
        %v1862 = vadd.f32 %v1742, %v1858
        %s1863 = sadd.s32 %s199, 16
        %s1864 = sld [smem:[#allocation2 + %s1863]]
        %v1865 = vstv %s1864
        %v1866 = vmul.f32 %v1865, %v1395
        %v1867 = vmul.f32 %v1865, %v1396
        %1870 = vrot.lane.b32.xlu0 %v1866, 127
        %v1871 = vpop.permute.xlu0 %1870
        %1872 = vrot.lane.b32.xlu0 %v1867, 127
        %v1873 = vpop.permute.xlu0 %1872
        %v1876 = vadd.f32 %v1756, %v1871
        %v1877 = vadd.f32 %v1757, %v1873
        %s1878 = sadd.s32 %s199, 40
        %s1879 = sld [smem:[#allocation2 + %s1878]]
        %v1880 = vstv %s1879
        %v1881 = vmul.f32 %v1880, %v1395
        %v1882 = vmul.f32 %v1880, %v1396
        %1885 = vrot.lane.b32.xlu0 %v1881, 127
        %v1886 = vpop.permute.xlu0 %1885
        %1887 = vrot.lane.b32.xlu0 %v1882, 127
        %v1888 = vpop.permute.xlu0 %1887
        %v1891 = vadd.f32 %v1771, %v1886
        %v1892 = vadd.f32 %v1772, %v1888
        %s1893 = sadd.s32 %s199, 64
        %s1894 = sld [smem:[#allocation2 + %s1893]]
        %v1895 = vstv %s1894
        %v1896 = vmul.f32 %v1895, %v1395
        %v1897 = vmul.f32 %v1895, %v1396
        %1900 = vrot.lane.b32.xlu0 %v1896, 127
        %v1901 = vpop.permute.xlu0 %1900
        %1902 = vrot.lane.b32.xlu0 %v1897, 127
        %v1903 = vpop.permute.xlu0 %1902
        %v1906 = vadd.f32 %v1786, %v1901
        %v1907 = vadd.f32 %v1787, %v1903
        %s1908 = sadd.s32 %s199, 88
        %s1909 = sld [smem:[#allocation2 + %s1908]]
        %v1910 = vstv %s1909
        %v1911 = vmul.f32 %v1910, %v1395
        %v1912 = vmul.f32 %v1910, %v1396
        %1915 = vrot.lane.b32.xlu0 %v1911, 127
        %v1916 = vpop.permute.xlu0 %1915
        %1917 = vrot.lane.b32.xlu0 %v1912, 127
        %v1918 = vpop.permute.xlu0 %1917
        %v1921 = vadd.f32 %v1801, %v1916
        %v1922 = vadd.f32 %v1802, %v1918
        %s1923 = sadd.s32 %s199, 112
        %s1924 = sld [smem:[#allocation2 + %s1923]]
        %v1925 = vstv %s1924
        %v1926 = vmul.f32 %v1925, %v1395
        %v1927 = vmul.f32 %v1925, %v1396
        %1930 = vrot.lane.b32.xlu0 %v1926, 127
        %v1931 = vpop.permute.xlu0 %1930
        %1932 = vrot.lane.b32.xlu0 %v1927, 127
        %v1933 = vpop.permute.xlu0 %1932
        %v1936 = vadd.f32 %v1816, %v1931
        %v1937 = vadd.f32 %v1817, %v1933
        %s1938 = sadd.s32 %s199, 136
        %s1939 = sld [smem:[#allocation2 + %s1938]]
        %v1940 = vstv %s1939
        %v1941 = vmul.f32 %v1940, %v1395
        %v1942 = vmul.f32 %v1940, %v1396
        %1945 = vrot.lane.b32.xlu0 %v1941, 127
        %v1946 = vpop.permute.xlu0 %1945
        %1947 = vrot.lane.b32.xlu0 %v1942, 127
        %v1948 = vpop.permute.xlu0 %1947
        %v1951 = vadd.f32 %v1831, %v1946
        %v1952 = vadd.f32 %v1832, %v1948
        %s1953 = sadd.s32 %s199, 160
        %s1954 = sld [smem:[#allocation2 + %s1953]]
        %v1955 = vstv %s1954
        %v1956 = vmul.f32 %v1955, %v1395
        %v1957 = vmul.f32 %v1955, %v1396
        %1960 = vrot.lane.b32.xlu0 %v1956, 127
        %v1961 = vpop.permute.xlu0 %1960
        %1962 = vrot.lane.b32.xlu0 %v1957, 127
        %v1963 = vpop.permute.xlu0 %1962
        %v1966 = vadd.f32 %v1846, %v1961
        %v1967 = vadd.f32 %v1847, %v1963
        %s1968 = sadd.s32 %s199, 184
        %s1969 = sld [smem:[#allocation2 + %s1968]]
        %v1970 = vstv %s1969
        %v1971 = vmul.f32 %v1970, %v1395
        %v1972 = vmul.f32 %v1970, %v1396
        %1975 = vrot.lane.b32.xlu0 %v1971, 127
        %v1976 = vpop.permute.xlu0 %1975
        %1977 = vrot.lane.b32.xlu0 %v1972, 127
        %v1978 = vpop.permute.xlu0 %1977
        %v1981 = vadd.f32 %v1861, %v1976
        %v1982 = vadd.f32 %v1862, %v1978
        %s1983 = sadd.s32 %s199, 22
        %s1984 = sld [smem:[#allocation2 + %s1983]]
        %v1985 = vstv %s1984
        %v1986 = vmul.f32 %v1985, %v1397
        %v1987 = vmul.f32 %v1985, %v1398
        %1990 = vrot.lane.b32.xlu0 %v1986, 127
        %v1991 = vpop.permute.xlu0 %1990
        %1992 = vrot.lane.b32.xlu0 %v1987, 127
        %v1993 = vpop.permute.xlu0 %1992
        %v1996 = vadd.f32 %v1876, %v1991
        %v1997 = vadd.f32 %v1877, %v1993
        %s1998 = sadd.s32 %s199, 46
        %s1999 = sld [smem:[#allocation2 + %s1998]]
        %v2000 = vstv %s1999
        %v2001 = vmul.f32 %v2000, %v1397
        %v2002 = vmul.f32 %v2000, %v1398
        %2005 = vrot.lane.b32.xlu0 %v2001, 127
        %v2006 = vpop.permute.xlu0 %2005
        %2007 = vrot.lane.b32.xlu0 %v2002, 127
        %v2008 = vpop.permute.xlu0 %2007
        %v2011 = vadd.f32 %v1891, %v2006
        %v2012 = vadd.f32 %v1892, %v2008
        %s2013 = sadd.s32 %s199, 70
        %s2014 = sld [smem:[#allocation2 + %s2013]]
        %v2015 = vstv %s2014
        %v2016 = vmul.f32 %v2015, %v1397
        %v2017 = vmul.f32 %v2015, %v1398
        %2020 = vrot.lane.b32.xlu0 %v2016, 127
        %v2021 = vpop.permute.xlu0 %2020
        %2022 = vrot.lane.b32.xlu0 %v2017, 127
        %v2023 = vpop.permute.xlu0 %2022
        %v2026 = vadd.f32 %v1906, %v2021
        %v2027 = vadd.f32 %v1907, %v2023
        %s2028 = sadd.s32 %s199, 94
        %s2029 = sld [smem:[#allocation2 + %s2028]]
        %v2030 = vstv %s2029
        %v2031 = vmul.f32 %v2030, %v1397
        %v2032 = vmul.f32 %v2030, %v1398
        %2035 = vrot.lane.b32.xlu0 %v2031, 127
        %v2036 = vpop.permute.xlu0 %2035
        %2037 = vrot.lane.b32.xlu0 %v2032, 127
        %v2038 = vpop.permute.xlu0 %2037
        %v2041 = vadd.f32 %v1921, %v2036
        %v2042 = vadd.f32 %v1922, %v2038
        %s2043 = sadd.s32 %s199, 118
        %s2044 = sld [smem:[#allocation2 + %s2043]]
        %v2045 = vstv %s2044
        %v2046 = vmul.f32 %v2045, %v1397
        %v2047 = vmul.f32 %v2045, %v1398
        %2050 = vrot.lane.b32.xlu0 %v2046, 127
        %v2051 = vpop.permute.xlu0 %2050
        %2052 = vrot.lane.b32.xlu0 %v2047, 127
        %v2053 = vpop.permute.xlu0 %2052
        %v2056 = vadd.f32 %v1936, %v2051
        %v2057 = vadd.f32 %v1937, %v2053
        %s2058 = sadd.s32 %s199, 142
        %s2059 = sld [smem:[#allocation2 + %s2058]]
        %v2060 = vstv %s2059
        %v2061 = vmul.f32 %v2060, %v1397
        %v2062 = vmul.f32 %v2060, %v1398
        %2065 = vrot.lane.b32.xlu0 %v2061, 127
        %v2066 = vpop.permute.xlu0 %2065
        %2067 = vrot.lane.b32.xlu0 %v2062, 127
        %v2068 = vpop.permute.xlu0 %2067
        %v2071 = vadd.f32 %v1951, %v2066
        %v2072 = vadd.f32 %v1952, %v2068
        %s2073 = sadd.s32 %s199, 166
        %s2074 = sld [smem:[#allocation2 + %s2073]]
        %v2075 = vstv %s2074
        %v2076 = vmul.f32 %v2075, %v1397
        %v2077 = vmul.f32 %v2075, %v1398
        %2080 = vrot.lane.b32.xlu0 %v2076, 127
        %v2081 = vpop.permute.xlu0 %2080
        %2082 = vrot.lane.b32.xlu0 %v2077, 127
        %v2083 = vpop.permute.xlu0 %2082
        %v2086 = vadd.f32 %v1966, %v2081
        %v2087 = vadd.f32 %v1967, %v2083
        %s2088 = sadd.s32 %s199, 190
        %s2089 = sld [smem:[#allocation2 + %s2088]]
        %v2090 = vstv %s2089
        %v2091 = vmul.f32 %v2090, %v1397
        %v2092 = vmul.f32 %v2090, %v1398
        %2095 = vrot.lane.b32.xlu0 %v2091, 127
        %v2096 = vpop.permute.xlu0 %2095
        %2097 = vrot.lane.b32.xlu0 %v2092, 127
        %v2098 = vpop.permute.xlu0 %2097
        %v2101 = vadd.f32 %v1981, %v2096
        %v2102 = vadd.f32 %v1982, %v2098
        %s2103 = sadd.s32 %s199, 5
        %s2104 = sld [smem:[#allocation2 + %s2103]]
        %v2105 = vstv %s2104
        %v2106 = vmul.f32 %v2105, %v1391
        %v2107 = vmul.f32 %v2105, %v1392
        %2110 = vrot.lane.b32.xlu0 %v2106, 126
        %v2111 = vpop.permute.xlu0 %2110
        %2112 = vrot.lane.b32.xlu0 %v2107, 126
        %v2113 = vpop.permute.xlu0 %2112
        %v2116 = vadd.f32 %v1996, %v2111
        %v2117 = vadd.f32 %v1997, %v2113
        %s2118 = sadd.s32 %s199, 29
        %s2119 = sld [smem:[#allocation2 + %s2118]]
        %v2120 = vstv %s2119
        %v2121 = vmul.f32 %v2120, %v1391
        %v2122 = vmul.f32 %v2120, %v1392
        %2125 = vrot.lane.b32.xlu0 %v2121, 126
        %v2126 = vpop.permute.xlu0 %2125
        %2127 = vrot.lane.b32.xlu0 %v2122, 126
        %v2128 = vpop.permute.xlu0 %2127
        %v2131 = vadd.f32 %v2011, %v2126
        %v2132 = vadd.f32 %v2012, %v2128
        %s2133 = sadd.s32 %s199, 53
        %s2134 = sld [smem:[#allocation2 + %s2133]]
        %v2135 = vstv %s2134
        %v2136 = vmul.f32 %v2135, %v1391
        %v2137 = vmul.f32 %v2135, %v1392
        %2140 = vrot.lane.b32.xlu0 %v2136, 126
        %v2141 = vpop.permute.xlu0 %2140
        %2142 = vrot.lane.b32.xlu0 %v2137, 126
        %v2143 = vpop.permute.xlu0 %2142
        %v2146 = vadd.f32 %v2026, %v2141
        %v2147 = vadd.f32 %v2027, %v2143
        %s2148 = sadd.s32 %s199, 77
        %s2149 = sld [smem:[#allocation2 + %s2148]]
        %v2150 = vstv %s2149
        %v2151 = vmul.f32 %v2150, %v1391
        %v2152 = vmul.f32 %v2150, %v1392
        %2155 = vrot.lane.b32.xlu0 %v2151, 126
        %v2156 = vpop.permute.xlu0 %2155
        %2157 = vrot.lane.b32.xlu0 %v2152, 126
        %v2158 = vpop.permute.xlu0 %2157
        %v2161 = vadd.f32 %v2041, %v2156
        %v2162 = vadd.f32 %v2042, %v2158
        %s2163 = sadd.s32 %s199, 101
        %s2164 = sld [smem:[#allocation2 + %s2163]]
        %v2165 = vstv %s2164
        %v2166 = vmul.f32 %v2165, %v1391
        %v2167 = vmul.f32 %v2165, %v1392
        %2170 = vrot.lane.b32.xlu0 %v2166, 126
        %v2171 = vpop.permute.xlu0 %2170
        %2172 = vrot.lane.b32.xlu0 %v2167, 126
        %v2173 = vpop.permute.xlu0 %2172
        %v2176 = vadd.f32 %v2056, %v2171
        %v2177 = vadd.f32 %v2057, %v2173
        %s2178 = sadd.s32 %s199, 125
        %s2179 = sld [smem:[#allocation2 + %s2178]]
        %v2180 = vstv %s2179
        %v2181 = vmul.f32 %v2180, %v1391
        %v2182 = vmul.f32 %v2180, %v1392
        %2185 = vrot.lane.b32.xlu0 %v2181, 126
        %v2186 = vpop.permute.xlu0 %2185
        %2187 = vrot.lane.b32.xlu0 %v2182, 126
        %v2188 = vpop.permute.xlu0 %2187
        %v2191 = vadd.f32 %v2071, %v2186
        %v2192 = vadd.f32 %v2072, %v2188
        %s2193 = sadd.s32 %s199, 149
        %s2194 = sld [smem:[#allocation2 + %s2193]]
        %v2195 = vstv %s2194
        %v2196 = vmul.f32 %v2195, %v1391
        %v2197 = vmul.f32 %v2195, %v1392
        %2200 = vrot.lane.b32.xlu0 %v2196, 126
        %v2201 = vpop.permute.xlu0 %2200
        %2202 = vrot.lane.b32.xlu0 %v2197, 126
        %v2203 = vpop.permute.xlu0 %2202
        %v2206 = vadd.f32 %v2086, %v2201
        %v2207 = vadd.f32 %v2087, %v2203
        %s2208 = sadd.s32 %s199, 173
        %s2209 = sld [smem:[#allocation2 + %s2208]]
        %v2210 = vstv %s2209
        %v2211 = vmul.f32 %v2210, %v1391
        %v2212 = vmul.f32 %v2210, %v1392
        %2215 = vrot.lane.b32.xlu0 %v2211, 126
        %v2216 = vpop.permute.xlu0 %2215
        %2217 = vrot.lane.b32.xlu0 %v2212, 126
        %v2218 = vpop.permute.xlu0 %2217
        %v2221 = vadd.f32 %v2101, %v2216
        %v2222 = vadd.f32 %v2102, %v2218
        %s2223 = sadd.s32 %s199, 11
        %s2224 = sld [smem:[#allocation2 + %s2223]]
        %v2225 = vstv %s2224
        %v2226 = vmul.f32 %v2225, %v1393
        %v2227 = vmul.f32 %v2225, %v1394
        %2230 = vrot.lane.b32.xlu0 %v2226, 126
        %v2231 = vpop.permute.xlu0 %2230
        %2232 = vrot.lane.b32.xlu0 %v2227, 126
        %v2233 = vpop.permute.xlu0 %2232
        %v2236 = vadd.f32 %v2116, %v2231
        %v2237 = vadd.f32 %v2117, %v2233
        %s2238 = sadd.s32 %s199, 35
        %s2239 = sld [smem:[#allocation2 + %s2238]]
        %v2240 = vstv %s2239
        %v2241 = vmul.f32 %v2240, %v1393
        %v2242 = vmul.f32 %v2240, %v1394
        %2245 = vrot.lane.b32.xlu0 %v2241, 126
        %v2246 = vpop.permute.xlu0 %2245
        %2247 = vrot.lane.b32.xlu0 %v2242, 126
        %v2248 = vpop.permute.xlu0 %2247
        %v2251 = vadd.f32 %v2131, %v2246
        %v2252 = vadd.f32 %v2132, %v2248
        %s2253 = sadd.s32 %s199, 59
        %s2254 = sld [smem:[#allocation2 + %s2253]]
        %v2255 = vstv %s2254
        %v2256 = vmul.f32 %v2255, %v1393
        %v2257 = vmul.f32 %v2255, %v1394
        %2260 = vrot.lane.b32.xlu0 %v2256, 126
        %v2261 = vpop.permute.xlu0 %2260
        %2262 = vrot.lane.b32.xlu0 %v2257, 126
        %v2263 = vpop.permute.xlu0 %2262
        %v2266 = vadd.f32 %v2146, %v2261
        %v2267 = vadd.f32 %v2147, %v2263
        %s2268 = sadd.s32 %s199, 83
        %s2269 = sld [smem:[#allocation2 + %s2268]]
        %v2270 = vstv %s2269
        %v2271 = vmul.f32 %v2270, %v1393
        %v2272 = vmul.f32 %v2270, %v1394
        %2275 = vrot.lane.b32.xlu0 %v2271, 126
        %v2276 = vpop.permute.xlu0 %2275
        %2277 = vrot.lane.b32.xlu0 %v2272, 126
        %v2278 = vpop.permute.xlu0 %2277
        %v2281 = vadd.f32 %v2161, %v2276
        %v2282 = vadd.f32 %v2162, %v2278
        %s2283 = sadd.s32 %s199, 107
        %s2284 = sld [smem:[#allocation2 + %s2283]]
        %v2285 = vstv %s2284
        %v2286 = vmul.f32 %v2285, %v1393
        %v2287 = vmul.f32 %v2285, %v1394
        %2290 = vrot.lane.b32.xlu0 %v2286, 126
        %v2291 = vpop.permute.xlu0 %2290
        %2292 = vrot.lane.b32.xlu0 %v2287, 126
        %v2293 = vpop.permute.xlu0 %2292
        %v2296 = vadd.f32 %v2176, %v2291
        %v2297 = vadd.f32 %v2177, %v2293
        %s2298 = sadd.s32 %s199, 131
        %s2299 = sld [smem:[#allocation2 + %s2298]]
        %v2300 = vstv %s2299
        %v2301 = vmul.f32 %v2300, %v1393
        %v2302 = vmul.f32 %v2300, %v1394
        %2305 = vrot.lane.b32.xlu0 %v2301, 126
        %v2306 = vpop.permute.xlu0 %2305
        %2307 = vrot.lane.b32.xlu0 %v2302, 126
        %v2308 = vpop.permute.xlu0 %2307
        %v2311 = vadd.f32 %v2191, %v2306
        %v2312 = vadd.f32 %v2192, %v2308
        %s2313 = sadd.s32 %s199, 155
        %s2314 = sld [smem:[#allocation2 + %s2313]]
        %v2315 = vstv %s2314
        %v2316 = vmul.f32 %v2315, %v1393
        %v2317 = vmul.f32 %v2315, %v1394
        %2320 = vrot.lane.b32.xlu0 %v2316, 126
        %v2321 = vpop.permute.xlu0 %2320
        %2322 = vrot.lane.b32.xlu0 %v2317, 126
        %v2323 = vpop.permute.xlu0 %2322
        %v2326 = vadd.f32 %v2206, %v2321
        %v2327 = vadd.f32 %v2207, %v2323
        %s2328 = sadd.s32 %s199, 179
        %s2329 = sld [smem:[#allocation2 + %s2328]]
        %v2330 = vstv %s2329
        %v2331 = vmul.f32 %v2330, %v1393
        %v2332 = vmul.f32 %v2330, %v1394
        %2335 = vrot.lane.b32.xlu0 %v2331, 126
        %v2336 = vpop.permute.xlu0 %2335
        %2337 = vrot.lane.b32.xlu0 %v2332, 126
        %v2338 = vpop.permute.xlu0 %2337
        %v2341 = vadd.f32 %v2221, %v2336
        %v2342 = vadd.f32 %v2222, %v2338
        %s2343 = sadd.s32 %s199, 17
        %s2344 = sld [smem:[#allocation2 + %s2343]]
        %v2345 = vstv %s2344
        %v2346 = vmul.f32 %v2345, %v1395
        %v2347 = vmul.f32 %v2345, %v1396
        %2350 = vrot.lane.b32.xlu0 %v2346, 126
        %v2351 = vpop.permute.xlu0 %2350
        %2352 = vrot.lane.b32.xlu0 %v2347, 126
        %v2353 = vpop.permute.xlu0 %2352
        %v2356 = vadd.f32 %v2236, %v2351
        %v2357 = vadd.f32 %v2237, %v2353
        %s2358 = sadd.s32 %s199, 41
        %s2359 = sld [smem:[#allocation2 + %s2358]]
        %v2360 = vstv %s2359
        %v2361 = vmul.f32 %v2360, %v1395
        %v2362 = vmul.f32 %v2360, %v1396
        %2365 = vrot.lane.b32.xlu0 %v2361, 126
        %v2366 = vpop.permute.xlu0 %2365
        %2367 = vrot.lane.b32.xlu0 %v2362, 126
        %v2368 = vpop.permute.xlu0 %2367
        %v2371 = vadd.f32 %v2251, %v2366
        %v2372 = vadd.f32 %v2252, %v2368
        %s2373 = sadd.s32 %s199, 65
        %s2374 = sld [smem:[#allocation2 + %s2373]]
        %v2375 = vstv %s2374
        %v2376 = vmul.f32 %v2375, %v1395
        %v2377 = vmul.f32 %v2375, %v1396
        %2380 = vrot.lane.b32.xlu0 %v2376, 126
        %v2381 = vpop.permute.xlu0 %2380
        %2382 = vrot.lane.b32.xlu0 %v2377, 126
        %v2383 = vpop.permute.xlu0 %2382
        %v2386 = vadd.f32 %v2266, %v2381
        %v2387 = vadd.f32 %v2267, %v2383
        %s2388 = sadd.s32 %s199, 89
        %s2389 = sld [smem:[#allocation2 + %s2388]]
        %v2390 = vstv %s2389
        %v2391 = vmul.f32 %v2390, %v1395
        %v2392 = vmul.f32 %v2390, %v1396
        %2395 = vrot.lane.b32.xlu0 %v2391, 126
        %v2396 = vpop.permute.xlu0 %2395
        %2397 = vrot.lane.b32.xlu0 %v2392, 126
        %v2398 = vpop.permute.xlu0 %2397
        %v2401 = vadd.f32 %v2281, %v2396
        %v2402 = vadd.f32 %v2282, %v2398
        %s2403 = sadd.s32 %s199, 113
        %s2404 = sld [smem:[#allocation2 + %s2403]]
        %v2405 = vstv %s2404
        %v2406 = vmul.f32 %v2405, %v1395
        %v2407 = vmul.f32 %v2405, %v1396
        %2410 = vrot.lane.b32.xlu0 %v2406, 126
        %v2411 = vpop.permute.xlu0 %2410
        %2412 = vrot.lane.b32.xlu0 %v2407, 126
        %v2413 = vpop.permute.xlu0 %2412
        %v2416 = vadd.f32 %v2296, %v2411
        %v2417 = vadd.f32 %v2297, %v2413
        %s2418 = sadd.s32 %s199, 137
        %s2419 = sld [smem:[#allocation2 + %s2418]]
        %v2420 = vstv %s2419
        %v2421 = vmul.f32 %v2420, %v1395
        %v2422 = vmul.f32 %v2420, %v1396
        %2425 = vrot.lane.b32.xlu0 %v2421, 126
        %v2426 = vpop.permute.xlu0 %2425
        %2427 = vrot.lane.b32.xlu0 %v2422, 126
        %v2428 = vpop.permute.xlu0 %2427
        %v2431 = vadd.f32 %v2311, %v2426
        %v2432 = vadd.f32 %v2312, %v2428
        %s2433 = sadd.s32 %s199, 161
        %s2434 = sld [smem:[#allocation2 + %s2433]]
        %v2435 = vstv %s2434
        %v2436 = vmul.f32 %v2435, %v1395
        %v2437 = vmul.f32 %v2435, %v1396
        %2440 = vrot.lane.b32.xlu0 %v2436, 126
        %v2441 = vpop.permute.xlu0 %2440
        %2442 = vrot.lane.b32.xlu0 %v2437, 126
        %v2443 = vpop.permute.xlu0 %2442
        %v2446 = vadd.f32 %v2326, %v2441
        %v2447 = vadd.f32 %v2327, %v2443
        %s2448 = sadd.s32 %s199, 185
        %s2449 = sld [smem:[#allocation2 + %s2448]]
        %v2450 = vstv %s2449
        %v2451 = vmul.f32 %v2450, %v1395
        %v2452 = vmul.f32 %v2450, %v1396
        %2455 = vrot.lane.b32.xlu0 %v2451, 126
        %v2456 = vpop.permute.xlu0 %2455
        %2457 = vrot.lane.b32.xlu0 %v2452, 126
        %v2458 = vpop.permute.xlu0 %2457
        %v2461 = vadd.f32 %v2341, %v2456
        %v2462 = vadd.f32 %v2342, %v2458
        %s2463 = sadd.s32 %s199, 23
        %s2464 = sld [smem:[#allocation2 + %s2463]]
        %v2465 = vstv %s2464
        %v2466 = vmul.f32 %v2465, %v1397
        %v2467 = vmul.f32 %v2465, %v1398
        %2470 = vrot.lane.b32.xlu0 %v2466, 126
        %v2471 = vpop.permute.xlu0 %2470
        %2472 = vrot.lane.b32.xlu0 %v2467, 126
        %v2473 = vpop.permute.xlu0 %2472
        %v2476 = vadd.f32 %v2356, %v2471
        %v2477 = vadd.f32 %v2357, %v2473
        %s2478 = sadd.s32 %s199, 47
        %s2479 = sld [smem:[#allocation2 + %s2478]]
        %v2480 = vstv %s2479
        %v2481 = vmul.f32 %v2480, %v1397
        %v2482 = vmul.f32 %v2480, %v1398
        %2485 = vrot.lane.b32.xlu0 %v2481, 126
        %v2486 = vpop.permute.xlu0 %2485
        %2487 = vrot.lane.b32.xlu0 %v2482, 126
        %v2488 = vpop.permute.xlu0 %2487
        %v2491 = vadd.f32 %v2371, %v2486
        %v2492 = vadd.f32 %v2372, %v2488
        %s2493 = sadd.s32 %s199, 71
        %s2494 = sld [smem:[#allocation2 + %s2493]]
        %v2495 = vstv %s2494
        %v2496 = vmul.f32 %v2495, %v1397
        %v2497 = vmul.f32 %v2495, %v1398
        %2500 = vrot.lane.b32.xlu0 %v2496, 126
        %v2501 = vpop.permute.xlu0 %2500
        %2502 = vrot.lane.b32.xlu0 %v2497, 126
        %v2503 = vpop.permute.xlu0 %2502
        %v2506 = vadd.f32 %v2386, %v2501
        %v2507 = vadd.f32 %v2387, %v2503
        %s2508 = sadd.s32 %s199, 95
        %s2509 = sld [smem:[#allocation2 + %s2508]]
        %v2510 = vstv %s2509
        %v2511 = vmul.f32 %v2510, %v1397
        %v2512 = vmul.f32 %v2510, %v1398
        %2515 = vrot.lane.b32.xlu0 %v2511, 126
        %v2516 = vpop.permute.xlu0 %2515
        %2517 = vrot.lane.b32.xlu0 %v2512, 126
        %v2518 = vpop.permute.xlu0 %2517
        %v2521 = vadd.f32 %v2401, %v2516
        %v2522 = vadd.f32 %v2402, %v2518
        %s2523 = sadd.s32 %s199, 119
        %s2524 = sld [smem:[#allocation2 + %s2523]]
        %v2525 = vstv %s2524
        %v2526 = vmul.f32 %v2525, %v1397
        %v2527 = vmul.f32 %v2525, %v1398
        %2530 = vrot.lane.b32.xlu0 %v2526, 126
        %v2531 = vpop.permute.xlu0 %2530
        %2532 = vrot.lane.b32.xlu0 %v2527, 126
        %v2533 = vpop.permute.xlu0 %2532
        %v2536 = vadd.f32 %v2416, %v2531
        %v2537 = vadd.f32 %v2417, %v2533
        %s2538 = sadd.s32 %s199, 143
        %s2539 = sld [smem:[#allocation2 + %s2538]]
        %v2540 = vstv %s2539
        %v2541 = vmul.f32 %v2540, %v1397
        %v2542 = vmul.f32 %v2540, %v1398
        %2545 = vrot.lane.b32.xlu0 %v2541, 126
        %v2546 = vpop.permute.xlu0 %2545
        %2547 = vrot.lane.b32.xlu0 %v2542, 126
        %v2548 = vpop.permute.xlu0 %2547
        %v2551 = vadd.f32 %v2431, %v2546
        %v2552 = vadd.f32 %v2432, %v2548
        %s2553 = sadd.s32 %s199, 167
        %s2554 = sld [smem:[#allocation2 + %s2553]]
        %v2555 = vstv %s2554
        %v2556 = vmul.f32 %v2555, %v1397
        %v2557 = vmul.f32 %v2555, %v1398
        %2560 = vrot.lane.b32.xlu0 %v2556, 126
        %v2561 = vpop.permute.xlu0 %2560
        %2562 = vrot.lane.b32.xlu0 %v2557, 126
        %v2563 = vpop.permute.xlu0 %2562
        %v2566 = vadd.f32 %v2446, %v2561
        %v2567 = vadd.f32 %v2447, %v2563
        %s2568 = sadd.s32 %s199, 191
        %s2569 = sld [smem:[#allocation2 + %s2568]]
        %v2570 = vstv %s2569
        %v2571 = vmul.f32 %v2570, %v1397
        %v2572 = vmul.f32 %v2570, %v1398
        %2575 = vrot.lane.b32.xlu0 %v2571, 126
        %v2576 = vpop.permute.xlu0 %2575
        %2577 = vrot.lane.b32.xlu0 %v2572, 126
        %v2578 = vpop.permute.xlu0 %2577
        %v2581 = vadd.f32 %v2461, %v2576
        %v2582 = vadd.f32 %v2462, %v2578
        %v2583 = vcombine.low %v2476, %v2506
        %v2584 = vcombine.high %v2476, %v2506
        %v2586 = vunpack.c.l.s4 1983009808
        %v2587 = vunpack.c.0.s8 %v2586
        %v2588 = vlaneseq
        %v2589 = vshrl.u32 %v2588, 7
        %v2590 = vsub.s32 %v2587, %v2589
        %v2591 = vrot.slane %v2583, %v2590
        %v2593 = vunpack.c.l.s4 1983009808
        %v2594 = vunpack.c.0.s8 %v2593
        %v2595 = vlaneseq
        %v2596 = vshrl.u32 %v2595, 7
        %v2597 = vsub.s32 %v2594, %v2596
        %v2598 = vrot.slane %v2584, %v2597
        %v2599 = vcombine.low %v2491, %v2521
        %v2600 = vcombine.high %v2491, %v2521
        %v2602 = vunpack.c.l.s4 1983009808
        %v2603 = vunpack.c.0.s8 %v2602
        %v2604 = vlaneseq
        %v2605 = vshrl.u32 %v2604, 7
        %v2606 = vsub.s32 %v2603, %v2605
        %v2607 = vrot.slane %v2599, %v2606
        %v2609 = vunpack.c.l.s4 1983009808
        %v2610 = vunpack.c.0.s8 %v2609
        %v2611 = vlaneseq
        %v2612 = vshrl.u32 %v2611, 7
        %v2613 = vsub.s32 %v2610, %v2612
        %v2614 = vrot.slane %v2600, %v2613
        %v2615 = vcombine.low %v2536, %v2566
        %v2616 = vcombine.high %v2536, %v2566
        %v2618 = vunpack.c.l.s4 1983009808
        %v2619 = vunpack.c.0.s8 %v2618
        %v2620 = vlaneseq
        %v2621 = vshrl.u32 %v2620, 7
        %v2622 = vsub.s32 %v2619, %v2621
        %v2623 = vrot.slane %v2615, %v2622
        %v2625 = vunpack.c.l.s4 1983009808
        %v2626 = vunpack.c.0.s8 %v2625
        %v2627 = vlaneseq
        %v2628 = vshrl.u32 %v2627, 7
        %v2629 = vsub.s32 %v2626, %v2628
        %v2630 = vrot.slane %v2616, %v2629
        %v2631 = vcombine.low %v2551, %v2581
        %v2632 = vcombine.high %v2551, %v2581
        %v2634 = vunpack.c.l.s4 1983009808
        %v2635 = vunpack.c.0.s8 %v2634
        %v2636 = vlaneseq
        %v2637 = vshrl.u32 %v2636, 7
        %v2638 = vsub.s32 %v2635, %v2637
        %v2639 = vrot.slane %v2631, %v2638
        %v2641 = vunpack.c.l.s4 1983009808
        %v2642 = vunpack.c.0.s8 %v2641
        %v2643 = vlaneseq
        %v2644 = vshrl.u32 %v2643, 7
        %v2645 = vsub.s32 %v2642, %v2644
        %v2646 = vrot.slane %v2632, %v2645
        %v2647 = vcombine.low %v2591, %v2607
        %v2648 = vcombine.high %v2591, %v2607
        %v2650 = vunpack.c.l.s4 1934713408
        %v2651 = vunpack.c.0.s8 %v2650
        %v2652 = vlaneseq
        %v2653 = vshrl.u32 %v2652, 7
        %v2654 = vsub.s32 %v2651, %v2653
        %v2655 = vrot.slane %v2647, %v2654
        %v2657 = vunpack.c.l.s4 1934713408
        %v2658 = vunpack.c.0.s8 %v2657
        %v2659 = vlaneseq
        %v2660 = vshrl.u32 %v2659, 7
        %v2661 = vsub.s32 %v2658, %v2660
        %v2662 = vrot.slane %v2648, %v2661
        %v2663 = vcombine.low %v2598, %v2614
        %v2664 = vcombine.high %v2598, %v2614
        %v2666 = vunpack.c.l.s4 1934713408
        %v2667 = vunpack.c.0.s8 %v2666
        %v2668 = vlaneseq
        %v2669 = vshrl.u32 %v2668, 7
        %v2670 = vsub.s32 %v2667, %v2669
        %v2671 = vrot.slane %v2663, %v2670
        %v2673 = vunpack.c.l.s4 1934713408
        %v2674 = vunpack.c.0.s8 %v2673
        %v2675 = vlaneseq
        %v2676 = vshrl.u32 %v2675, 7
        %v2677 = vsub.s32 %v2674, %v2676
        %v2678 = vrot.slane %v2664, %v2677
        %v2679 = vcombine.low %v2623, %v2639
        %v2680 = vcombine.high %v2623, %v2639
        %v2682 = vunpack.c.l.s4 1934713408
        %v2683 = vunpack.c.0.s8 %v2682
        %v2684 = vlaneseq
        %v2685 = vshrl.u32 %v2684, 7
        %v2686 = vsub.s32 %v2683, %v2685
        %v2687 = vrot.slane %v2679, %v2686
        %v2689 = vunpack.c.l.s4 1934713408
        %v2690 = vunpack.c.0.s8 %v2689
        %v2691 = vlaneseq
        %v2692 = vshrl.u32 %v2691, 7
        %v2693 = vsub.s32 %v2690, %v2692
        %v2694 = vrot.slane %v2680, %v2693
        %v2695 = vcombine.low %v2630, %v2646
        %v2696 = vcombine.high %v2630, %v2646
        %v2698 = vunpack.c.l.s4 1934713408
        %v2699 = vunpack.c.0.s8 %v2698
        %v2700 = vlaneseq
        %v2701 = vshrl.u32 %v2700, 7
        %v2702 = vsub.s32 %v2699, %v2701
        %v2703 = vrot.slane %v2695, %v2702
        %v2705 = vunpack.c.l.s4 1934713408
        %v2706 = vunpack.c.0.s8 %v2705
        %v2707 = vlaneseq
        %v2708 = vshrl.u32 %v2707, 7
        %v2709 = vsub.s32 %v2706, %v2708
        %v2710 = vrot.slane %v2696, %v2709
        %v2711 = vcombine.low %v2655, %v2687
        %v2712 = vcombine.high %v2655, %v2687
        %v2713 = vcombine.low %v2662, %v2694
        %v2714 = vcombine.high %v2662, %v2694
        %v2715 = vcombine.low %v2671, %v2703
        %v2716 = vcombine.high %v2671, %v2703
        %v2717 = vcombine.low %v2678, %v2710
        %v2718 = vcombine.high %v2678, %v2710
        %v2719 = vcombine.low %v2477, %v2507
        %v2720 = vcombine.high %v2477, %v2507
        %v2722 = vunpack.c.l.s4 1983009808
        %v2723 = vunpack.c.0.s8 %v2722
        %v2724 = vlaneseq
        %v2725 = vshrl.u32 %v2724, 7
        %v2726 = vsub.s32 %v2723, %v2725
        %v2727 = vrot.slane %v2719, %v2726
        %v2729 = vunpack.c.l.s4 1983009808
        %v2730 = vunpack.c.0.s8 %v2729
        %v2731 = vlaneseq
        %v2732 = vshrl.u32 %v2731, 7
        %v2733 = vsub.s32 %v2730, %v2732
        %v2734 = vrot.slane %v2720, %v2733
        %v2735 = vcombine.low %v2492, %v2522
        %v2736 = vcombine.high %v2492, %v2522
        %v2738 = vunpack.c.l.s4 1983009808
        %v2739 = vunpack.c.0.s8 %v2738
        %v2740 = vlaneseq
        %v2741 = vshrl.u32 %v2740, 7
        %v2742 = vsub.s32 %v2739, %v2741
        %v2743 = vrot.slane %v2735, %v2742
        %v2745 = vunpack.c.l.s4 1983009808
        %v2746 = vunpack.c.0.s8 %v2745
        %v2747 = vlaneseq
        %v2748 = vshrl.u32 %v2747, 7
        %v2749 = vsub.s32 %v2746, %v2748
        %v2750 = vrot.slane %v2736, %v2749
        %v2751 = vcombine.low %v2537, %v2567
        %v2752 = vcombine.high %v2537, %v2567
        %v2754 = vunpack.c.l.s4 1983009808
        %v2755 = vunpack.c.0.s8 %v2754
        %v2756 = vlaneseq
        %v2757 = vshrl.u32 %v2756, 7
        %v2758 = vsub.s32 %v2755, %v2757
        %v2759 = vrot.slane %v2751, %v2758
        %v2761 = vunpack.c.l.s4 1983009808
        %v2762 = vunpack.c.0.s8 %v2761
        %v2763 = vlaneseq
        %v2764 = vshrl.u32 %v2763, 7
        %v2765 = vsub.s32 %v2762, %v2764
        %v2766 = vrot.slane %v2752, %v2765
        %v2767 = vcombine.low %v2552, %v2582
        %v2768 = vcombine.high %v2552, %v2582
        %v2770 = vunpack.c.l.s4 1983009808
        %v2771 = vunpack.c.0.s8 %v2770
        %v2772 = vlaneseq
        %v2773 = vshrl.u32 %v2772, 7
        %v2774 = vsub.s32 %v2771, %v2773
        %v2775 = vrot.slane %v2767, %v2774
        %v2777 = vunpack.c.l.s4 1983009808
        %v2778 = vunpack.c.0.s8 %v2777
        %v2779 = vlaneseq
        %v2780 = vshrl.u32 %v2779, 7
        %v2781 = vsub.s32 %v2778, %v2780
        %v2782 = vrot.slane %v2768, %v2781
        %v2783 = vcombine.low %v2727, %v2743
        %v2784 = vcombine.high %v2727, %v2743
        %v2786 = vunpack.c.l.s4 1934713408
        %v2787 = vunpack.c.0.s8 %v2786
        %v2788 = vlaneseq
        %v2789 = vshrl.u32 %v2788, 7
        %v2790 = vsub.s32 %v2787, %v2789
        %v2791 = vrot.slane %v2783, %v2790
        %v2793 = vunpack.c.l.s4 1934713408
        %v2794 = vunpack.c.0.s8 %v2793
        %v2795 = vlaneseq
        %v2796 = vshrl.u32 %v2795, 7
        %v2797 = vsub.s32 %v2794, %v2796
        %v2798 = vrot.slane %v2784, %v2797
        %v2799 = vcombine.low %v2734, %v2750
        %v2800 = vcombine.high %v2734, %v2750
        %v2802 = vunpack.c.l.s4 1934713408
        %v2803 = vunpack.c.0.s8 %v2802
        %v2804 = vlaneseq
        %v2805 = vshrl.u32 %v2804, 7
        %v2806 = vsub.s32 %v2803, %v2805
        %v2807 = vrot.slane %v2799, %v2806
        %v2809 = vunpack.c.l.s4 1934713408
        %v2810 = vunpack.c.0.s8 %v2809
        %v2811 = vlaneseq
        %v2812 = vshrl.u32 %v2811, 7
        %v2813 = vsub.s32 %v2810, %v2812
        %v2814 = vrot.slane %v2800, %v2813
        %v2815 = vcombine.low %v2759, %v2775
        %v2816 = vcombine.high %v2759, %v2775
        %v2818 = vunpack.c.l.s4 1934713408
        %v2819 = vunpack.c.0.s8 %v2818
        %v2820 = vlaneseq
        %v2821 = vshrl.u32 %v2820, 7
        %v2822 = vsub.s32 %v2819, %v2821
        %v2823 = vrot.slane %v2815, %v2822
        %v2825 = vunpack.c.l.s4 1934713408
        %v2826 = vunpack.c.0.s8 %v2825
        %v2827 = vlaneseq
        %v2828 = vshrl.u32 %v2827, 7
        %v2829 = vsub.s32 %v2826, %v2828
        %v2830 = vrot.slane %v2816, %v2829
        %v2831 = vcombine.low %v2766, %v2782
        %v2832 = vcombine.high %v2766, %v2782
        %v2834 = vunpack.c.l.s4 1934713408
        %v2835 = vunpack.c.0.s8 %v2834
        %v2836 = vlaneseq
        %v2837 = vshrl.u32 %v2836, 7
        %v2838 = vsub.s32 %v2835, %v2837
        %v2839 = vrot.slane %v2831, %v2838
        %v2841 = vunpack.c.l.s4 1934713408
        %v2842 = vunpack.c.0.s8 %v2841
        %v2843 = vlaneseq
        %v2844 = vshrl.u32 %v2843, 7
        %v2845 = vsub.s32 %v2842, %v2844
        %v2846 = vrot.slane %v2832, %v2845
        %v2847 = vcombine.low %v2791, %v2823
        %v2848 = vcombine.high %v2791, %v2823
        %v2849 = vcombine.low %v2798, %v2830
        %v2850 = vcombine.high %v2798, %v2830
        %v2851 = vcombine.low %v2807, %v2839
        %v2852 = vcombine.high %v2807, %v2839
        %v2853 = vcombine.low %v2814, %v2846
        %v2854 = vcombine.high %v2814, %v2846
        %2856 = vrot.lane.b32.xlu0 %v2712, 16
        %v2857 = vpop.permute.xlu0 %2856
        %2860 = vrot.lane.b32.xlu0 %v2713, 32
        %v2861 = vpop.permute.xlu0 %2860
        %2864 = vrot.lane.b32.xlu0 %v2714, 48
        %v2865 = vpop.permute.xlu0 %2864
        %2868 = vrot.lane.b32.xlu0 %v2715, 64
        %v2869 = vpop.permute.xlu0 %2868
        %2872 = vrot.lane.b32.xlu0 %v2716, 80
        %v2873 = vpop.permute.xlu0 %2872
        %2876 = vrot.lane.b32.xlu0 %v2717, 96
        %v2877 = vpop.permute.xlu0 %2876
        %2880 = vrot.lane.b32.xlu0 %v2718, 112
        %v2881 = vpop.permute.xlu0 %2880
        %2884 = vrot.lane.b32.xlu0 %v2848, 16
        %v2885 = vpop.permute.xlu0 %2884
        %2888 = vrot.lane.b32.xlu0 %v2849, 32
        %v2889 = vpop.permute.xlu0 %2888
        %2892 = vrot.lane.b32.xlu0 %v2850, 48
        %v2893 = vpop.permute.xlu0 %2892
        %2896 = vrot.lane.b32.xlu0 %v2851, 64
        %v2897 = vpop.permute.xlu0 %2896
        %2900 = vrot.lane.b32.xlu0 %v2852, 80
        %v2901 = vpop.permute.xlu0 %2900
        %2904 = vrot.lane.b32.xlu0 %v2853, 96
        %v2905 = vpop.permute.xlu0 %2904
        %2908 = vrot.lane.b32.xlu0 %v2854, 112
        %v2909 = vpop.permute.xlu0 %2908
        %vm2911 = vcmask 130048
        %v2912 = vsel %vm2911, %v2711, %v2857
        %vm2913 = vcmask 261120
        %v2914 = vsel %vm2913, %v2912, %v2861
        %vm2915 = vcmask 392192
        %v2916 = vsel %vm2915, %v2914, %v2865
        %vm2917 = vcmask 523264
        %v2918 = vsel %vm2917, %v2916, %v2869
        %vm2919 = vcmask 654336
        %v2920 = vsel %vm2919, %v2918, %v2873
        %vm2921 = vcmask 785408
        %v2922 = vsel %vm2921, %v2920, %v2877
        %vm2923 = vcmask 916480
        %v2924 = vsel %vm2923, %v2922, %v2881
        %v2925 = vsel %vm2911, %v2847, %v2885
        %v2926 = vsel %vm2913, %v2925, %v2889
        %v2927 = vsel %vm2915, %v2926, %v2893
        %v2928 = vsel %vm2917, %v2927, %v2897
        %v2929 = vsel %vm2919, %v2928, %v2901
        %v2930 = vsel %vm2921, %v2929, %v2905
        %v2931 = vsel %vm2923, %v2930, %v2909
        %2932 = vst [vmem:[%s186] sm:$0xff] %v2924
        %2933 = vst [vmem:[%s186 + $0x8] sm:$0xff] %v2931
        %s2934 = sand.u32 %s97, 1
        %s2935 = scalar_lea.sflag [#allocation3], %s2934
        %s2936 = sand.u32 %s97, 1
        %s2937 = smul.addr %s2936, 16
        %s2938 = scalar_lea.vmem [#allocation5], %s2937
        // Predicated region
        $region33: #{tpu_custom_call.1} parent=27 // pred_check
          %p2939 = pneg %p107
        $region34: #{tpu_custom_call.1} parent=27 // pred_check_branch
          %2941 = sbr.rel (%p2939) target = $region36
        $region35: #{tpu_custom_call.1} parent=27 // pred_region
          %s2942 = smul.u32 2, %s24
          %s2944 = ssub.s32 256, 256
          %2945 = vsyncadd %s2935, %s2944
          %s2946 = smul.addr %s23, 2
          %s2947 = sadd.s32 %s2942, %s2946
          %s2948 = smul.addr %s22, 2
          %s2949 = sadd.s32 %s2947, %s2948
          %s2950 = smul.addr %s2949, 128
          %s2951 = scalar_lea.hbm %s2, %s2950
          %s2953 = sshll.u32 %s2938, 4
          %s2954 = int_to_ptr.vmem [resolvable:$true] %s2953
          %2956 = dma.vmem_to_hbm [thread:$0]  %s2954, 256, %s2951, %s2935
        $region36: #{tpu_custom_call.1} parent=27 // pred_fallthru
          _
      $region28: #{tpu_custom_call.1} parent=5 // pred_fallthru
        _
      %p2957 = scmp.le.s32.totalorder 2, %s12
      // Predicated region
      $region37: #{tpu_custom_call.1} parent=5 // pred_check
        %p2958 = pneg %p2957
      $region38: #{tpu_custom_call.1} parent=5 // pred_check_branch
        %2960 = sbr.rel (%p2958) target = $region40
      $region39: #{tpu_custom_call.1} parent=5 // pred_region
        %s2961 = ssub.s32 %s12, 2
        // Predicated region
        $region41: #{tpu_custom_call.1} parent=39 // pred_check
          %p2962 = pneg %p113
        $region42: #{tpu_custom_call.1} parent=39 // pred_check_branch
          %2964 = sbr.rel (%p2962) target = $region44
        $region43: #{tpu_custom_call.1} parent=39 // pred_region
          %s2965 = sand.u32 %s98, 1
          %s2966 = scalar_lea.sflag [#allocation3], %s2965
          %s2967 = sand.u32 %s98, 1
          %s2968 = smul.addr %s2967, 16
          %s2969 = scalar_lea.vmem [#allocation5], %s2968
          %2970 = dma.done %s2966, 256
        $region44: #{tpu_custom_call.1} parent=39 // pred_fallthru
          _
      $region40: #{tpu_custom_call.1} parent=5 // pred_fallthru
        _
    $region6: #{tpu_custom_call.1} parent=1 // loop_footer
      %s16 = sadd.s32 1, %s12
    $region7: #{tpu_custom_call.1} parent=1 // loop_footer_branch
      %11 = sbr.rel target = $region3
    $region8: #{tpu_custom_call.1} parent=1 // loop_exit
      _
    %2971 = vsyncpa [#allocation3], 1
    %s2972 = scalar_lea.sflag [#allocation3], 1
    %2973 = vsyncpa %s2972, 1
    %2974 = vsyncpa [#allocation4], 1
    %s2975 = scalar_lea.sflag [#allocation4], 1
    %2976 = vsyncpa %s2975, 1

</llo_original>
